<compile_context>
chip_gen: v7x
topology: tpu7x:2x2x1
jax: 0.10.0
libtpu: 0.0.40
codegen_flags: <defaults>
</compile_context>

<pallas_src>
import functools
import math

import jax
import jax.numpy as jnp
from jax.experimental import pallas as pl
from jax.experimental.pallas import tpu as pltpu


def _round_up(x, m):
    return (x + m - 1) // m * m


# ------------------------------------------------------------------ matmul kernel

def _mm_bias_act_kernel(x_ref, w_ref, *rest, act, has_bias):
    if has_bias:
        b_ref, o_ref = rest
    else:
        (o_ref,) = rest
    y = jnp.dot(x_ref[...], w_ref[...], preferred_element_type=jnp.float32)
    if has_bias:
        y = y + b_ref[...]
    if act == "relu":
        y = jnp.maximum(y, 0.0)
    elif act == "sigmoid":
        # reciprocal on the EUP slot (free next to the MXU/VPU work)
        y = pl.reciprocal(1.0 + jnp.exp(-y), approx=True)
    o_ref[...] = y.astype(o_ref.dtype)


def matmul_bias_act(x, wp, bp, act="none"):
    """y = act(x @ wp + bp).

    x : (M, K)  bf16, K is the TRUE (unpadded) contraction extent.
    wp: (K, Np) bf16, prepped once (Np multiple of 128, zero padded).
    bp: (1, Np) f32 or None.
    Returns (M, Np) f32 — caller slices the valid columns.
    """
    M, K = x.shape
    Kw, Np = wp.shape
    assert K == Kw and Np % 128 == 0
    TM = min(512, _round_up(M, 8))          # big tile; >=2 steps on large layers
    grid = (pl.cdiv(M, TM),)
    has_bias = bp is not None

    in_specs = [pl.BlockSpec((TM, K), lambda i: (i, 0)),    # full-extent K block
                pl.BlockSpec((K, Np), lambda i: (0, 0))]    # weight stays resident
    args = [x, wp]
    if has_bias:
        in_specs.append(pl.BlockSpec((1, Np), lambda i: (0, 0)))
        args.append(bp)

    cost = pl.CostEstimate(
        flops=2 * M * K * Np,
        transcendentals=(M * Np) if act == "sigmoid" else 0,
        bytes_accessed=M * K * 2 + K * Np * 2 + Np * 4 + M * Np * 4,
    )
    return pl.pallas_call(
        functools.partial(_mm_bias_act_kernel, act=act, has_bias=has_bias),
        out_shape=jax.ShapeDtypeStruct((M, Np), jnp.float32),
        grid=grid,
        in_specs=in_specs,
        out_specs=pl.BlockSpec((TM, Np), lambda i: (i, 0)),
        compiler_params=pltpu.CompilerParams(dimension_semantics=("parallel",)),
        cost_estimate=cost,
    )(*args)


# ------------------------------------------------------------------ fused dense block

def _fused_dense_kernel(x_ref, w1_ref, b1_ref, w2_ref, b2_ref,
                        w3_ref, b3_ref, w4_ref, b4_ref, o_ref):
    h = x_ref[...]                                           # bf16 input
    for w_ref, b_ref in ((w1_ref, b1_ref), (w2_ref, b2_ref),
                         (w3_ref, b3_ref), (w4_ref, b4_ref)):
        h = jnp.dot(h.astype(jnp.bfloat16), w_ref[...],
                    preferred_element_type=jnp.float32)
        h = jnp.maximum(h + b_ref[...], 0.0)
    o_ref[...] = h.astype(o_ref.dtype)


def fused_dense(h, pp):
    """relu(elin4) -> relu(elin5) -> relu(dlin5) -> relu(dlin4), one kernel.

    All (pre-padded, bf16) weights stay resident in VMEM; zero padding is exact
    through the relu/matmul chain.
    """
    B, F = h.shape
    Bp = _round_up(B, 8)
    w1, b1 = pp["elin4_wm"], pp["elin4_bm"]
    w2, b2 = pp["elin5_wm"], pp["elin5_bm"]
    w3, b3 = pp["dlin5_wm"], pp["dlin5_bm"]
    w4, b4 = pp["dlin4_wm"], pp["dlin4_bm"]
    Fp = w1.shape[0]

    xp = jnp.zeros((Bp, Fp), jnp.bfloat16).at[:B, :F].set(h.astype(jnp.bfloat16))

    out = pl.pallas_call(
        _fused_dense_kernel,
        out_shape=jax.ShapeDtypeStruct((Bp, w4.shape[1]), jnp.float32),
        grid=(1,),
        in_specs=[pl.BlockSpec(xp.shape, lambda i: (0, 0))]
        + [pl.BlockSpec(a.shape, lambda i: (0, 0))
           for a in (w1, b1, w2, b2, w3, b3, w4, b4)],
        out_specs=pl.BlockSpec((Bp, w4.shape[1]), lambda i: (0, 0)),
    )(xp, w1, b1, w2, b2, w3, b3, w4, b4)
    return out[:B, :F]


# ------------------------------------------------------------------ max pool / unpool

def _maxpool_kernel(v_ref, ov_ref, os_ref):
    # v_ref: (4, TR, 128).  Keep FIRST max (window row-major, torch tie-break),
    # emit the 2-bit window-slot code instead of a torch flat index.
    best_v = v_ref[0]
    best_s = jnp.zeros_like(best_v, dtype=jnp.int32)
    for k in range(1, 4):
        vk = v_ref[k]
        take = vk > best_v
        best_v = jnp.where(take, vk, best_v)
        best_s = jnp.where(take, k, best_s)
    ov_ref[...] = best_v
    os_ref[...] = best_s


def maxpool2d_2x2_with_slots(x):
    """nn.MaxPool2d(2, return_indices=True).  x: (B,H,W,C) NHWC, H,W even.

    Returns (pooled, slot) where slot in {0,1,2,3} encodes (di*2+dj) of the
    argmax inside each 2x2 window (equivalent to torch indices for our unpool).
    """
    B, H, W, C = x.shape
    hp, wp = H // 2, W // 2
    M = B * hp * wp * C
    Mp = _round_up(M, 8 * 128)
    R = Mp // 128
    TR = min(R, 256)

    vals = jnp.stack([x[:, di::2, dj::2, :] for di in (0, 1) for dj in (0, 1)],
                     axis=0)                                   # (4,B,hp,wp,C)
    v2 = jnp.pad(vals.reshape(4, M), ((0, 0), (0, Mp - M))
                 ).reshape(4, R, 128).astype(jnp.float32)

    out_v, out_s = pl.pallas_call(
        _maxpool_kernel,
        out_shape=(jax.ShapeDtypeStruct((R, 128), jnp.float32),
                   jax.ShapeDtypeStruct((R, 128), jnp.int32)),
        grid=(pl.cdiv(R, TR),),
        in_specs=[pl.BlockSpec((4, TR, 128), lambda i: (0, i, 0))],
        out_specs=(pl.BlockSpec((TR, 128), lambda i: (i, 0)),
                   pl.BlockSpec((TR, 128), lambda i: (i, 0))),
        compiler_params=pltpu.CompilerParams(dimension_semantics=("parallel",)),
    )(v2)
    pooled = out_v.reshape(Mp)[:M].reshape(B, hp, wp, C)
    slots = out_s.reshape(Mp)[:M].reshape(B, hp, wp, C)
    return pooled, slots


def _unpool_kernel(v_ref, s_ref, o_ref):
    v = v_ref[...]
    s = s_ref[...]
    for k in range(4):
        o_ref[k] = jnp.where(s == k, v, 0.0)


def max_unpool2d_2x2(x, slots):
    """nn.MaxUnpool2d(2).  x, slots: (B,hp,wp,C) NHWC -> (B,2hp,2wp,C)."""
    B, hp, wp, C = x.shape
    OH, OW = 2 * hp, 2 * wp
    M = B * hp * wp * C
    Mp = _round_up(M, 8 * 128)
    R = Mp // 128
    TR = min(R, 256)

    v2 = jnp.pad(x.reshape(M), (0, Mp - M)).reshape(R, 128).astype(jnp.float32)
    s2 = jnp.pad(slots.reshape(M), (0, Mp - M),
                 constant_values=-1).reshape(R, 128).astype(jnp.int32)

    out = pl.pallas_call(
        _unpool_kernel,
        out_shape=jax.ShapeDtypeStruct((4, R, 128), jnp.float32),
        grid=(pl.cdiv(R, TR),),
        in_specs=[pl.BlockSpec((TR, 128), lambda i: (i, 0)),
                  pl.BlockSpec((TR, 128), lambda i: (i, 0))],
        out_specs=pl.BlockSpec((4, TR, 128), lambda i: (0, i, 0)),
        compiler_params=pltpu.CompilerParams(dimension_semantics=("parallel",)),
    )(v2, s2)
    o6 = out.reshape(4, Mp)[:, :M].reshape(2, 2, B, hp, wp, C)
    # (di, dj, B, hp, wp, C) -> (B, hp, di, wp, dj, C) -> (B, 2hp, 2wp, C)
    return o6.transpose(2, 3, 0, 4, 1, 5).reshape(B, OH, OW, C)


# ------------------------------------------------------------------ conv glue (NHWC)

def conv2d_nhwc(x, wmat, bmat, cout, kh, kw, stride, act):
    """x:(B,H,W,Cin) f32, wmat:(kh*kw*Cin, Np) bf16 prepped -> (B,OH,OW,cout)."""
    B, H, W, Cin = x.shape
    OH = (H - kh) // stride + 1
    OW = (W - kw) // stride + 1
    xb = x.astype(jnp.bfloat16)                 # cast once, patches built in bf16
    taps = [xb[:, i:i + (OH - 1) * stride + 1:stride,
               j:j + (OW - 1) * stride + 1:stride, :]
            for i in range(kh) for j in range(kw)]
    patches = jnp.stack(taps, axis=3).reshape(B * OH * OW, kh * kw * Cin)
    y = matmul_bias_act(patches, wmat, bmat, act)
    return y[:, :cout].reshape(B, OH, OW, cout)


def conv3d_ndhwc(x, wmat, bmat, cout, kd, kh, kw, act):
    """x:(B,D,H,W,Cin) f32, stride 1, wmat:(kd*kh*kw*Cin, Np) bf16 prepped."""
    B, D, H, W, Cin = x.shape
    OD, OH, OW = D - kd + 1, H - kh + 1, W - kw + 1
    xb = x.astype(jnp.bfloat16)
    taps = [xb[:, d:d + OD, i:i + OH, j:j + OW, :]
            for d in range(kd) for i in range(kh) for j in range(kw)]
    patches = jnp.stack(taps, axis=4).reshape(B * OD * OH * OW, kd * kh * kw * Cin)
    y = matmul_bias_act(patches, wmat, bmat, act)
    return y[:, :cout].reshape(B, OD, OH, OW, cout)


def conv_transpose2d_s2_nhwc(x, wmat, bias, cout, act):
    """nn.ConvTranspose2d(k=3, stride=2) via sub-pixel scatter-add.

    x:(B,H,W,Cin) f32; wmat:(Cin, Np) bf16 prepped with columns laid out as
    (ky, kx, co).  Output: (B, 2H+1, 2W+1, cout) f32.
    """
    B, H, W, Cin = x.shape
    OH, OW = 2 * H + 1, 2 * W + 1
    xf = x.reshape(B * H * W, Cin).astype(jnp.bfloat16)
    p = matmul_bias_act(xf, wmat, None, act="none")
    p = p[:, :9 * cout].reshape(B, H, W, 3, 3, cout)
    y = jnp.zeros((B, OH, OW, cout), jnp.float32)
    for ky in range(3):
        for kx in range(3):
            y = y.at[:, ky:ky + 2 * H:2, kx:kx + 2 * W:2, :].add(
                p[:, :, :, ky, kx, :])
    y = y + bias
    if act == "relu":
        y = jnp.maximum(y, 0.0)
    return y


def conv_transpose3d_s1_ndhwc(x, wmat, bmat, cout, kd, kh, kw, act):
    """nn.ConvTranspose3d, stride 1 = pad by k-1 + conv with pre-flipped kernel."""
    xp = jnp.pad(x, ((0, 0), (kd - 1, kd - 1), (kh - 1, kh - 1),
                     (kw - 1, kw - 1), (0, 0)))
    return conv3d_ndhwc(xp, wmat, bmat, cout, kd, kh, kw, act)


# ------------------------------------------------------------------ model

def derived_sizes(image_size, encoded_size):
    h1 = image_size - 4                 # conv1 spatial
    h2 = (h1 - 3) // 2 + 1              # conv2 spatial
    hp = h2 // 2                        # maxpool spatial
    h3 = (hp - 3) // 2 + 1              # conv3 spatial
    s3_1 = 9 * h3 * h3
    s4 = (s3_1 + encoded_size) // 3
    # same shape constraints AEPortraitV1.__init__ implicitly requires:
    assert h2 % 2 == 0 and hp % 2 == 1, \
        "image_size incompatible with pool/unpool round-trip"
    return s3_1, s4


def init_params(image_size, encoded_size, key):
    s3_1, s4 = derived_sizes(image_size, encoded_size)
    keys = jax.random.split(key, 20)

    def u(k, shape, fan_in):
        bound = 1.0 / math.sqrt(float(fan_in))
        return jax.random.uniform(k, shape, jnp.float32, -bound, bound)

    return {
        "conv1_w": u(keys[0], (3, 1, 3, 5, 5), 1 * 3 * 5 * 5),
        "conv1_b": u(keys[1], (3,), 1 * 3 * 5 * 5),
        "conv2_w": u(keys[2], (6, 3, 3, 3), 3 * 3 * 3),
        "conv2_b": u(keys[3], (6,), 3 * 3 * 3),
        "conv3_w": u(keys[4], (9, 6, 3, 3), 6 * 3 * 3),
        "conv3_b": u(keys[5], (9,), 6 * 3 * 3),
        "elin4_w": u(keys[6], (s4, s3_1), s3_1),
        "elin4_b": u(keys[7], (s4,), s3_1),
        "elin5_w": u(keys[8], (encoded_size, s4), s4),
        "elin5_b": u(keys[9], (encoded_size,), s4),
        "dlin5_w": u(keys[10], (s4, encoded_size), encoded_size),
        "dlin5_b": u(keys[11], (s4,), encoded_size),
        "dlin4_w": u(keys[12], (s3_1, s4), s4),
        "dlin4_b": u(keys[13], (s3_1,), s4),
        "deconv3_w": u(keys[14], (9, 6, 3, 3), 9 * 3 * 3),
        "deconv3_b": u(keys[15], (6,), 9 * 3 * 3),
        "deconv2_w": u(keys[16], (6, 3, 3, 3), 6 * 3 * 3),
        "deconv2_b": u(keys[17], (3,), 6 * 3 * 3),
        "deconv1_w": u(keys[18], (3, 1, 3, 5, 5), 3 * 3 * 5 * 5),
        "deconv1_b": u(keys[19], (1,), 3 * 3 * 5 * 5),
    }


def prepare_params(params):
    """One-time weight prep: matmul layout + lane-dense N padding + bf16 cast.

    Done once outside the jitted forward so no padding / transpose / cast XLA
    ops run on the steady-state critical path.
    """
    def pad_n(wmat):                       # (K, N) -> (K, round_up(N,128)) bf16
        K, N = wmat.shape
        Np = _round_up(N, 128)
        return jnp.zeros((K, Np), jnp.bfloat16).at[:, :N].set(
            wmat.astype(jnp.bfloat16))

    def pad_kn(wmat):                      # (K, N) -> (Kp, Np) bf16 (dense block)
        K, N = wmat.shape
        Kp, Np = _round_up(K, 128), _round_up(N, 128)
        return jnp.zeros((Kp, Np), jnp.bfloat16).at[:K, :N].set(
            wmat.astype(jnp.bfloat16))

    def pad_b(b):
        Np = _round_up(b.shape[0], 128)
        return jnp.zeros((1, Np), jnp.float32).at[0, :b.shape[0]].set(
            b.astype(jnp.float32))

    p = {}
    # conv1: Conv3d weight (Cout, Cin, kd, kh, kw) -> (kd*kh*kw*Cin, Cout)
    w = params["conv1_w"]
    p["conv1_wm"] = pad_n(w.transpose(2, 3, 4, 1, 0).reshape(-1, w.shape[0]))
    p["conv1_bm"] = pad_b(params["conv1_b"])
    # conv2 / conv3: Conv2d weight (Cout, Cin, kh, kw) -> (kh*kw*Cin, Cout)
    for name in ("conv2", "conv3"):
        w = params[name + "_w"]
        p[name + "_wm"] = pad_n(w.transpose(2, 3, 1, 0).reshape(-1, w.shape[0]))
        p[name + "_bm"] = pad_b(params[name + "_b"])
    # deconv3 / deconv2: ConvTranspose2d weight (Cin, Cout, 3, 3) -> (Cin, 9*Cout)
    for name in ("deconv3", "deconv2"):
        w = params[name + "_w"]
        p[name + "_wm"] = pad_n(w.transpose(0, 2, 3, 1).reshape(w.shape[0], -1))
        p[name + "_b"] = params[name + "_b"].astype(jnp.float32)
    # deconv1: ConvTranspose3d stride 1 -> flipped-kernel conv layout
    w = params["deconv1_w"]                             # (Cin, Cout, kd, kh, kw)
    wf = jnp.flip(w, axis=(2, 3, 4)).transpose(1, 0, 2, 3, 4)  # (Cout,Cin,kd,kh,kw)
    p["deconv1_wm"] = pad_n(wf.transpose(2, 3, 4, 1, 0).reshape(-1, wf.shape[0]))
    p["deconv1_bm"] = pad_b(params["deconv1_b"])
    # dense chain: torch Linear weight (out, in) -> (in, out), padded to 128s
    for name in ("elin4", "elin5", "dlin5", "dlin4"):
        p[name + "_wm"] = pad_kn(params[name + "_w"].T)
        p[name + "_bm"] = pad_b(params[name + "_b"])
    return p


def forward(pp, x):
    """AEPortraitV1.forward. x: (B, 1, 3, H, W) float32 -> same shape."""
    B = x.shape[0]
    # ---- to channels-last ----
    h = x.transpose(0, 2, 3, 4, 1)                                   # (B,D,H,W,1)
    # ---- encode ----
    h = conv3d_ndhwc(h, pp["conv1_wm"], pp["conv1_bm"], 3, 3, 5, 5, "relu")
    h = h[:, 0]                                                      # squeeze(X, 2)
    h = conv2d_nhwc(h, pp["conv2_wm"], pp["conv2_bm"], 6, 3, 3, 2, "relu")
    h, slots = maxpool2d_2x2_with_slots(h)
    h = conv2d_nhwc(h, pp["conv3_wm"], pp["conv3_bm"], 9, 3, 3, 2, "relu")
    Bh, h3, w3, c3 = h.shape
    # torch flattens in (C,H,W) order -> small transpose to keep exact semantics
    h = h.transpose(0, 3, 1, 2).reshape(B, -1)
    # ---- fused elin4 -> elin5 -> dlin5 -> dlin4 (all ReLU) ----
    h = fused_dense(h, pp)
    # ---- decode ----
    h = h.reshape(B, c3, h3, w3).transpose(0, 2, 3, 1)               # back to NHWC
    h = conv_transpose2d_s2_nhwc(h, pp["deconv3_wm"], pp["deconv3_b"], 6, "relu")
    h = max_unpool2d_2x2(h, slots)
    h = conv_transpose2d_s2_nhwc(h, pp["deconv2_wm"], pp["deconv2_b"], 3, "relu")
    h = h[:, None]                                                   # unsqueeze(X, 2)
    h = conv_transpose3d_s1_ndhwc(h, pp["deconv1_wm"], pp["deconv1_bm"],
                                  1, 3, 5, 5, "sigmoid")             # (B,3,H,W,1)
    h = h.transpose(0, 4, 1, 2, 3)                                   # back to NCDHW
    # final crop X[:, :s0[1], :s0[2], :s0[3], :s0[4]]
    return h[:, :x.shape[1], :x.shape[2], :x.shape[3], :x.shape[4]]


# ------------------------------------------------------------------ main

if __name__ == "__main__":
    image_size = 25     # smallest size family satisfying pool/unpool shape constraints
    encoded_size = 12
    batch = 2

    key = jax.random.PRNGKey(0)
    k_params, k_x = jax.random.split(key)
    params = init_params(image_size, encoded_size, k_params)
    prepped = prepare_params(params)          # one-time weight layout / pad / bf16
    x = jax.random.uniform(k_x, (batch, 1, 3, image_size, image_size), jnp.float32)

    fwd = jax.jit(forward)
    y = jax.block_until_ready(fwd(prepped, x))

    assert y.shape == (batch, 1, 3, image_size, image_size), y.shape
    assert y.dtype == jnp.float32
    assert bool(jnp.all(jnp.isfinite(y)))
    print("KERNEL_OK")
</pallas_src>

<mosaic_0001>
module attributes {stable_mosaic.version = 11 : i64} {
  func.func @_mm_bias_act_kernel(%arg0: i32, %arg1: memref<512x75xbf16, #tpu.memory_space<vmem>>, %arg2: memref<75x128xbf16, #tpu.memory_space<vmem>>, %arg3: memref<1x128xf32, #tpu.memory_space<vmem>>, %arg4: memref<512x128xf32, #tpu.memory_space<vmem>>) attributes {dimension_semantics = [#tpu.dimension_semantics<parallel>], iteration_bounds = array<i64: 2>, scalar_prefetch = 0 : i64, scratch_operands = 0 : i64, tpu.core_type = #tpu.core_type<tc>, window_params = [{transform_indices = @transform_0, window_bounds = array<i64: 512, 75>}, {pipeline_mode = #tpu.pipeline_mode<synchronous>, transform_indices = @transform_1, window_bounds = array<i64: 75, 128>}, {pipeline_mode = #tpu.pipeline_mode<synchronous>, transform_indices = @transform_2, window_bounds = array<i64: 1, 128>}, {transform_indices = @transform_3, window_bounds = array<i64: 512, 128>}]} {
    %c0 = arith.constant 0 : index
    %c0_0 = arith.constant 0 : index
    %0 = vector.load %arg1[%c0, %c0_0] : memref<512x75xbf16, #tpu.memory_space<vmem>>, vector<512x75xbf16>
    %c0_1 = arith.constant 0 : index
    %c0_2 = arith.constant 0 : index
    %1 = vector.load %arg2[%c0_1, %c0_2] : memref<75x128xbf16, #tpu.memory_space<vmem>>, vector<75x128xbf16>
    %cst = arith.constant dense<0.000000e+00> : vector<512x128xf32>
    %2 = tpu.matmul %0, %1, %cst {dimension_numbers = #tpu.dot_dimension_numbers<[1], [0], [0], [1], [0, 0, 1, 1], [], []>} : vector<512x75xbf16>, vector<75x128xbf16>, vector<512x128xf32> -> vector<512x128xf32>
    %c0_3 = arith.constant 0 : index
    %c0_4 = arith.constant 0 : index
    %3 = vector.load %arg3[%c0_3, %c0_4] : memref<1x128xf32, #tpu.memory_space<vmem>>, vector<1x128xf32>
    %4 = vector.broadcast %3 : vector<1x128xf32> to vector<512x128xf32>
    %5 = arith.addf %2, %4 : vector<512x128xf32>
    %cst_5 = arith.constant 0.000000e+00 : f32
    %6 = vector.broadcast %cst_5 : f32 to vector<512x128xf32>
    %7 = arith.maximumf %5, %6 : vector<512x128xf32>
    %c0_6 = arith.constant 0 : index
    %c0_7 = arith.constant 0 : index
    %8 = vector.load %arg4[%c0_6, %c0_7] : memref<512x128xf32, #tpu.memory_space<vmem>>, vector<512x128xf32>
    tpu.vector_store %arg4[%c0_6, %c0_7], %7 {strides = array<i32>} : memref<512x128xf32, #tpu.memory_space<vmem>>, vector<512x128xf32>,
    return
  }
  func.func @transform_0(%arg0: i32) -> (i32, i32) {
    %c0_i32 = arith.constant 0 : i32
    %c0_i32_0 = arith.constant 0 : i32
    return %arg0, %c0_i32 : i32, i32
  }
  func.func @transform_1(%arg0: i32) -> (i32, i32) {
    %c0_i32 = arith.constant 0 : i32
    %c0_i32_0 = arith.constant 0 : i32
    %c0_i32_1 = arith.constant 0 : i32
    return %c0_i32, %c0_i32_0 : i32, i32
  }
  func.func @transform_2(%arg0: i32) -> (i32, i32) {
    %c0_i32 = arith.constant 0 : i32
    %c0_i32_0 = arith.constant 0 : i32
    %c0_i32_1 = arith.constant 0 : i32
    return %c0_i32, %c0_i32_0 : i32, i32
  }
  func.func @transform_3(%arg0: i32) -> (i32, i32) {
    %c0_i32 = arith.constant 0 : i32
    %c0_i32_0 = arith.constant 0 : i32
    return %arg0, %c0_i32 : i32, i32
  }
}

module attributes {stable_mosaic.version = 11 : i64} {
  func.func @_mm_bias_act_kernel(%arg0: i32, %arg1: memref<200x27xbf16, #tpu.memory_space<vmem>>, %arg2: memref<27x128xbf16, #tpu.memory_space<vmem>>, %arg3: memref<1x128xf32, #tpu.memory_space<vmem>>, %arg4: memref<200x128xf32, #tpu.memory_space<vmem>>) attributes {dimension_semantics = [#tpu.dimension_semantics<parallel>], iteration_bounds = array<i64: 1>, scalar_prefetch = 0 : i64, scratch_operands = 0 : i64, tpu.core_type = #tpu.core_type<tc>, window_params = [{transform_indices = @transform_0, window_bounds = array<i64: 200, 27>}, {pipeline_mode = #tpu.pipeline_mode<synchronous>, transform_indices = @transform_1, window_bounds = array<i64: 27, 128>}, {pipeline_mode = #tpu.pipeline_mode<synchronous>, transform_indices = @transform_2, window_bounds = array<i64: 1, 128>}, {transform_indices = @transform_3, window_bounds = array<i64: 200, 128>}]} {
    %c0 = arith.constant 0 : index
    %c0_0 = arith.constant 0 : index
    %0 = vector.load %arg1[%c0, %c0_0] : memref<200x27xbf16, #tpu.memory_space<vmem>>, vector<200x27xbf16>
    %c0_1 = arith.constant 0 : index
    %c0_2 = arith.constant 0 : index
    %1 = vector.load %arg2[%c0_1, %c0_2] : memref<27x128xbf16, #tpu.memory_space<vmem>>, vector<27x128xbf16>
    %cst = arith.constant dense<0.000000e+00> : vector<200x128xf32>
    %2 = tpu.matmul %0, %1, %cst {dimension_numbers = #tpu.dot_dimension_numbers<[1], [0], [0], [1], [0, 0, 1, 1], [], []>} : vector<200x27xbf16>, vector<27x128xbf16>, vector<200x128xf32> -> vector<200x128xf32>
    %c0_3 = arith.constant 0 : index
    %c0_4 = arith.constant 0 : index
    %3 = vector.load %arg3[%c0_3, %c0_4] : memref<1x128xf32, #tpu.memory_space<vmem>>, vector<1x128xf32>
    %4 = vector.broadcast %3 : vector<1x128xf32> to vector<200x128xf32>
    %5 = arith.addf %2, %4 : vector<200x128xf32>
    %cst_5 = arith.constant 0.000000e+00 : f32
    %6 = vector.broadcast %cst_5 : f32 to vector<200x128xf32>
    %7 = arith.maximumf %5, %6 : vector<200x128xf32>
    %c0_6 = arith.constant 0 : index
    %c0_7 = arith.constant 0 : index
    %8 = vector.load %arg4[%c0_6, %c0_7] : memref<200x128xf32, #tpu.memory_space<vmem>>, vector<200x128xf32>
    tpu.vector_store %arg4[%c0_6, %c0_7], %7 {strides = array<i32>} : memref<200x128xf32, #tpu.memory_space<vmem>>, vector<200x128xf32>,
    return
  }
  func.func @transform_0(%arg0: i32) -> (i32, i32) {
    %c0_i32 = arith.constant 0 : i32
    %c0_i32_0 = arith.constant 0 : i32
    return %arg0, %c0_i32 : i32, i32
  }
  func.func @transform_1(%arg0: i32) -> (i32, i32) {
    %c0_i32 = arith.constant 0 : i32
    %c0_i32_0 = arith.constant 0 : i32
    %c0_i32_1 = arith.constant 0 : i32
    return %c0_i32, %c0_i32_0 : i32, i32
  }
  func.func @transform_2(%arg0: i32) -> (i32, i32) {
    %c0_i32 = arith.constant 0 : i32
    %c0_i32_0 = arith.constant 0 : i32
    %c0_i32_1 = arith.constant 0 : i32
    return %c0_i32, %c0_i32_0 : i32, i32
  }
  func.func @transform_3(%arg0: i32) -> (i32, i32) {
    %c0_i32 = arith.constant 0 : i32
    %c0_i32_0 = arith.constant 0 : i32
    return %arg0, %c0_i32 : i32, i32
  }
}

module attributes {stable_mosaic.version = 11 : i64} {
  func.func @_maxpool_kernel(%arg0: i32, %arg1: memref<4x8x128xf32, #tpu.memory_space<vmem>>, %arg2: memref<8x128xf32, #tpu.memory_space<vmem>>, %arg3: memref<8x128xi32, #tpu.memory_space<vmem>>) attributes {dimension_semantics = [#tpu.dimension_semantics<parallel>], iteration_bounds = array<i64: 1>, scalar_prefetch = 0 : i64, scratch_operands = 0 : i64, tpu.core_type = #tpu.core_type<tc>, window_params = [{transform_indices = @transform_0, window_bounds = array<i64: 4, 8, 128>}, {transform_indices = @transform_1, window_bounds = array<i64: 8, 128>}, {transform_indices = @transform_2, window_bounds = array<i64: 8, 128>}]} {
    %c0 = arith.constant 0 : index
    %c0_0 = arith.constant 0 : index
    %c0_1 = arith.constant 0 : index
    %0 = vector.load %arg1[%c0, %c0_0, %c0_1] : memref<4x8x128xf32, #tpu.memory_space<vmem>>, vector<1x8x128xf32>
    %1 = vector.shape_cast %0 : vector<1x8x128xf32> to vector<8x128xf32>
    %c0_i32 = arith.constant 0 : i32
    %2 = vector.broadcast %c0_i32 : i32 to vector<8x128xi32>
    %c1 = arith.constant 1 : index
    %c0_2 = arith.constant 0 : index
    %c0_3 = arith.constant 0 : index
    %3 = vector.load %arg1[%c1, %c0_2, %c0_3] : memref<4x8x128xf32, #tpu.memory_space<vmem>>, vector<1x8x128xf32>
    %4 = vector.shape_cast %3 : vector<1x8x128xf32> to vector<8x128xf32>
    %5 = arith.cmpf ogt, %4, %1 : vector<8x128xf32>
    %6 = arith.select %5, %4, %1 : vector<8x128xi1>, vector<8x128xf32>
    %c1_i32 = arith.constant 1 : i32
    %7 = vector.broadcast %c1_i32 : i32 to vector<8x128xi32>
    %8 = arith.select %5, %7, %2 : vector<8x128xi1>, vector<8x128xi32>
    %c2 = arith.constant 2 : index
    %c0_4 = arith.constant 0 : index
    %c0_5 = arith.constant 0 : index
    %9 = vector.load %arg1[%c2, %c0_4, %c0_5] : memref<4x8x128xf32, #tpu.memory_space<vmem>>, vector<1x8x128xf32>
    %10 = vector.shape_cast %9 : vector<1x8x128xf32> to vector<8x128xf32>
    %11 = arith.cmpf ogt, %10, %6 : vector<8x128xf32>
    %12 = arith.select %11, %10, %6 : vector<8x128xi1>, vector<8x128xf32>
    %c2_i32 = arith.constant 2 : i32
    %13 = vector.broadcast %c2_i32 : i32 to vector<8x128xi32>
    %14 = arith.select %11, %13, %8 : vector<8x128xi1>, vector<8x128xi32>
    %c3 = arith.constant 3 : index
    %c0_6 = arith.constant 0 : index
    %c0_7 = arith.constant 0 : index
    %15 = vector.load %arg1[%c3, %c0_6, %c0_7] : memref<4x8x128xf32, #tpu.memory_space<vmem>>, vector<1x8x128xf32>
    %16 = vector.shape_cast %15 : vector<1x8x128xf32> to vector<8x128xf32>
    %17 = arith.cmpf ogt, %16, %12 : vector<8x128xf32>
    %18 = arith.select %17, %16, %12 : vector<8x128xi1>, vector<8x128xf32>
    %c3_i32 = arith.constant 3 : i32
    %19 = vector.broadcast %c3_i32 : i32 to vector<8x128xi32>
    %20 = arith.select %17, %19, %14 : vector<8x128xi1>, vector<8x128xi32>
    %c0_8 = arith.constant 0 : index
    %c0_9 = arith.constant 0 : index
    %21 = vector.load %arg2[%c0_8, %c0_9] : memref<8x128xf32, #tpu.memory_space<vmem>>, vector<8x128xf32>
    tpu.vector_store %arg2[%c0_8, %c0_9], %18 {strides = array<i32>} : memref<8x128xf32, #tpu.memory_space<vmem>>, vector<8x128xf32>,
    %c0_10 = arith.constant 0 : index
    %c0_11 = arith.constant 0 : index
    %22 = vector.load %arg3[%c0_10, %c0_11] : memref<8x128xi32, #tpu.memory_space<vmem>>, vector<8x128xi32>
    tpu.vector_store %arg3[%c0_10, %c0_11], %20 {strides = array<i32>} : memref<8x128xi32, #tpu.memory_space<vmem>>, vector<8x128xi32>,
    return
  }
  func.func @transform_0(%arg0: i32) -> (i32, i32, i32) {
    %c0_i32 = arith.constant 0 : i32
    %c0_i32_0 = arith.constant 0 : i32
    %c0_i32_1 = arith.constant 0 : i32
    return %c0_i32, %arg0, %c0_i32_0 : i32, i32, i32
  }
  func.func @transform_1(%arg0: i32) -> (i32, i32) {
    %c0_i32 = arith.constant 0 : i32
    %c0_i32_0 = arith.constant 0 : i32
    return %arg0, %c0_i32 : i32, i32
  }
  func.func @transform_2(%arg0: i32) -> (i32, i32) {
    %c0_i32 = arith.constant 0 : i32
    %c0_i32_0 = arith.constant 0 : i32
    return %arg0, %c0_i32 : i32, i32
  }
}

module attributes {stable_mosaic.version = 11 : i64} {
  func.func @_fused_dense_kernel(%arg0: i32, %arg1: memref<8x128xbf16, #tpu.memory_space<vmem>>, %arg2: memref<128x128xbf16, #tpu.memory_space<vmem>>, %arg3: memref<1x128xf32, #tpu.memory_space<vmem>>, %arg4: memref<128x128xbf16, #tpu.memory_space<vmem>>, %arg5: memref<1x128xf32, #tpu.memory_space<vmem>>, %arg6: memref<128x128xbf16, #tpu.memory_space<vmem>>, %arg7: memref<1x128xf32, #tpu.memory_space<vmem>>, %arg8: memref<128x128xbf16, #tpu.memory_space<vmem>>, %arg9: memref<1x128xf32, #tpu.memory_space<vmem>>, %arg10: memref<8x128xf32, #tpu.memory_space<vmem>>) attributes {dimension_semantics = [#tpu.dimension_semantics<arbitrary>], iteration_bounds = array<i64: 1>, scalar_prefetch = 0 : i64, scratch_operands = 0 : i64, tpu.core_type = #tpu.core_type<tc>, window_params = [{pipeline_mode = #tpu.pipeline_mode<synchronous>, transform_indices = @transform_0, window_bounds = array<i64: 8, 128>}, {pipeline_mode = #tpu.pipeline_mode<synchronous>, transform_indices = @transform_1, window_bounds = array<i64: 128, 128>}, {pipeline_mode = #tpu.pipeline_mode<synchronous>, transform_indices = @transform_2, window_bounds = array<i64: 1, 128>}, {pipeline_mode = #tpu.pipeline_mode<synchronous>, transform_indices = @transform_3, window_bounds = array<i64: 128, 128>}, {pipeline_mode = #tpu.pipeline_mode<synchronous>, transform_indices = @transform_4, window_bounds = array<i64: 1, 128>}, {pipeline_mode = #tpu.pipeline_mode<synchronous>, transform_indices = @transform_5, window_bounds = array<i64: 128, 128>}, {pipeline_mode = #tpu.pipeline_mode<synchronous>, transform_indices = @transform_6, window_bounds = array<i64: 1, 128>}, {pipeline_mode = #tpu.pipeline_mode<synchronous>, transform_indices = @transform_7, window_bounds = array<i64: 128, 128>}, {pipeline_mode = #tpu.pipeline_mode<synchronous>, transform_indices = @transform_8, window_bounds = array<i64: 1, 128>}, {pipeline_mode = #tpu.pipeline_mode<synchronous>, transform_indices = @transform_9, window_bounds = array<i64: 8, 128>}]} {
    %c0 = arith.constant 0 : index
    %c0_0 = arith.constant 0 : index
    %0 = vector.load %arg1[%c0, %c0_0] : memref<8x128xbf16, #tpu.memory_space<vmem>>, vector<8x128xbf16>
    %c0_1 = arith.constant 0 : index
    %c0_2 = arith.constant 0 : index
    %1 = vector.load %arg2[%c0_1, %c0_2] : memref<128x128xbf16, #tpu.memory_space<vmem>>, vector<128x128xbf16>
    %cst = arith.constant dense<0.000000e+00> : vector<8x128xf32>
    %2 = tpu.matmul %0, %1, %cst {dimension_numbers = #tpu.dot_dimension_numbers<[1], [0], [0], [1], [0, 0, 1, 1], [], []>} : vector<8x128xbf16>, vector<128x128xbf16>, vector<8x128xf32> -> vector<8x128xf32>
    %c0_3 = arith.constant 0 : index
    %c0_4 = arith.constant 0 : index
    %3 = vector.load %arg3[%c0_3, %c0_4] : memref<1x128xf32, #tpu.memory_space<vmem>>, vector<1x128xf32>
    %4 = vector.broadcast %3 : vector<1x128xf32> to vector<8x128xf32>
    %5 = arith.addf %2, %4 : vector<8x128xf32>
    %cst_5 = arith.constant 0.000000e+00 : f32
    %6 = vector.broadcast %cst_5 : f32 to vector<8x128xf32>
    %7 = arith.maximumf %5, %6 : vector<8x128xf32>
    %8 = arith.truncf %7 : vector<8x128xf32> to vector<8x128xbf16>
    %c0_6 = arith.constant 0 : index
    %c0_7 = arith.constant 0 : index
    %9 = vector.load %arg4[%c0_6, %c0_7] : memref<128x128xbf16, #tpu.memory_space<vmem>>, vector<128x128xbf16>
    %cst_8 = arith.constant dense<0.000000e+00> : vector<8x128xf32>
    %10 = tpu.matmul %8, %9, %cst_8 {dimension_numbers = #tpu.dot_dimension_numbers<[1], [0], [0], [1], [0, 0, 1, 1], [], []>} : vector<8x128xbf16>, vector<128x128xbf16>, vector<8x128xf32> -> vector<8x128xf32>
    %c0_9 = arith.constant 0 : index
    %c0_10 = arith.constant 0 : index
    %11 = vector.load %arg5[%c0_9, %c0_10] : memref<1x128xf32, #tpu.memory_space<vmem>>, vector<1x128xf32>
    %12 = vector.broadcast %11 : vector<1x128xf32> to vector<8x128xf32>
    %13 = arith.addf %10, %12 : vector<8x128xf32>
    %cst_11 = arith.constant 0.000000e+00 : f32
    %14 = vector.broadcast %cst_11 : f32 to vector<8x128xf32>
    %15 = arith.maximumf %13, %14 : vector<8x128xf32>
    %16 = arith.truncf %15 : vector<8x128xf32> to vector<8x128xbf16>
    %c0_12 = arith.constant 0 : index
    %c0_13 = arith.constant 0 : index
    %17 = vector.load %arg6[%c0_12, %c0_13] : memref<128x128xbf16, #tpu.memory_space<vmem>>, vector<128x128xbf16>
    %cst_14 = arith.constant dense<0.000000e+00> : vector<8x128xf32>
    %18 = tpu.matmul %16, %17, %cst_14 {dimension_numbers = #tpu.dot_dimension_numbers<[1], [0], [0], [1], [0, 0, 1, 1], [], []>} : vector<8x128xbf16>, vector<128x128xbf16>, vector<8x128xf32> -> vector<8x128xf32>
    %c0_15 = arith.constant 0 : index
    %c0_16 = arith.constant 0 : index
    %19 = vector.load %arg7[%c0_15, %c0_16] : memref<1x128xf32, #tpu.memory_space<vmem>>, vector<1x128xf32>
    %20 = vector.broadcast %19 : vector<1x128xf32> to vector<8x128xf32>
    %21 = arith.addf %18, %20 : vector<8x128xf32>
    %cst_17 = arith.constant 0.000000e+00 : f32
    %22 = vector.broadcast %cst_17 : f32 to vector<8x128xf32>
    %23 = arith.maximumf %21, %22 : vector<8x128xf32>
    %24 = arith.truncf %23 : vector<8x128xf32> to vector<8x128xbf16>
    %c0_18 = arith.constant 0 : index
    %c0_19 = arith.constant 0 : index
    %25 = vector.load %arg8[%c0_18, %c0_19] : memref<128x128xbf16, #tpu.memory_space<vmem>>, vector<128x128xbf16>
    %cst_20 = arith.constant dense<0.000000e+00> : vector<8x128xf32>
    %26 = tpu.matmul %24, %25, %cst_20 {dimension_numbers = #tpu.dot_dimension_numbers<[1], [0], [0], [1], [0, 0, 1, 1], [], []>} : vector<8x128xbf16>, vector<128x128xbf16>, vector<8x128xf32> -> vector<8x128xf32>
    %c0_21 = arith.constant 0 : index
    %c0_22 = arith.constant 0 : index
    %27 = vector.load %arg9[%c0_21, %c0_22] : memref<1x128xf32, #tpu.memory_space<vmem>>, vector<1x128xf32>
    %28 = vector.broadcast %27 : vector<1x128xf32> to vector<8x128xf32>
    %29 = arith.addf %26, %28 : vector<8x128xf32>
    %cst_23 = arith.constant 0.000000e+00 : f32
    %30 = vector.broadcast %cst_23 : f32 to vector<8x128xf32>
    %31 = arith.maximumf %29, %30 : vector<8x128xf32>
    %c0_24 = arith.constant 0 : index
    %c0_25 = arith.constant 0 : index
    %32 = vector.load %arg10[%c0_24, %c0_25] : memref<8x128xf32, #tpu.memory_space<vmem>>, vector<8x128xf32>
    tpu.vector_store %arg10[%c0_24, %c0_25], %31 {strides = array<i32>} : memref<8x128xf32, #tpu.memory_space<vmem>>, vector<8x128xf32>,
    return
  }
  func.func @transform_0(%arg0: i32) -> (i32, i32) {
    %c0_i32 = arith.constant 0 : i32
    %c0_i32_0 = arith.constant 0 : i32
    %c0_i32_1 = arith.constant 0 : i32
    return %c0_i32, %c0_i32_0 : i32, i32
  }
  func.func @transform_1(%arg0: i32) -> (i32, i32) {
    %c0_i32 = arith.constant 0 : i32
    %c0_i32_0 = arith.constant 0 : i32
    %c0_i32_1 = arith.constant 0 : i32
    return %c0_i32, %c0_i32_0 : i32, i32
  }
  func.func @transform_2(%arg0: i32) -> (i32, i32) {
    %c0_i32 = arith.constant 0 : i32
    %c0_i32_0 = arith.constant 0 : i32
    %c0_i32_1 = arith.constant 0 : i32
    return %c0_i32, %c0_i32_0 : i32, i32
  }
  func.func @transform_3(%arg0: i32) -> (i32, i32) {
    %c0_i32 = arith.constant 0 : i32
    %c0_i32_0 = arith.constant 0 : i32
    %c0_i32_1 = arith.constant 0 : i32
    return %c0_i32, %c0_i32_0 : i32, i32
  }
  func.func @transform_4(%arg0: i32) -> (i32, i32) {
    %c0_i32 = arith.constant 0 : i32
    %c0_i32_0 = arith.constant 0 : i32
    %c0_i32_1 = arith.constant 0 : i32
    return %c0_i32, %c0_i32_0 : i32, i32
  }
  func.func @transform_5(%arg0: i32) -> (i32, i32) {
    %c0_i32 = arith.constant 0 : i32
    %c0_i32_0 = arith.constant 0 : i32
    %c0_i32_1 = arith.constant 0 : i32
    return %c0_i32, %c0_i32_0 : i32, i32
  }
  func.func @transform_6(%arg0: i32) -> (i32, i32) {
    %c0_i32 = arith.constant 0 : i32
    %c0_i32_0 = arith.constant 0 : i32
    %c0_i32_1 = arith.constant 0 : i32
    return %c0_i32, %c0_i32_0 : i32, i32
  }
  func.func @transform_7(%arg0: i32) -> (i32, i32) {
    %c0_i32 = arith.constant 0 : i32
    %c0_i32_0 = arith.constant 0 : i32
    %c0_i32_1 = arith.constant 0 : i32
    return %c0_i32, %c0_i32_0 : i32, i32
  }
  func.func @transform_8(%arg0: i32) -> (i32, i32) {
    %c0_i32 = arith.constant 0 : i32
    %c0_i32_0 = arith.constant 0 : i32
    %c0_i32_1 = arith.constant 0 : i32
    return %c0_i32, %c0_i32_0 : i32, i32
  }
  func.func @transform_9(%arg0: i32) -> (i32, i32) {
    %c0_i32 = arith.constant 0 : i32
    %c0_i32_0 = arith.constant 0 : i32
    %c0_i32_1 = arith.constant 0 : i32
    return %c0_i32, %c0_i32_0 : i32, i32
  }
}

module attributes {stable_mosaic.version = 11 : i64} {
  func.func @_mm_bias_act_kernel(%arg0: i32, %arg1: memref<8x54xbf16, #tpu.memory_space<vmem>>, %arg2: memref<54x128xbf16, #tpu.memory_space<vmem>>, %arg3: memref<1x128xf32, #tpu.memory_space<vmem>>, %arg4: memref<8x128xf32, #tpu.memory_space<vmem>>) attributes {dimension_semantics = [#tpu.dimension_semantics<parallel>], iteration_bounds = array<i64: 1>, scalar_prefetch = 0 : i64, scratch_operands = 0 : i64, tpu.core_type = #tpu.core_type<tc>, window_params = [{transform_indices = @transform_0, window_bounds = array<i64: 8, 54>}, {pipeline_mode = #tpu.pipeline_mode<synchronous>, transform_indices = @transform_1, window_bounds = array<i64: 54, 128>}, {pipeline_mode = #tpu.pipeline_mode<synchronous>, transform_indices = @transform_2, window_bounds = array<i64: 1, 128>}, {transform_indices = @transform_3, window_bounds = array<i64: 8, 128>}]} {
    %c0 = arith.constant 0 : index
    %c0_0 = arith.constant 0 : index
    %0 = vector.load %arg1[%c0, %c0_0] : memref<8x54xbf16, #tpu.memory_space<vmem>>, vector<8x54xbf16>
    %c0_1 = arith.constant 0 : index
    %c0_2 = arith.constant 0 : index
    %1 = vector.load %arg2[%c0_1, %c0_2] : memref<54x128xbf16, #tpu.memory_space<vmem>>, vector<54x128xbf16>
    %cst = arith.constant dense<0.000000e+00> : vector<8x128xf32>
    %2 = tpu.matmul %0, %1, %cst {dimension_numbers = #tpu.dot_dimension_numbers<[1], [0], [0], [1], [0, 0, 1, 1], [], []>} : vector<8x54xbf16>, vector<54x128xbf16>, vector<8x128xf32> -> vector<8x128xf32>
    %c0_3 = arith.constant 0 : index
    %c0_4 = arith.constant 0 : index
    %3 = vector.load %arg3[%c0_3, %c0_4] : memref<1x128xf32, #tpu.memory_space<vmem>>, vector<1x128xf32>
    %4 = vector.broadcast %3 : vector<1x128xf32> to vector<8x128xf32>
    %5 = arith.addf %2, %4 : vector<8x128xf32>
    %cst_5 = arith.constant 0.000000e+00 : f32
    %6 = vector.broadcast %cst_5 : f32 to vector<8x128xf32>
    %7 = arith.maximumf %5, %6 : vector<8x128xf32>
    %c0_6 = arith.constant 0 : index
    %c0_7 = arith.constant 0 : index
    %8 = vector.load %arg4[%c0_6, %c0_7] : memref<8x128xf32, #tpu.memory_space<vmem>>, vector<8x128xf32>
    tpu.vector_store %arg4[%c0_6, %c0_7], %7 {strides = array<i32>} : memref<8x128xf32, #tpu.memory_space<vmem>>, vector<8x128xf32>,
    return
  }
  func.func @transform_0(%arg0: i32) -> (i32, i32) {
    %c0_i32 = arith.constant 0 : i32
    %c0_i32_0 = arith.constant 0 : i32
    return %arg0, %c0_i32 : i32, i32
  }
  func.func @transform_1(%arg0: i32) -> (i32, i32) {
    %c0_i32 = arith.constant 0 : i32
    %c0_i32_0 = arith.constant 0 : i32
    %c0_i32_1 = arith.constant 0 : i32
    return %c0_i32, %c0_i32_0 : i32, i32
  }
  func.func @transform_2(%arg0: i32) -> (i32, i32) {
    %c0_i32 = arith.constant 0 : i32
    %c0_i32_0 = arith.constant 0 : i32
    %c0_i32_1 = arith.constant 0 : i32
    return %c0_i32, %c0_i32_0 : i32, i32
  }
  func.func @transform_3(%arg0: i32) -> (i32, i32) {
    %c0_i32 = arith.constant 0 : i32
    %c0_i32_0 = arith.constant 0 : i32
    return %arg0, %c0_i32 : i32, i32
  }
}

module attributes {stable_mosaic.version = 11 : i64} {
  func.func @_mm_bias_act_kernel(%arg0: i32, %arg1: memref<8x9xbf16, #tpu.memory_space<vmem>>, %arg2: memref<9x128xbf16, #tpu.memory_space<vmem>>, %arg3: memref<8x128xf32, #tpu.memory_space<vmem>>) attributes {dimension_semantics = [#tpu.dimension_semantics<parallel>], iteration_bounds = array<i64: 1>, scalar_prefetch = 0 : i64, scratch_operands = 0 : i64, tpu.core_type = #tpu.core_type<tc>, window_params = [{transform_indices = @transform_0, window_bounds = array<i64: 8, 9>}, {pipeline_mode = #tpu.pipeline_mode<synchronous>, transform_indices = @transform_1, window_bounds = array<i64: 9, 128>}, {transform_indices = @transform_2, window_bounds = array<i64: 8, 128>}]} {
    %c0 = arith.constant 0 : index
    %c0_0 = arith.constant 0 : index
    %0 = vector.load %arg1[%c0, %c0_0] : memref<8x9xbf16, #tpu.memory_space<vmem>>, vector<8x9xbf16>
    %c0_1 = arith.constant 0 : index
    %c0_2 = arith.constant 0 : index
    %1 = vector.load %arg2[%c0_1, %c0_2] : memref<9x128xbf16, #tpu.memory_space<vmem>>, vector<9x128xbf16>
    %cst = arith.constant dense<0.000000e+00> : vector<8x128xf32>
    %2 = tpu.matmul %0, %1, %cst {dimension_numbers = #tpu.dot_dimension_numbers<[1], [0], [0], [1], [0, 0, 1, 1], [], []>} : vector<8x9xbf16>, vector<9x128xbf16>, vector<8x128xf32> -> vector<8x128xf32>
    %c0_3 = arith.constant 0 : index
    %c0_4 = arith.constant 0 : index
    %3 = vector.load %arg3[%c0_3, %c0_4] : memref<8x128xf32, #tpu.memory_space<vmem>>, vector<8x128xf32>
    tpu.vector_store %arg3[%c0_3, %c0_4], %2 {strides = array<i32>} : memref<8x128xf32, #tpu.memory_space<vmem>>, vector<8x128xf32>,
    return
  }
  func.func @transform_0(%arg0: i32) -> (i32, i32) {
    %c0_i32 = arith.constant 0 : i32
    %c0_i32_0 = arith.constant 0 : i32
    return %arg0, %c0_i32 : i32, i32
  }
  func.func @transform_1(%arg0: i32) -> (i32, i32) {
    %c0_i32 = arith.constant 0 : i32
    %c0_i32_0 = arith.constant 0 : i32
    %c0_i32_1 = arith.constant 0 : i32
    return %c0_i32, %c0_i32_0 : i32, i32
  }
  func.func @transform_2(%arg0: i32) -> (i32, i32) {
    %c0_i32 = arith.constant 0 : i32
    %c0_i32_0 = arith.constant 0 : i32
    return %arg0, %c0_i32 : i32, i32
  }
}

module attributes {stable_mosaic.version = 11 : i64} {
  func.func @_mm_bias_act_kernel(%arg0: i32, %arg1: memref<200x6xbf16, #tpu.memory_space<vmem>>, %arg2: memref<6x128xbf16, #tpu.memory_space<vmem>>, %arg3: memref<200x128xf32, #tpu.memory_space<vmem>>) attributes {dimension_semantics = [#tpu.dimension_semantics<parallel>], iteration_bounds = array<i64: 1>, scalar_prefetch = 0 : i64, scratch_operands = 0 : i64, tpu.core_type = #tpu.core_type<tc>, window_params = [{transform_indices = @transform_0, window_bounds = array<i64: 200, 6>}, {pipeline_mode = #tpu.pipeline_mode<synchronous>, transform_indices = @transform_1, window_bounds = array<i64: 6, 128>}, {transform_indices = @transform_2, window_bounds = array<i64: 200, 128>}]} {
    %c0 = arith.constant 0 : index
    %c0_0 = arith.constant 0 : index
    %0 = vector.load %arg1[%c0, %c0_0] : memref<200x6xbf16, #tpu.memory_space<vmem>>, vector<200x6xbf16>
    %c0_1 = arith.constant 0 : index
    %c0_2 = arith.constant 0 : index
    %1 = vector.load %arg2[%c0_1, %c0_2] : memref<6x128xbf16, #tpu.memory_space<vmem>>, vector<6x128xbf16>
    %cst = arith.constant dense<0.000000e+00> : vector<200x128xf32>
    %2 = tpu.matmul %0, %1, %cst {dimension_numbers = #tpu.dot_dimension_numbers<[1], [0], [0], [1], [0, 0, 1, 1], [], []>} : vector<200x6xbf16>, vector<6x128xbf16>, vector<200x128xf32> -> vector<200x128xf32>
    %c0_3 = arith.constant 0 : index
    %c0_4 = arith.constant 0 : index
    %3 = vector.load %arg3[%c0_3, %c0_4] : memref<200x128xf32, #tpu.memory_space<vmem>>, vector<200x128xf32>
    tpu.vector_store %arg3[%c0_3, %c0_4], %2 {strides = array<i32>} : memref<200x128xf32, #tpu.memory_space<vmem>>, vector<200x128xf32>,
    return
  }
  func.func @transform_0(%arg0: i32) -> (i32, i32) {
    %c0_i32 = arith.constant 0 : i32
    %c0_i32_0 = arith.constant 0 : i32
    return %arg0, %c0_i32 : i32, i32
  }
  func.func @transform_1(%arg0: i32) -> (i32, i32) {
    %c0_i32 = arith.constant 0 : i32
    %c0_i32_0 = arith.constant 0 : i32
    %c0_i32_1 = arith.constant 0 : i32
    return %c0_i32, %c0_i32_0 : i32, i32
  }
  func.func @transform_2(%arg0: i32) -> (i32, i32) {
    %c0_i32 = arith.constant 0 : i32
    %c0_i32_0 = arith.constant 0 : i32
    return %arg0, %c0_i32 : i32, i32
  }
}

module attributes {stable_mosaic.version = 11 : i64} {
  func.func @_unpool_kernel(%arg0: i32, %arg1: memref<8x128xf32, #tpu.memory_space<vmem>>, %arg2: memref<8x128xi32, #tpu.memory_space<vmem>>, %arg3: memref<4x8x128xf32, #tpu.memory_space<vmem>>) attributes {dimension_semantics = [#tpu.dimension_semantics<parallel>], iteration_bounds = array<i64: 1>, scalar_prefetch = 0 : i64, scratch_operands = 0 : i64, tpu.core_type = #tpu.core_type<tc>, window_params = [{transform_indices = @transform_0, window_bounds = array<i64: 8, 128>}, {transform_indices = @transform_1, window_bounds = array<i64: 8, 128>}, {transform_indices = @transform_2, window_bounds = array<i64: 4, 8, 128>}]} {
    %c0 = arith.constant 0 : index
    %c0_0 = arith.constant 0 : index
    %0 = vector.load %arg1[%c0, %c0_0] : memref<8x128xf32, #tpu.memory_space<vmem>>, vector<8x128xf32>
    %c0_1 = arith.constant 0 : index
    %c0_2 = arith.constant 0 : index
    %1 = vector.load %arg2[%c0_1, %c0_2] : memref<8x128xi32, #tpu.memory_space<vmem>>, vector<8x128xi32>
    %c0_i32 = arith.constant 0 : i32
    %2 = vector.broadcast %c0_i32 : i32 to vector<8x128xi32>
    %3 = arith.cmpi eq, %1, %2 : vector<8x128xi32>
    %cst = arith.constant 0.000000e+00 : f32
    %4 = vector.broadcast %cst : f32 to vector<8x128xf32>
    %5 = arith.select %3, %0, %4 : vector<8x128xi1>, vector<8x128xf32>
    %c0_3 = arith.constant 0 : index
    %c0_4 = arith.constant 0 : index
    %c0_5 = arith.constant 0 : index
    %6 = vector.load %arg3[%c0_3, %c0_4, %c0_5] : memref<4x8x128xf32, #tpu.memory_space<vmem>>, vector<1x8x128xf32>
    %7 = vector.shape_cast %6 : vector<1x8x128xf32> to vector<8x128xf32>
    %8 = vector.shape_cast %5 : vector<8x128xf32> to vector<1x8x128xf32>
    tpu.vector_store %arg3[%c0_3, %c0_4, %c0_5], %8 {strides = array<i32>} : memref<4x8x128xf32, #tpu.memory_space<vmem>>, vector<1x8x128xf32>,
    %c1_i32 = arith.constant 1 : i32
    %9 = vector.broadcast %c1_i32 : i32 to vector<8x128xi32>
    %10 = arith.cmpi eq, %1, %9 : vector<8x128xi32>
    %cst_6 = arith.constant 0.000000e+00 : f32
    %11 = vector.broadcast %cst_6 : f32 to vector<8x128xf32>
    %12 = arith.select %10, %0, %11 : vector<8x128xi1>, vector<8x128xf32>
    %c1 = arith.constant 1 : index
    %c0_7 = arith.constant 0 : index
    %c0_8 = arith.constant 0 : index
    %13 = vector.load %arg3[%c1, %c0_7, %c0_8] : memref<4x8x128xf32, #tpu.memory_space<vmem>>, vector<1x8x128xf32>
    %14 = vector.shape_cast %13 : vector<1x8x128xf32> to vector<8x128xf32>
    %15 = vector.shape_cast %12 : vector<8x128xf32> to vector<1x8x128xf32>
    tpu.vector_store %arg3[%c1, %c0_7, %c0_8], %15 {strides = array<i32>} : memref<4x8x128xf32, #tpu.memory_space<vmem>>, vector<1x8x128xf32>,
    %c2_i32 = arith.constant 2 : i32
    %16 = vector.broadcast %c2_i32 : i32 to vector<8x128xi32>
    %17 = arith.cmpi eq, %1, %16 : vector<8x128xi32>
    %cst_9 = arith.constant 0.000000e+00 : f32
    %18 = vector.broadcast %cst_9 : f32 to vector<8x128xf32>
    %19 = arith.select %17, %0, %18 : vector<8x128xi1>, vector<8x128xf32>
    %c2 = arith.constant 2 : index
    %c0_10 = arith.constant 0 : index
    %c0_11 = arith.constant 0 : index
    %20 = vector.load %arg3[%c2, %c0_10, %c0_11] : memref<4x8x128xf32, #tpu.memory_space<vmem>>, vector<1x8x128xf32>
    %21 = vector.shape_cast %20 : vector<1x8x128xf32> to vector<8x128xf32>
    %22 = vector.shape_cast %19 : vector<8x128xf32> to vector<1x8x128xf32>
    tpu.vector_store %arg3[%c2, %c0_10, %c0_11], %22 {strides = array<i32>} : memref<4x8x128xf32, #tpu.memory_space<vmem>>, vector<1x8x128xf32>,
    %c3_i32 = arith.constant 3 : i32
    %23 = vector.broadcast %c3_i32 : i32 to vector<8x128xi32>
    %24 = arith.cmpi eq, %1, %23 : vector<8x128xi32>
    %cst_12 = arith.constant 0.000000e+00 : f32
    %25 = vector.broadcast %cst_12 : f32 to vector<8x128xf32>
    %26 = arith.select %24, %0, %25 : vector<8x128xi1>, vector<8x128xf32>
    %c3 = arith.constant 3 : index
    %c0_13 = arith.constant 0 : index
    %c0_14 = arith.constant 0 : index
    %27 = vector.load %arg3[%c3, %c0_13, %c0_14] : memref<4x8x128xf32, #tpu.memory_space<vmem>>, vector<1x8x128xf32>
    %28 = vector.shape_cast %27 : vector<1x8x128xf32> to vector<8x128xf32>
    %29 = vector.shape_cast %26 : vector<8x128xf32> to vector<1x8x128xf32>
    tpu.vector_store %arg3[%c3, %c0_13, %c0_14], %29 {strides = array<i32>} : memref<4x8x128xf32, #tpu.memory_space<vmem>>, vector<1x8x128xf32>,
    return
  }
  func.func @transform_0(%arg0: i32) -> (i32, i32) {
    %c0_i32 = arith.constant 0 : i32
    %c0_i32_0 = arith.constant 0 : i32
    return %arg0, %c0_i32 : i32, i32
  }
  func.func @transform_1(%arg0: i32) -> (i32, i32) {
    %c0_i32 = arith.constant 0 : i32
    %c0_i32_0 = arith.constant 0 : i32
    return %arg0, %c0_i32 : i32, i32
  }
  func.func @transform_2(%arg0: i32) -> (i32, i32, i32) {
    %c0_i32 = arith.constant 0 : i32
    %c0_i32_0 = arith.constant 0 : i32
    %c0_i32_1 = arith.constant 0 : i32
    return %c0_i32, %arg0, %c0_i32_0 : i32, i32, i32
  }
}

module attributes {stable_mosaic.version = 11 : i64} {
  func.func @_mm_bias_act_kernel(%arg0: i32, %arg1: memref<512x225xbf16, #tpu.memory_space<vmem>>, %arg2: memref<225x128xbf16, #tpu.memory_space<vmem>>, %arg3: memref<1x128xf32, #tpu.memory_space<vmem>>, %arg4: memref<512x128xf32, #tpu.memory_space<vmem>>) attributes {dimension_semantics = [#tpu.dimension_semantics<parallel>], iteration_bounds = array<i64: 8>, scalar_prefetch = 0 : i64, scratch_operands = 0 : i64, tpu.core_type = #tpu.core_type<tc>, window_params = [{transform_indices = @transform_0, window_bounds = array<i64: 512, 225>}, {pipeline_mode = #tpu.pipeline_mode<synchronous>, transform_indices = @transform_1, window_bounds = array<i64: 225, 128>}, {pipeline_mode = #tpu.pipeline_mode<synchronous>, transform_indices = @transform_2, window_bounds = array<i64: 1, 128>}, {transform_indices = @transform_3, window_bounds = array<i64: 512, 128>}]} {
    %c0 = arith.constant 0 : index
    %c0_0 = arith.constant 0 : index
    %0 = vector.load %arg1[%c0, %c0_0] : memref<512x225xbf16, #tpu.memory_space<vmem>>, vector<512x225xbf16>
    %c0_1 = arith.constant 0 : index
    %c0_2 = arith.constant 0 : index
    %1 = vector.load %arg2[%c0_1, %c0_2] : memref<225x128xbf16, #tpu.memory_space<vmem>>, vector<225x128xbf16>
    %cst = arith.constant dense<0.000000e+00> : vector<512x128xf32>
    %2 = tpu.matmul %0, %1, %cst {dimension_numbers = #tpu.dot_dimension_numbers<[1], [0], [0], [1], [0, 0, 1, 1], [], []>} : vector<512x225xbf16>, vector<225x128xbf16>, vector<512x128xf32> -> vector<512x128xf32>
    %c0_3 = arith.constant 0 : index
    %c0_4 = arith.constant 0 : index
    %3 = vector.load %arg3[%c0_3, %c0_4] : memref<1x128xf32, #tpu.memory_space<vmem>>, vector<1x128xf32>
    %4 = vector.broadcast %3 : vector<1x128xf32> to vector<512x128xf32>
    %5 = arith.addf %2, %4 : vector<512x128xf32>
    %cst_5 = arith.constant 0.000000e+00 : f32
    %6 = vector.broadcast %cst_5 : f32 to vector<512x128xf32>
    %7 = arith.subf %6, %5 : vector<512x128xf32>
    %8 = math.exp %7 : vector<512x128xf32>
    %cst_6 = arith.constant 1.000000e+00 : f32
    %9 = vector.broadcast %cst_6 : f32 to vector<512x128xf32>
    %10 = arith.addf %9, %8 : vector<512x128xf32>
    %11 = tpu.reciprocal %10 {approx = true} : vector<512x128xf32> -> vector<512x128xf32>
    %c0_7 = arith.constant 0 : index
    %c0_8 = arith.constant 0 : index
    %12 = vector.load %arg4[%c0_7, %c0_8] : memref<512x128xf32, #tpu.memory_space<vmem>>, vector<512x128xf32>
    tpu.vector_store %arg4[%c0_7, %c0_8], %11 {strides = array<i32>} : memref<512x128xf32, #tpu.memory_space<vmem>>, vector<512x128xf32>,
    return
  }
  func.func @transform_0(%arg0: i32) -> (i32, i32) {
    %c0_i32 = arith.constant 0 : i32
    %c0_i32_0 = arith.constant 0 : i32
    return %arg0, %c0_i32 : i32, i32
  }
  func.func @transform_1(%arg0: i32) -> (i32, i32) {
    %c0_i32 = arith.constant 0 : i32
    %c0_i32_0 = arith.constant 0 : i32
    %c0_i32_1 = arith.constant 0 : i32
    return %c0_i32, %c0_i32_0 : i32, i32
  }
  func.func @transform_2(%arg0: i32) -> (i32, i32) {
    %c0_i32 = arith.constant 0 : i32
    %c0_i32_0 = arith.constant 0 : i32
    %c0_i32_1 = arith.constant 0 : i32
    return %c0_i32, %c0_i32_0 : i32, i32
  }
  func.func @transform_3(%arg0: i32) -> (i32, i32) {
    %c0_i32 = arith.constant 0 : i32
    %c0_i32_0 = arith.constant 0 : i32
    return %arg0, %c0_i32 : i32, i32
  }
}

</mosaic_0001>

<llo_original>
// kernel: forward.9
$region0: #{forward.9}
  #allocation0 [shape = 'u32[]', space=smem, size = 0x4, offset = 0x4, fixed_abs, tag = 'smem constant byte address 0x4 - core index']
  #allocation1 [shape = 'u32[144,128]{1,0:T(1,128)}', space=vmem, size = 0x12000, scoped, tag = 'internal scratch']
  %s0 = inlined_call_operand.vmem [shape: bf16[882,75], index: 0, kind: input, shape index: {}]
  %s1 = inlined_call_operand.hbm [shape: bf16[75,128], index: 1, kind: input, shape index: {}]
  %s2 = inlined_call_operand.hbm [shape: f32[1,128], index: 2, kind: input, shape index: {}]
  %s3 = inlined_call_operand.vmem [shape: f32[882,128], index: 3, kind: output, shape index: {}]
  %s4 = sld [smem:[#allocation0]]
  $region101: #{forward.9} parent=0
    _
  %s6 = ssub.s32 1, %s4
  %s7 = scalar_select 0, %s6, %s4
  $region1: #{forward.9} parent=0
    #allocation2 [shape = 'u8[20480]{0}', space=vmem, size = 0x5000, scoped, tag = 'input window, operand 1, single buffered']
    #allocation3 [shape = 's32[2]{0}', space=sflag, size = 0x8, scoped, tag = 'scoped memory for forward.9']
    #allocation4 [shape = 'u8[512]{0}', space=vmem, size = 0x400, scoped, tag = 'input window, operand 2, single buffered']
    #allocation5 [shape = 's32[1]{0}', space=sflag, size = 0x4, scoped, tag = 'scoped memory for forward.9']
    #allocation6 [shape = 'u8[524288]{0}', space=vmem, size = 0x80000, scoped, tag = 'output window, operand 0']
    %8 = vsyncpa [#allocation3], 0
    %9 = vsyncpa [#allocation5], 0
    loop: start=0, step=1, limit=4
    $region2: #{forward.9} parent=1 // loop_pre_header
      _
    $region3: #{forward.9} parent=1 // loop_header
      %s11 = sphi 0, %s15
      %p12 = scmp.ge.s32.totalorder %s11, 4
      %s21 = sphi 0, %s23
      %s24 = sphi 0, %s21
      %s25 = sphi 0, %s24
      %s41 = sphi 0, %s25
      %s45 = sphi 0, %s45
      %s47 = sphi 0, %s45
      %s48 = sphi 0, %s47
      %s62 = sphi 0, %s48
      %s66 = sphi 0, %s66
      %s68 = sphi 0, %s66
      %s69 = sphi 0, %s68
      %s83 = sphi 0, %s69
      %s89 = sphi 0, %s91
      %s92 = sphi 0, %s89
      %s93 = sphi 0, %s92
      %s109 = sphi 0, %s93
    $region4: #{forward.9} parent=1 // loop_header_branch
      %14 = sbr.rel (%p12) target = $region8
    $region5: #{forward.9} parent=1 // loop_body
      %s16 = ssub.s32 %s11, 1
      %s17 = ssub.s32 %s11, 2
      %s18 = sadd.s32 %s11, 1
      %s19 = ssub.s32 %s11, %s18
      %p20 = scmp.eq.s32.totalorder %s19, 0
      %s22 = sadd.s32 %s21, 1
      %s23 = scalar_select %p20, %s21, %s22
      %p26 = pneg %p20
      %p27 = scmp.eq.s32.totalorder %s11, 1
      %p28 = por %p26, %p27
      %p29 = scmp.ne.s32.totalorder %s21, %s24
      %p30 = scmp.eq.s32.totalorder %s11, 0
      %p31 = por %p29, %p30
      %p32 = scmp.ne.s32.totalorder %s21, %s24
      %p33 = scmp.eq.s32.totalorder %s16, 1
      %p34 = por %p32, %p33
      %p35 = scmp.ne.s32.totalorder %s24, %s25
      %p36 = scmp.eq.s32.totalorder %s16, 0
      %p37 = por %p35, %p36
      %p38 = scmp.ne.s32.totalorder %s24, %s25
      %p39 = scmp.eq.s32.totalorder %s17, 1
      %p40 = por %p38, %p39
      %p42 = scmp.ne.s32.totalorder %s25, %s41
      %p43 = scmp.eq.s32.totalorder %s17, 0
      %p44 = por %p42, %p43
      %s46 = sadd.s32 %s45, 1
      %p49 = scmp.eq.s32.totalorder %s11, 1
      %p50 = scmp.ne.s32.totalorder %s45, %s47
      %p51 = scmp.eq.s32.totalorder %s11, 0
      %p52 = por %p50, %p51
      %p53 = scmp.ne.s32.totalorder %s45, %s47
      %p54 = scmp.eq.s32.totalorder %s16, 1
      %p55 = por %p53, %p54
      %p56 = scmp.ne.s32.totalorder %s47, %s48
      %p57 = scmp.eq.s32.totalorder %s16, 0
      %p58 = por %p56, %p57
      %p59 = scmp.ne.s32.totalorder %s47, %s48
      %p60 = scmp.eq.s32.totalorder %s17, 1
      %p61 = por %p59, %p60
      %p63 = scmp.ne.s32.totalorder %s48, %s62
      %p64 = scmp.eq.s32.totalorder %s17, 0
      %p65 = por %p63, %p64
      %s67 = sadd.s32 %s66, 1
      %p70 = scmp.eq.s32.totalorder %s11, 1
      %p71 = scmp.ne.s32.totalorder %s66, %s68
      %p72 = scmp.eq.s32.totalorder %s11, 0
      %p73 = por %p71, %p72
      %p74 = scmp.ne.s32.totalorder %s66, %s68
      %p75 = scmp.eq.s32.totalorder %s16, 1
      %p76 = por %p74, %p75
      %p77 = scmp.ne.s32.totalorder %s68, %s69
      %p78 = scmp.eq.s32.totalorder %s16, 0
      %p79 = por %p77, %p78
      %p80 = scmp.ne.s32.totalorder %s68, %s69
      %p81 = scmp.eq.s32.totalorder %s17, 1
      %p82 = por %p80, %p81
      %p84 = scmp.ne.s32.totalorder %s69, %s83
      %p85 = scmp.eq.s32.totalorder %s17, 0
      %p86 = por %p84, %p85
      %s87 = ssub.s32 %s11, %s18
      %p88 = scmp.eq.s32.totalorder %s87, 0
      %s90 = sadd.s32 %s89, 1
      %s91 = scalar_select %p88, %s89, %s90
      %p94 = pneg %p88
      %p95 = scmp.eq.s32.totalorder %s11, 1
      %p96 = por %p94, %p95
      %p97 = scmp.ne.s32.totalorder %s89, %s92
      %p98 = scmp.eq.s32.totalorder %s11, 0
      %p99 = por %p97, %p98
      %p100 = scmp.ne.s32.totalorder %s89, %s92
      %p101 = scmp.eq.s32.totalorder %s16, 1
      %p102 = por %p100, %p101
      %p103 = scmp.ne.s32.totalorder %s92, %s93
      %p104 = scmp.eq.s32.totalorder %s16, 0
      %p105 = por %p103, %p104
      %p106 = scmp.ne.s32.totalorder %s92, %s93
      %p107 = scmp.eq.s32.totalorder %s17, 1
      %p108 = por %p106, %p107
      %p110 = scmp.ne.s32.totalorder %s93, %s109
      %p111 = scmp.eq.s32.totalorder %s17, 0
      %p112 = por %p110, %p111
      %p113 = scmp.le.s32.totalorder 1, %s11
      %p114 = scmp.lt.s32.totalorder %s11, 3
      %p115 = pnand %p113, %p114
      %p116 = pneg %p115
      // Predicated region
      $region9: #{forward.9} parent=5 // pred_check
        _
      $region10: #{forward.9} parent=5 // pred_check_branch
        %118 = sbr.rel (%p115) target = $region12
      $region11: #{forward.9} parent=5 // pred_region
        %s119 = ssub.s32 %s11, 1
        // Predicated region
        $region13: #{forward.9} parent=11 // pred_check
          %p120 = pneg %p58
        $region14: #{forward.9} parent=11 // pred_check_branch
          %122 = sbr.rel (%p120) target = $region16
        $region15: #{forward.9} parent=11 // pred_region
          %s124 = ssub.s32 640, 640
          %125 = vsyncadd [#allocation3], %s124
          %s126 = sshll.u32 [#allocation2], 4
          %s127 = int_to_ptr.vmem [resolvable:$true] %s126
          %132 = dma.hbm_to_vmem [thread:$0]  %s1, 640, %s127, [#allocation3], 64, 64, 4
        $region16: #{forward.9} parent=11 // pred_fallthru
          _
        // Predicated region
        $region17: #{forward.9} parent=11 // pred_check
          %p133 = pneg %p79
        $region18: #{forward.9} parent=11 // pred_check_branch
          %135 = sbr.rel (%p133) target = $region20
        $region19: #{forward.9} parent=11 // pred_region
          %s137 = ssub.s32 16, 16
          %138 = vsyncadd [#allocation5], %s137
          %s140 = sshll.u32 [#allocation4], 4
          %s141 = int_to_ptr.vmem [resolvable:$true] %s140
          %143 = dma.hbm_to_vmem [thread:$0]  %s2, 16, %s141, [#allocation5]
        $region20: #{forward.9} parent=11 // pred_fallthru
          _
      $region12: #{forward.9} parent=5 // pred_fallthru
        _
      %p144 = scmp.lt.s32.totalorder %s11, 2
      // Predicated region
      $region21: #{forward.9} parent=5 // pred_check
        %p145 = pneg %p144
      $region22: #{forward.9} parent=5 // pred_check_branch
        %147 = sbr.rel (%p145) target = $region24
      $region23: #{forward.9} parent=5 // pred_region
        // Predicated region
        $region25: #{forward.9} parent=23 // pred_check
          %p148 = pneg %p31
        $region26: #{forward.9} parent=23 // pred_check_branch
          %150 = sbr.rel (%p148) target = $region28
        $region27: #{forward.9} parent=23 // pred_region
          %s151 = smul.u32 64, %s11
          %s152 = ssub.s32 111, %s151
          %p153 = scmp.lt.s32.totalorder %s152, 64
          %s154 = scalar_select %p153, %s152, 64
          %s155 = smul.u32 64, %s154
          %p156 = scmp.lt.s32.totalorder %s151, 110
          %s157 = scalar_select %p156, %s151, 110
          %s158 = smul.addr %s157, 4
          %s159 = scalar_lea.vmem %s0, %s158
          %s160 = smul.u32 64, %s11
          %s161 = ssub.s32 111, %s160
          %p162 = scmp.lt.s32.totalorder %s161, 64
          %s163 = scalar_select %p162, %s161, 64
          %s164 = smul.u32 64, %s163
        $region28: #{forward.9} parent=23 // pred_fallthru
          _
      $region24: #{forward.9} parent=5 // pred_fallthru
        _
      %p165 = scmp.le.s32.totalorder 1, %s11
      %p166 = scmp.lt.s32.totalorder %s11, 3
      %p167 = pnand %p165, %p166
      %p168 = pneg %p167
      // Predicated region
      $region29: #{forward.9} parent=5 // pred_check
        _
      $region30: #{forward.9} parent=5 // pred_check_branch
        %170 = sbr.rel (%p167) target = $region32
      $region31: #{forward.9} parent=5 // pred_region
        %s171 = ssub.s32 %s11, 1
        // Predicated region
        $region33: #{forward.9} parent=31 // pred_check
          %p172 = pneg %p58
        $region34: #{forward.9} parent=31 // pred_check_branch
          %174 = sbr.rel (%p172) target = $region36
        $region35: #{forward.9} parent=31 // pred_region
          %175 = dma.done [#allocation3], 640
        $region36: #{forward.9} parent=31 // pred_fallthru
          _
        // Predicated region
        $region37: #{forward.9} parent=31 // pred_check
          %p176 = pneg %p79
        $region38: #{forward.9} parent=31 // pred_check_branch
          %178 = sbr.rel (%p176) target = $region40
        $region39: #{forward.9} parent=31 // pred_region
          %179 = dma.done [#allocation5], 16
        $region40: #{forward.9} parent=31 // pred_fallthru
          _
        %s180 = smul.u32 64, %s16
        %s181 = ssub.s32 111, %s180
        %p182 = scmp.lt.s32.totalorder %s181, 64
        %s183 = scalar_select %p182, %s181, 64
        %s184 = smul.u32 64, %s183
        %p185 = scmp.lt.s32.totalorder %s180, 110
        %s186 = scalar_select %p185, %s180, 110
        %s187 = smul.addr %s186, 4
        %s188 = scalar_lea.vmem %s0, %s187
        %p189 = pneg %p37
        %p190 = pneg %p34
        %p191 = pneg %p58
        %p192 = pneg %p55
        %p193 = pneg %p79
        %p194 = pneg %p76
        %p195 = pneg %p105
        %p196 = pneg %p102
        %s197 = sand.u32 %s92, 1
        %s198 = sand.u32 %s92, 1
        %s199 = smul.addr %s198, 512
        %s200 = scalar_lea.vmem [#allocation6], %s199
        %s201 = smul.u32 64, %s16
        %s202 = ssub.s32 111, %s201
        %p203 = scmp.lt.s32.totalorder %s202, 64
        %s204 = scalar_select %p203, %s202, 64
        %s205 = smul.u32 64, %s204
        %p206 = scmp.lt.s32.totalorder %s201, 110
        %s207 = scalar_select %p206, %s201, 110
        %s208 = smul.addr %s207, 4
        %s209 = scalar_lea.vmem %s0, %s208
        %s210 = smul.u32 64, %s16
        %s211 = ssub.s32 111, %s210
        %p212 = scmp.lt.s32.totalorder %s211, 64
        %s213 = scalar_select %p212, %s211, 64
        %s214 = smul.u32 64, %s213
        %s215 = smul.u32 64, %s16
        %s216 = ssub.s32 111, %s215
        %p217 = scmp.lt.s32.totalorder %s216, 64
        %s218 = scalar_select %p217, %s216, 64
        %s219 = smul.u32 128, %s218
        %v221 = vld [vmem:[%s209] sm:$0xf]
        %v222 = vld [vmem:[%s209 + $0x4] sm:$0xf]
        %v223 = vld [vmem:[%s209 + $0x8] sm:$0xf]
        %v224 = vld [vmem:[%s209 + $0xc] sm:$0xf]
        %v225 = vld [vmem:[%s209 + $0x10] sm:$0xf]
        %v226 = vld [vmem:[%s209 + $0x14] sm:$0xf]
        %v227 = vld [vmem:[%s209 + $0x18] sm:$0xf]
        %v228 = vld [vmem:[%s209 + $0x1c] sm:$0xf]
        %v229 = vld [vmem:[%s209 + $0x20] sm:$0xf]
        %v230 = vld [vmem:[%s209 + $0x24] sm:$0xf]
        %v231 = vld [vmem:[%s209 + $0x28] sm:$0xf]
        %v232 = vld [vmem:[%s209 + $0x2c] sm:$0xf]
        %v233 = vld [vmem:[%s209 + $0x30] sm:$0xf]
        %v234 = vld [vmem:[%s209 + $0x34] sm:$0xf]
        %v235 = vld [vmem:[%s209 + $0x38] sm:$0xf]
        %v236 = vld [vmem:[%s209 + $0x3c] sm:$0xf]
        %v237 = vld [vmem:[%s209 + $0x40] sm:$0xf]
        %v238 = vld [vmem:[%s209 + $0x44] sm:$0xf]
        %v239 = vld [vmem:[%s209 + $0x48] sm:$0xf]
        %v240 = vld [vmem:[%s209 + $0x4c] sm:$0xf]
        %v241 = vld [vmem:[%s209 + $0x50] sm:$0xf]
        %v242 = vld [vmem:[%s209 + $0x54] sm:$0xf]
        %v243 = vld [vmem:[%s209 + $0x58] sm:$0xf]
        %v244 = vld [vmem:[%s209 + $0x5c] sm:$0xf]
        %v245 = vld [vmem:[%s209 + $0x60] sm:$0xf]
        %v246 = vld [vmem:[%s209 + $0x64] sm:$0xf]
        %v247 = vld [vmem:[%s209 + $0x68] sm:$0xf]
        %v248 = vld [vmem:[%s209 + $0x6c] sm:$0xf]
        %v249 = vld [vmem:[%s209 + $0x70] sm:$0xf]
        %v250 = vld [vmem:[%s209 + $0x74] sm:$0xf]
        %v251 = vld [vmem:[%s209 + $0x78] sm:$0xf]
        %v252 = vld [vmem:[%s209 + $0x7c] sm:$0xf]
        %v253 = vld [vmem:[%s209 + $0x80] sm:$0xf]
        %v254 = vld [vmem:[%s209 + $0x84] sm:$0xf]
        %v255 = vld [vmem:[%s209 + $0x88] sm:$0xf]
        %v256 = vld [vmem:[%s209 + $0x8c] sm:$0xf]
        %v257 = vld [vmem:[%s209 + $0x90] sm:$0xf]
        %v258 = vld [vmem:[%s209 + $0x94] sm:$0xf]
        %v259 = vld [vmem:[%s209 + $0x98] sm:$0xf]
        %v260 = vld [vmem:[%s209 + $0x9c] sm:$0xf]
        %v261 = vld [vmem:[%s209 + $0xa0] sm:$0xf]
        %v262 = vld [vmem:[%s209 + $0xa4] sm:$0xf]
        %v263 = vld [vmem:[%s209 + $0xa8] sm:$0xf]
        %v264 = vld [vmem:[%s209 + $0xac] sm:$0xf]
        %v265 = vld [vmem:[%s209 + $0xb0] sm:$0xf]
        %v266 = vld [vmem:[%s209 + $0xb4] sm:$0xf]
        %v267 = vld [vmem:[%s209 + $0xb8] sm:$0xf]
        %v268 = vld [vmem:[%s209 + $0xbc] sm:$0xf]
        %v269 = vld [vmem:[%s209 + $0xc0] sm:$0xf]
        %v270 = vld [vmem:[%s209 + $0xc4] sm:$0xf]
        %v271 = vld [vmem:[%s209 + $0xc8] sm:$0xf]
        %v272 = vld [vmem:[%s209 + $0xcc] sm:$0xf]
        %v273 = vld [vmem:[%s209 + $0xd0] sm:$0xf]
        %v274 = vld [vmem:[%s209 + $0xd4] sm:$0xf]
        %v275 = vld [vmem:[%s209 + $0xd8] sm:$0xf]
        %v276 = vld [vmem:[%s209 + $0xdc] sm:$0xf]
        %v277 = vld [vmem:[%s209 + $0xe0] sm:$0xf]
        %v278 = vld [vmem:[%s209 + $0xe4] sm:$0xf]
        %v279 = vld [vmem:[%s209 + $0xe8] sm:$0xf]
        %v280 = vld [vmem:[%s209 + $0xec] sm:$0xf]
        %v281 = vld [vmem:[%s209 + $0xf0] sm:$0xf]
        %v282 = vld [vmem:[%s209 + $0xf4] sm:$0xf]
        %v283 = vld [vmem:[%s209 + $0xf8] sm:$0xf]
        %v284 = vld [vmem:[%s209 + $0xfc] sm:$0xf]
        %v285 = vld [vmem:[#allocation2] sm:$0xf]
        %v286 = vld [vmem:[#allocation2 + $0x4] sm:$0xf]
        %v287 = vld [vmem:[#allocation2 + $0x8] sm:$0xf]
        %v288 = vld [vmem:[#allocation2 + $0xc] sm:$0xf]
        %v289 = vld [vmem:[#allocation2 + $0x10] sm:$0xf]
        %v290 = vld [vmem:[#allocation2 + $0x14] sm:$0xf]
        %v291 = vld [vmem:[#allocation2 + $0x18] sm:$0xf]
        %v292 = vld [vmem:[#allocation2 + $0x1c] sm:$0xf]
        %v293 = vld [vmem:[#allocation2 + $0x20] sm:$0xf]
        %v294 = vld [vmem:[#allocation2 + $0x24] sm:$0x3]
        %v295 = vld [vmem:[#allocation4] sm:$0x1]
        %v297 = vlaneseq
        %v298 = vshrl.u32 %v297, 7
        %v299 = vsub.s32 0, %v298
        %v300 = vrot.slane %v295, %v299
        %v366 = vunpack.c.l.b16 %v221
        %v367 = vunpack.c.l.b16 %v222
        %v368 = vunpack.c.l.b16 %v223
        %v369 = vunpack.c.l.b16 %v224
        %v370 = vunpack.c.l.b16 %v225
        %v371 = vunpack.c.l.b16 %v226
        %v372 = vunpack.c.l.b16 %v227
        %v373 = vunpack.c.l.b16 %v228
        %v374 = vunpack.c.l.b16 %v229
        %v375 = vunpack.c.l.b16 %v230
        %v376 = vunpack.c.l.b16 %v231
        %v377 = vunpack.c.l.b16 %v232
        %v378 = vunpack.c.l.b16 %v233
        %v379 = vunpack.c.l.b16 %v234
        %v380 = vunpack.c.l.b16 %v235
        %v381 = vunpack.c.l.b16 %v236
        %v382 = vunpack.c.l.b16 %v237
        %v383 = vunpack.c.l.b16 %v238
        %v384 = vunpack.c.l.b16 %v239
        %v385 = vunpack.c.l.b16 %v240
        %v386 = vunpack.c.l.b16 %v241
        %v387 = vunpack.c.l.b16 %v242
        %v388 = vunpack.c.l.b16 %v243
        %v389 = vunpack.c.l.b16 %v244
        %v390 = vunpack.c.l.b16 %v245
        %v391 = vunpack.c.l.b16 %v246
        %v392 = vunpack.c.l.b16 %v247
        %v393 = vunpack.c.l.b16 %v248
        %v394 = vunpack.c.l.b16 %v249
        %v395 = vunpack.c.l.b16 %v250
        %v396 = vunpack.c.l.b16 %v251
        %v397 = vunpack.c.l.b16 %v252
        %v398 = vunpack.c.l.b16 %v253
        %v399 = vunpack.c.l.b16 %v254
        %v400 = vunpack.c.l.b16 %v255
        %v401 = vunpack.c.l.b16 %v256
        %v402 = vunpack.c.l.b16 %v257
        %v403 = vunpack.c.l.b16 %v258
        %v404 = vunpack.c.l.b16 %v259
        %v405 = vunpack.c.l.b16 %v260
        %v406 = vunpack.c.l.b16 %v261
        %v407 = vunpack.c.l.b16 %v262
        %v408 = vunpack.c.l.b16 %v263
        %v409 = vunpack.c.l.b16 %v264
        %v410 = vunpack.c.l.b16 %v265
        %v411 = vunpack.c.l.b16 %v266
        %v412 = vunpack.c.l.b16 %v267
        %v413 = vunpack.c.l.b16 %v268
        %v414 = vunpack.c.l.b16 %v269
        %v415 = vunpack.c.l.b16 %v270
        %v416 = vunpack.c.l.b16 %v271
        %v417 = vunpack.c.l.b16 %v272
        %v418 = vunpack.c.l.b16 %v273
        %v419 = vunpack.c.l.b16 %v274
        %v420 = vunpack.c.l.b16 %v275
        %v421 = vunpack.c.l.b16 %v276
        %v422 = vunpack.c.l.b16 %v277
        %v423 = vunpack.c.l.b16 %v278
        %v424 = vunpack.c.l.b16 %v279
        %v425 = vunpack.c.l.b16 %v280
        %v426 = vunpack.c.l.b16 %v281
        %v427 = vunpack.c.l.b16 %v282
        %v428 = vunpack.c.l.b16 %v283
        %v429 = vunpack.c.l.b16 %v284
        %v430 = vpack.c.b16 %v367, %v366
        %v431 = vpack.c.b16 %v369, %v368
        %v432 = vpack.c.b16 %v371, %v370
        %v433 = vpack.c.b16 %v373, %v372
        %v434 = vpack.c.b16 %v375, %v374
        %v435 = vpack.c.b16 %v377, %v376
        %v436 = vpack.c.b16 %v379, %v378
        %v437 = vpack.c.b16 %v381, %v380
        %v438 = vpack.c.b16 %v383, %v382
        %v439 = vpack.c.b16 %v385, %v384
        %v440 = vpack.c.b16 %v387, %v386
        %v441 = vpack.c.b16 %v389, %v388
        %v442 = vpack.c.b16 %v391, %v390
        %v443 = vpack.c.b16 %v393, %v392
        %v444 = vpack.c.b16 %v395, %v394
        %v445 = vpack.c.b16 %v397, %v396
        %v446 = vpack.c.b16 %v399, %v398
        %v447 = vpack.c.b16 %v401, %v400
        %v448 = vpack.c.b16 %v403, %v402
        %v449 = vpack.c.b16 %v405, %v404
        %v450 = vpack.c.b16 %v407, %v406
        %v451 = vpack.c.b16 %v409, %v408
        %v452 = vpack.c.b16 %v411, %v410
        %v453 = vpack.c.b16 %v413, %v412
        %v454 = vpack.c.b16 %v415, %v414
        %v455 = vpack.c.b16 %v417, %v416
        %v456 = vpack.c.b16 %v419, %v418
        %v457 = vpack.c.b16 %v421, %v420
        %v458 = vpack.c.b16 %v423, %v422
        %v459 = vpack.c.b16 %v425, %v424
        %v460 = vpack.c.b16 %v427, %v426
        %v461 = vpack.c.b16 %v429, %v428
        %v472 = vunpack.c.l.b16 %v285
        %v473 = vunpack.c.l.b16 %v286
        %v474 = vunpack.c.l.b16 %v287
        %v475 = vunpack.c.l.b16 %v288
        %v476 = vunpack.c.l.b16 %v289
        %v477 = vunpack.c.l.b16 %v290
        %v478 = vunpack.c.l.b16 %v291
        %v479 = vunpack.c.l.b16 %v292
        %v480 = vunpack.c.l.b16 %v293
        %v481 = vunpack.c.l.b16 %v294
        %v482 = vpack.c.b16 %v473, %v472
        %v483 = vpack.c.b16 %v475, %v474
        %v484 = vpack.c.b16 %v477, %v476
        %v485 = vpack.c.b16 %v479, %v478
        %v486 = vpack.c.b16 %v481, %v480
        %vm491 = vcmask 613376
        %v493 = vsel %vm491, %v430, 0
        %v496 = vsel %vm491, %v431, 0
        %v499 = vsel %vm491, %v432, 0
        %v502 = vsel %vm491, %v433, 0
        %v505 = vsel %vm491, %v434, 0
        %v508 = vsel %vm491, %v435, 0
        %v511 = vsel %vm491, %v436, 0
        %v514 = vsel %vm491, %v437, 0
        %v517 = vsel %vm491, %v438, 0
        %v520 = vsel %vm491, %v439, 0
        %v523 = vsel %vm491, %v440, 0
        %v526 = vsel %vm491, %v441, 0
        %v529 = vsel %vm491, %v442, 0
        %v532 = vsel %vm491, %v443, 0
        %v535 = vsel %vm491, %v444, 0
        %v538 = vsel %vm491, %v445, 0
        %v541 = vsel %vm491, %v446, 0
        %v544 = vsel %vm491, %v447, 0
        %v547 = vsel %vm491, %v448, 0
        %v550 = vsel %vm491, %v449, 0
        %v553 = vsel %vm491, %v450, 0
        %v556 = vsel %vm491, %v451, 0
        %v559 = vsel %vm491, %v452, 0
        %v562 = vsel %vm491, %v453, 0
        %v565 = vsel %vm491, %v454, 0
        %v568 = vsel %vm491, %v455, 0
        %v571 = vsel %vm491, %v456, 0
        %v574 = vsel %vm491, %v457, 0
        %v577 = vsel %vm491, %v458, 0
        %v580 = vsel %vm491, %v459, 0
        %v583 = vsel %vm491, %v460, 0
        %v586 = vsel %vm491, %v461, 0
        %vm588 = vcmask 1044480
        %vm589 = vcmask 1045504
        %v590 = vsel %vm588, 4294967295, 65535
        %v591 = vsel %vm589, %v590, 0
        %v593 = vand.u32 %v486, %v591
        %595 = vmatprep.subr.bf16.mxu0 0
        %596 = vmatpush1.bf16.msra.mxu0 %v482
        %597 = vmatprep.subr.bf16.mxu0 0
        %598 = vmatpush1.bf16.msra.mxu0 %v483
        %599 = vmatprep.subr.bf16.mxu0 0
        %600 = vmatpush1.bf16.msra.mxu0 %v484
        %601 = vmatprep.subr.bf16.mxu0 0
        %602 = vmatpush1.bf16.msra.mxu0 %v485
        %603 = vmatprep.subr.bf16.mxu0 0
        %604 = vmatpush1.bf16.msra.mxu0 %v593
        %605 = vmatprep.subr.bf16.mxu0 0
        %606 = vmatpush1.bf16.msra.mxu0 0
        %607 = vmatprep.subr.bf16.mxu0 0
        %608 = vmatpush1.bf16.msra.mxu0 0
        %609 = vmatprep.subr.bf16.mxu0 0
        %610 = vmatpush1.bf16.msra.mxu0 0
        %611 = vmatprep.subr.bf16.mxu0 0
        %612 = vmatpush1.bf16.msra.mxu0 0
        %613 = vmatprep.subr.bf16.mxu0 0
        %614 = vmatpush1.bf16.msra.mxu0 0
        %615 = vmatprep.subr.bf16.mxu0 0
        %616 = vmatpush1.bf16.msra.mxu0 0
        %617 = vmatprep.subr.bf16.mxu0 0
        %618 = vmatpush1.bf16.msra.mxu0 0
        %619 = vmatprep.subr.bf16.mxu0 0
        %620 = vmatpush1.bf16.msra.mxu0 0
        %621 = vmatprep.subr.bf16.mxu0 0
        %622 = vmatpush1.bf16.msra.mxu0 0
        %623 = vmatprep.subr.bf16.mxu0 0
        %624 = vmatpush1.bf16.msra.mxu0 0
        %625 = vmatprep.subr.bf16.mxu0 0
        %626 = vmatpush1.bf16.msra.mxu0 0
        %627 = vmatprep.mubr.bf16.mxu0 0
        %628 = vmatmul.mubr.bf16.gmra.mrb[0].mxu0 %v493
        %v629 = vpop.f32.mrb[0].mxu0
        %v630 = vadd.f32 %v300, %v629
        %v631 = vpop.f32.mrb[0].mxu0
        %v632 = vpop.f32.mrb[0].mxu0
        %v633 = vadd.f32 %v300, %v632
        %v634 = vpop.f32.mrb[0].mxu0
        %635 = vmatprep.mubr.bf16.mxu0 0
        %636 = vmatmul.mubr.bf16.gmra.mrb[0].mxu0 %v496
        %v637 = vpop.f32.mrb[0].mxu0
        %v638 = vadd.f32 %v300, %v637
        %v639 = vpop.f32.mrb[0].mxu0
        %v640 = vpop.f32.mrb[0].mxu0
        %v641 = vadd.f32 %v300, %v640
        %v642 = vpop.f32.mrb[0].mxu0
        %643 = vmatprep.mubr.bf16.mxu0 0
        %644 = vmatmul.mubr.bf16.gmra.mrb[0].mxu0 %v499
        %v645 = vpop.f32.mrb[0].mxu0
        %v646 = vadd.f32 %v300, %v645
        %v647 = vpop.f32.mrb[0].mxu0
        %v648 = vpop.f32.mrb[0].mxu0
        %v649 = vadd.f32 %v300, %v648
        %v650 = vpop.f32.mrb[0].mxu0
        %651 = vmatprep.mubr.bf16.mxu0 0
        %652 = vmatmul.mubr.bf16.gmra.mrb[0].mxu0 %v502
        %v653 = vpop.f32.mrb[0].mxu0
        %v654 = vadd.f32 %v300, %v653
        %v655 = vpop.f32.mrb[0].mxu0
        %v656 = vpop.f32.mrb[0].mxu0
        %v657 = vadd.f32 %v300, %v656
        %v658 = vpop.f32.mrb[0].mxu0
        %659 = vmatprep.mubr.bf16.mxu0 0
        %660 = vmatmul.mubr.bf16.gmra.mrb[0].mxu0 %v505
        %v661 = vpop.f32.mrb[0].mxu0
        %v662 = vadd.f32 %v300, %v661
        %v663 = vpop.f32.mrb[0].mxu0
        %v664 = vpop.f32.mrb[0].mxu0
        %v665 = vadd.f32 %v300, %v664
        %v666 = vpop.f32.mrb[0].mxu0
        %667 = vmatprep.mubr.bf16.mxu0 0
        %668 = vmatmul.mubr.bf16.gmra.mrb[0].mxu0 %v508
        %v669 = vpop.f32.mrb[0].mxu0
        %v670 = vadd.f32 %v300, %v669
        %v671 = vpop.f32.mrb[0].mxu0
        %v672 = vpop.f32.mrb[0].mxu0
        %v673 = vadd.f32 %v300, %v672
        %v674 = vpop.f32.mrb[0].mxu0
        %675 = vmatprep.mubr.bf16.mxu0 0
        %676 = vmatmul.mubr.bf16.gmra.mrb[0].mxu0 %v511
        %v677 = vpop.f32.mrb[0].mxu0
        %v678 = vadd.f32 %v300, %v677
        %v679 = vpop.f32.mrb[0].mxu0
        %v680 = vpop.f32.mrb[0].mxu0
        %v681 = vadd.f32 %v300, %v680
        %v682 = vpop.f32.mrb[0].mxu0
        %683 = vmatprep.mubr.bf16.mxu0 0
        %684 = vmatmul.mubr.bf16.gmra.mrb[0].mxu0 %v514
        %v685 = vpop.f32.mrb[0].mxu0
        %v686 = vadd.f32 %v300, %v685
        %v687 = vpop.f32.mrb[0].mxu0
        %v688 = vpop.f32.mrb[0].mxu0
        %v689 = vadd.f32 %v300, %v688
        %v690 = vpop.f32.mrb[0].mxu0
        %691 = vmatprep.mubr.bf16.mxu0 0
        %692 = vmatmul.mubr.bf16.gmra.mrb[0].mxu0 %v517
        %v693 = vpop.f32.mrb[0].mxu0
        %v694 = vadd.f32 %v300, %v693
        %v695 = vpop.f32.mrb[0].mxu0
        %v696 = vpop.f32.mrb[0].mxu0
        %v697 = vadd.f32 %v300, %v696
        %v698 = vpop.f32.mrb[0].mxu0
        %699 = vmatprep.mubr.bf16.mxu0 0
        %700 = vmatmul.mubr.bf16.gmra.mrb[0].mxu0 %v520
        %v701 = vpop.f32.mrb[0].mxu0
        %v702 = vadd.f32 %v300, %v701
        %v703 = vpop.f32.mrb[0].mxu0
        %v704 = vpop.f32.mrb[0].mxu0
        %v705 = vadd.f32 %v300, %v704
        %v706 = vpop.f32.mrb[0].mxu0
        %707 = vmatprep.mubr.bf16.mxu0 0
        %708 = vmatmul.mubr.bf16.gmra.mrb[0].mxu0 %v523
        %v709 = vpop.f32.mrb[0].mxu0
        %v710 = vadd.f32 %v300, %v709
        %v711 = vpop.f32.mrb[0].mxu0
        %v712 = vpop.f32.mrb[0].mxu0
        %v713 = vadd.f32 %v300, %v712
        %v714 = vpop.f32.mrb[0].mxu0
        %715 = vmatprep.mubr.bf16.mxu0 0
        %716 = vmatmul.mubr.bf16.gmra.mrb[0].mxu0 %v526
        %v717 = vpop.f32.mrb[0].mxu0
        %v718 = vadd.f32 %v300, %v717
        %v719 = vpop.f32.mrb[0].mxu0
        %v720 = vpop.f32.mrb[0].mxu0
        %v721 = vadd.f32 %v300, %v720
        %v722 = vpop.f32.mrb[0].mxu0
        %723 = vmatprep.mubr.bf16.mxu0 0
        %724 = vmatmul.mubr.bf16.gmra.mrb[0].mxu0 %v529
        %v725 = vpop.f32.mrb[0].mxu0
        %v726 = vadd.f32 %v300, %v725
        %v727 = vpop.f32.mrb[0].mxu0
        %v728 = vpop.f32.mrb[0].mxu0
        %v729 = vadd.f32 %v300, %v728
        %v730 = vpop.f32.mrb[0].mxu0
        %731 = vmatprep.mubr.bf16.mxu0 0
        %732 = vmatmul.mubr.bf16.gmra.mrb[0].mxu0 %v532
        %v733 = vpop.f32.mrb[0].mxu0
        %v734 = vadd.f32 %v300, %v733
        %v735 = vpop.f32.mrb[0].mxu0
        %v736 = vpop.f32.mrb[0].mxu0
        %v737 = vadd.f32 %v300, %v736
        %v738 = vpop.f32.mrb[0].mxu0
        %739 = vmatprep.mubr.bf16.mxu0 0
        %740 = vmatmul.mubr.bf16.gmra.mrb[0].mxu0 %v535
        %v741 = vpop.f32.mrb[0].mxu0
        %v742 = vadd.f32 %v300, %v741
        %v743 = vpop.f32.mrb[0].mxu0
        %v744 = vpop.f32.mrb[0].mxu0
        %v745 = vadd.f32 %v300, %v744
        %v746 = vpop.f32.mrb[0].mxu0
        %747 = vmatprep.mubr.bf16.mxu0 0
        %748 = vmatmul.mubr.bf16.gmra.mrb[0].mxu0 %v538
        %v749 = vpop.f32.mrb[0].mxu0
        %v750 = vadd.f32 %v300, %v749
        %v751 = vpop.f32.mrb[0].mxu0
        %v752 = vpop.f32.mrb[0].mxu0
        %v753 = vadd.f32 %v300, %v752
        %v754 = vpop.f32.mrb[0].mxu0
        %755 = vmatprep.mubr.bf16.mxu0 0
        %756 = vmatmul.mubr.bf16.gmra.mrb[0].mxu0 %v541
        %v757 = vpop.f32.mrb[0].mxu0
        %v758 = vadd.f32 %v300, %v757
        %v759 = vpop.f32.mrb[0].mxu0
        %v760 = vpop.f32.mrb[0].mxu0
        %v761 = vadd.f32 %v300, %v760
        %v762 = vpop.f32.mrb[0].mxu0
        %763 = vmatprep.mubr.bf16.mxu0 0
        %764 = vmatmul.mubr.bf16.gmra.mrb[0].mxu0 %v544
        %v765 = vpop.f32.mrb[0].mxu0
        %v766 = vadd.f32 %v300, %v765
        %v767 = vpop.f32.mrb[0].mxu0
        %v768 = vpop.f32.mrb[0].mxu0
        %v769 = vadd.f32 %v300, %v768
        %v770 = vpop.f32.mrb[0].mxu0
        %771 = vmatprep.mubr.bf16.mxu0 0
        %772 = vmatmul.mubr.bf16.gmra.mrb[0].mxu0 %v547
        %v773 = vpop.f32.mrb[0].mxu0
        %v774 = vadd.f32 %v300, %v773
        %v775 = vpop.f32.mrb[0].mxu0
        %v776 = vpop.f32.mrb[0].mxu0
        %v777 = vadd.f32 %v300, %v776
        %v778 = vpop.f32.mrb[0].mxu0
        %779 = vmatprep.mubr.bf16.mxu0 0
        %780 = vmatmul.mubr.bf16.gmra.mrb[0].mxu0 %v550
        %v781 = vpop.f32.mrb[0].mxu0
        %v782 = vadd.f32 %v300, %v781
        %v783 = vpop.f32.mrb[0].mxu0
        %v784 = vpop.f32.mrb[0].mxu0
        %v785 = vadd.f32 %v300, %v784
        %v786 = vpop.f32.mrb[0].mxu0
        %787 = vmatprep.mubr.bf16.mxu0 0
        %788 = vmatmul.mubr.bf16.gmra.mrb[0].mxu0 %v553
        %v789 = vpop.f32.mrb[0].mxu0
        %v790 = vadd.f32 %v300, %v789
        %v791 = vpop.f32.mrb[0].mxu0
        %v792 = vpop.f32.mrb[0].mxu0
        %v793 = vadd.f32 %v300, %v792
        %v794 = vpop.f32.mrb[0].mxu0
        %795 = vmatprep.mubr.bf16.mxu0 0
        %796 = vmatmul.mubr.bf16.gmra.mrb[0].mxu0 %v556
        %v797 = vpop.f32.mrb[0].mxu0
        %v798 = vadd.f32 %v300, %v797
        %v799 = vpop.f32.mrb[0].mxu0
        %v800 = vpop.f32.mrb[0].mxu0
        %v801 = vadd.f32 %v300, %v800
        %v802 = vpop.f32.mrb[0].mxu0
        %803 = vmatprep.mubr.bf16.mxu0 0
        %804 = vmatmul.mubr.bf16.gmra.mrb[0].mxu0 %v559
        %v805 = vpop.f32.mrb[0].mxu0
        %v806 = vadd.f32 %v300, %v805
        %v807 = vpop.f32.mrb[0].mxu0
        %v808 = vpop.f32.mrb[0].mxu0
        %v809 = vadd.f32 %v300, %v808
        %v810 = vpop.f32.mrb[0].mxu0
        %811 = vmatprep.mubr.bf16.mxu0 0
        %812 = vmatmul.mubr.bf16.gmra.mrb[0].mxu0 %v562
        %v813 = vpop.f32.mrb[0].mxu0
        %v814 = vadd.f32 %v300, %v813
        %v815 = vpop.f32.mrb[0].mxu0
        %v816 = vpop.f32.mrb[0].mxu0
        %v817 = vadd.f32 %v300, %v816
        %v818 = vpop.f32.mrb[0].mxu0
        %819 = vmatprep.mubr.bf16.mxu0 0
        %820 = vmatmul.mubr.bf16.gmra.mrb[0].mxu0 %v565
        %v821 = vpop.f32.mrb[0].mxu0
        %v822 = vadd.f32 %v300, %v821
        %v823 = vpop.f32.mrb[0].mxu0
        %v824 = vpop.f32.mrb[0].mxu0
        %v825 = vadd.f32 %v300, %v824
        %v826 = vpop.f32.mrb[0].mxu0
        %827 = vmatprep.mubr.bf16.mxu0 0
        %828 = vmatmul.mubr.bf16.gmra.mrb[0].mxu0 %v568
        %v829 = vpop.f32.mrb[0].mxu0
        %v830 = vadd.f32 %v300, %v829
        %v831 = vpop.f32.mrb[0].mxu0
        %v832 = vpop.f32.mrb[0].mxu0
        %v833 = vadd.f32 %v300, %v832
        %v834 = vpop.f32.mrb[0].mxu0
        %835 = vmatprep.mubr.bf16.mxu0 0
        %836 = vmatmul.mubr.bf16.gmra.mrb[0].mxu0 %v571
        %v837 = vpop.f32.mrb[0].mxu0
        %v838 = vadd.f32 %v300, %v837
        %v839 = vpop.f32.mrb[0].mxu0
        %v840 = vpop.f32.mrb[0].mxu0
        %v841 = vadd.f32 %v300, %v840
        %v842 = vpop.f32.mrb[0].mxu0
        %843 = vmatprep.mubr.bf16.mxu0 0
        %844 = vmatmul.mubr.bf16.gmra.mrb[0].mxu0 %v574
        %v845 = vpop.f32.mrb[0].mxu0
        %v846 = vadd.f32 %v300, %v845
        %v847 = vpop.f32.mrb[0].mxu0
        %v848 = vpop.f32.mrb[0].mxu0
        %v849 = vadd.f32 %v300, %v848
        %v850 = vpop.f32.mrb[0].mxu0
        %851 = vmatprep.mubr.bf16.mxu0 0
        %852 = vmatmul.mubr.bf16.gmra.mrb[0].mxu0 %v577
        %v853 = vpop.f32.mrb[0].mxu0
        %v854 = vadd.f32 %v300, %v853
        %v855 = vpop.f32.mrb[0].mxu0
        %v856 = vpop.f32.mrb[0].mxu0
        %v857 = vadd.f32 %v300, %v856
        %v858 = vpop.f32.mrb[0].mxu0
        %859 = vmatprep.mubr.bf16.mxu0 0
        %860 = vmatmul.mubr.bf16.gmra.mrb[0].mxu0 %v580
        %v861 = vpop.f32.mrb[0].mxu0
        %v862 = vadd.f32 %v300, %v861
        %v863 = vpop.f32.mrb[0].mxu0
        %v864 = vpop.f32.mrb[0].mxu0
        %v865 = vadd.f32 %v300, %v864
        %v866 = vpop.f32.mrb[0].mxu0
        %867 = vmatprep.mubr.bf16.mxu0 0
        %868 = vmatmul.mubr.bf16.gmra.mrb[0].mxu0 %v583
        %v869 = vpop.f32.mrb[0].mxu0
        %v870 = vadd.f32 %v300, %v869
        %v871 = vpop.f32.mrb[0].mxu0
        %v872 = vpop.f32.mrb[0].mxu0
        %v873 = vadd.f32 %v300, %v872
        %v874 = vpop.f32.mrb[0].mxu0
        %875 = vmatprep.mubr.bf16.mxu0 0
        %876 = vmatmul.mubr.bf16.gmra.mrb[0].mxu0 %v586
        %v877 = vpop.f32.mrb[0].mxu0
        %v878 = vadd.f32 %v300, %v877
        %v879 = vpop.f32.mrb[0].mxu0
        %v880 = vpop.f32.mrb[0].mxu0
        %v881 = vadd.f32 %v300, %v880
        %v882 = vpop.f32.mrb[0].mxu0
        %883 = vdwg.mxu0
        %v884 = vmax.f32 %v630, 0.0
        %v885 = vmax.f32 %v633, 0.0
        %v886 = vmax.f32 %v638, 0.0
        %v887 = vmax.f32 %v641, 0.0
        %v888 = vmax.f32 %v646, 0.0
        %v889 = vmax.f32 %v649, 0.0
        %v890 = vmax.f32 %v654, 0.0
        %v891 = vmax.f32 %v657, 0.0
        %v892 = vmax.f32 %v662, 0.0
        %v893 = vmax.f32 %v665, 0.0
        %v894 = vmax.f32 %v670, 0.0
        %v895 = vmax.f32 %v673, 0.0
        %v896 = vmax.f32 %v678, 0.0
        %v897 = vmax.f32 %v681, 0.0
        %v898 = vmax.f32 %v686, 0.0
        %v899 = vmax.f32 %v689, 0.0
        %v900 = vmax.f32 %v694, 0.0
        %v901 = vmax.f32 %v697, 0.0
        %v902 = vmax.f32 %v702, 0.0
        %v903 = vmax.f32 %v705, 0.0
        %v904 = vmax.f32 %v710, 0.0
        %v905 = vmax.f32 %v713, 0.0
        %v906 = vmax.f32 %v718, 0.0
        %v907 = vmax.f32 %v721, 0.0
        %v908 = vmax.f32 %v726, 0.0
        %v909 = vmax.f32 %v729, 0.0
        %v910 = vmax.f32 %v734, 0.0
        %v911 = vmax.f32 %v737, 0.0
        %v912 = vmax.f32 %v742, 0.0
        %v913 = vmax.f32 %v745, 0.0
        %v914 = vmax.f32 %v750, 0.0
        %v915 = vmax.f32 %v753, 0.0
        %v916 = vmax.f32 %v758, 0.0
        %v917 = vmax.f32 %v761, 0.0
        %v918 = vmax.f32 %v766, 0.0
        %v919 = vmax.f32 %v769, 0.0
        %v920 = vmax.f32 %v774, 0.0
        %v921 = vmax.f32 %v777, 0.0
        %v922 = vmax.f32 %v782, 0.0
        %v923 = vmax.f32 %v785, 0.0
        %v924 = vmax.f32 %v790, 0.0
        %v925 = vmax.f32 %v793, 0.0
        %v926 = vmax.f32 %v798, 0.0
        %v927 = vmax.f32 %v801, 0.0
        %v928 = vmax.f32 %v806, 0.0
        %v929 = vmax.f32 %v809, 0.0
        %v930 = vmax.f32 %v814, 0.0
        %v931 = vmax.f32 %v817, 0.0
        %v932 = vmax.f32 %v822, 0.0
        %v933 = vmax.f32 %v825, 0.0
        %v934 = vmax.f32 %v830, 0.0
        %v935 = vmax.f32 %v833, 0.0
        %v936 = vmax.f32 %v838, 0.0
        %v937 = vmax.f32 %v841, 0.0
        %v938 = vmax.f32 %v846, 0.0
        %v939 = vmax.f32 %v849, 0.0
        %v940 = vmax.f32 %v854, 0.0
        %v941 = vmax.f32 %v857, 0.0
        %v942 = vmax.f32 %v862, 0.0
        %v943 = vmax.f32 %v865, 0.0
        %v944 = vmax.f32 %v870, 0.0
        %v945 = vmax.f32 %v873, 0.0
        %v946 = vmax.f32 %v878, 0.0
        %v947 = vmax.f32 %v881, 0.0
        %948 = vst [vmem:[%s200] sm:$0xff] %v884
        %949 = vst [vmem:[%s200 + $0x8] sm:$0xff] %v885
        %950 = vst [vmem:[%s200 + $0x10] sm:$0xff] %v886
        %951 = vst [vmem:[%s200 + $0x18] sm:$0xff] %v887
        %952 = vst [vmem:[%s200 + $0x20] sm:$0xff] %v888
        %953 = vst [vmem:[%s200 + $0x28] sm:$0xff] %v889
        %954 = vst [vmem:[%s200 + $0x30] sm:$0xff] %v890
        %955 = vst [vmem:[%s200 + $0x38] sm:$0xff] %v891
        %956 = vst [vmem:[%s200 + $0x40] sm:$0xff] %v892
        %957 = vst [vmem:[%s200 + $0x48] sm:$0xff] %v893
        %958 = vst [vmem:[%s200 + $0x50] sm:$0xff] %v894
        %959 = vst [vmem:[%s200 + $0x58] sm:$0xff] %v895
        %960 = vst [vmem:[%s200 + $0x60] sm:$0xff] %v896
        %961 = vst [vmem:[%s200 + $0x68] sm:$0xff] %v897
        %962 = vst [vmem:[%s200 + $0x70] sm:$0xff] %v898
        %963 = vst [vmem:[%s200 + $0x78] sm:$0xff] %v899
        %964 = vst [vmem:[%s200 + $0x80] sm:$0xff] %v900
        %965 = vst [vmem:[%s200 + $0x88] sm:$0xff] %v901
        %966 = vst [vmem:[%s200 + $0x90] sm:$0xff] %v902
        %967 = vst [vmem:[%s200 + $0x98] sm:$0xff] %v903
        %968 = vst [vmem:[%s200 + $0xa0] sm:$0xff] %v904
        %969 = vst [vmem:[%s200 + $0xa8] sm:$0xff] %v905
        %970 = vst [vmem:[%s200 + $0xb0] sm:$0xff] %v906
        %971 = vst [vmem:[%s200 + $0xb8] sm:$0xff] %v907
        %972 = vst [vmem:[%s200 + $0xc0] sm:$0xff] %v908
        %973 = vst [vmem:[%s200 + $0xc8] sm:$0xff] %v909
        %974 = vst [vmem:[%s200 + $0xd0] sm:$0xff] %v910
        %975 = vst [vmem:[%s200 + $0xd8] sm:$0xff] %v911
        %976 = vst [vmem:[%s200 + $0xe0] sm:$0xff] %v912
        %977 = vst [vmem:[%s200 + $0xe8] sm:$0xff] %v913
        %978 = vst [vmem:[%s200 + $0xf0] sm:$0xff] %v914
        %979 = vst [vmem:[%s200 + $0xf8] sm:$0xff] %v915
        %980 = vst [vmem:[%s200 + $0x100] sm:$0xff] %v916
        %981 = vst [vmem:[%s200 + $0x108] sm:$0xff] %v917
        %982 = vst [vmem:[%s200 + $0x110] sm:$0xff] %v918
        %983 = vst [vmem:[%s200 + $0x118] sm:$0xff] %v919
        %984 = vst [vmem:[%s200 + $0x120] sm:$0xff] %v920
        %985 = vst [vmem:[%s200 + $0x128] sm:$0xff] %v921
        %986 = vst [vmem:[%s200 + $0x130] sm:$0xff] %v922
        %987 = vst [vmem:[%s200 + $0x138] sm:$0xff] %v923
        %988 = vst [vmem:[%s200 + $0x140] sm:$0xff] %v924
        %989 = vst [vmem:[%s200 + $0x148] sm:$0xff] %v925
        %990 = vst [vmem:[%s200 + $0x150] sm:$0xff] %v926
        %991 = vst [vmem:[%s200 + $0x158] sm:$0xff] %v927
        %992 = vst [vmem:[%s200 + $0x160] sm:$0xff] %v928
        %993 = vst [vmem:[%s200 + $0x168] sm:$0xff] %v929
        %994 = vst [vmem:[%s200 + $0x170] sm:$0xff] %v930
        %995 = vst [vmem:[%s200 + $0x178] sm:$0xff] %v931
        %996 = vst [vmem:[%s200 + $0x180] sm:$0xff] %v932
        %997 = vst [vmem:[%s200 + $0x188] sm:$0xff] %v933
        %998 = vst [vmem:[%s200 + $0x190] sm:$0xff] %v934
        %999 = vst [vmem:[%s200 + $0x198] sm:$0xff] %v935
        %1000 = vst [vmem:[%s200 + $0x1a0] sm:$0xff] %v936
        %1001 = vst [vmem:[%s200 + $0x1a8] sm:$0xff] %v937
        %1002 = vst [vmem:[%s200 + $0x1b0] sm:$0xff] %v938
        %1003 = vst [vmem:[%s200 + $0x1b8] sm:$0xff] %v939
        %1004 = vst [vmem:[%s200 + $0x1c0] sm:$0xff] %v940
        %1005 = vst [vmem:[%s200 + $0x1c8] sm:$0xff] %v941
        %1006 = vst [vmem:[%s200 + $0x1d0] sm:$0xff] %v942
        %1007 = vst [vmem:[%s200 + $0x1d8] sm:$0xff] %v943
        %1008 = vst [vmem:[%s200 + $0x1e0] sm:$0xff] %v944
        %1009 = vst [vmem:[%s200 + $0x1e8] sm:$0xff] %v945
        %1010 = vst [vmem:[%s200 + $0x1f0] sm:$0xff] %v946
        %1011 = vst [vmem:[%s200 + $0x1f8] sm:$0xff] %v947
        %s1012 = sand.u32 %s92, 1
        %s1013 = sand.u32 %s92, 1
        %s1014 = smul.addr %s1013, 512
        %s1015 = scalar_lea.vmem [#allocation6], %s1014
        // Predicated region
        $region41: #{forward.9} parent=31 // pred_check
          %p1016 = pneg %p102
        $region42: #{forward.9} parent=31 // pred_check_branch
          %1018 = sbr.rel (%p1016) target = $region44
        $region43: #{forward.9} parent=31 // pred_region
          %s1019 = smul.u32 64, %s16
          %s1020 = ssub.s32 111, %s1019
          %p1021 = scmp.lt.s32.totalorder %s1020, 64
          %s1022 = scalar_select %p1021, %s1020, 64
          %s1023 = smul.u32 128, %s1022
          %p1024 = scmp.ne.s32.totalorder 0, %s1023
          %s1025 = smul.addr %s1019, 8
          %s1026 = scalar_lea.vmem %s3, %s1025
          // Predicated region
          $region45: #{forward.9} parent=43 // pred_check
            %p1027 = pneg %p1024
          $region46: #{forward.9} parent=43 // pred_check_branch
            %1029 = sbr.rel (%p1027) target = $region48
          $region47: #{forward.9} parent=43 // pred_region
            // Predicated region
            $region49: #{forward.9} parent=47 // pred_check
              _
            $region50: #{forward.9} parent=47 // pred_check_branch
              %1031 = sbr.rel (0) target = $region52
            $region51: #{forward.9} parent=47 // pred_region
              // Predicated region
              $region71: #{forward.9} parent=51 // pred_check
                _
              $region72: #{forward.9} parent=51 // pred_check_branch
                %1206 = sbr.rel (0) target = $region74
              $region73: #{forward.9} parent=51 // pred_region
                %s1207 = sshrl.u32 %s1022, 6
                // While loop
                $region75: #{forward.9} parent=73 // loop_pre_header
                  _
                $region76: #{forward.9} parent=73 // loop_header
                  %s1209 = sphi 0, %s1211
                  %p1210 = scmp.ge.s32.totalorder %s1209, %s1207
                  %s1214 = sphi 0, %s1347
                  %s1215 = sphi %s1015, %s1350
                  %s1216 = sphi %s1026, %s1351
                $region77: #{forward.9} parent=73 // loop_header_branch
                  %1213 = sbr.rel (%p1210) target = $region81
                $region78: #{forward.9} parent=73 // loop_body
                  %v1217 = vld [vmem:[%s1215] sm:$0xff]
                  %1218 = vst [vmem:[%s1216] sm:$0xff] %v1217
                  %v1219 = vld [vmem:[%s1215 + $0x8] sm:$0xff]
                  %1220 = vst [vmem:[%s1216 + $0x8] sm:$0xff] %v1219
                  %v1221 = vld [vmem:[%s1215 + $0x10] sm:$0xff]
                  %1222 = vst [vmem:[%s1216 + $0x10] sm:$0xff] %v1221
                  %v1223 = vld [vmem:[%s1215 + $0x18] sm:$0xff]
                  %1224 = vst [vmem:[%s1216 + $0x18] sm:$0xff] %v1223
                  %v1225 = vld [vmem:[%s1215 + $0x20] sm:$0xff]
                  %1226 = vst [vmem:[%s1216 + $0x20] sm:$0xff] %v1225
                  %v1227 = vld [vmem:[%s1215 + $0x28] sm:$0xff]
                  %1228 = vst [vmem:[%s1216 + $0x28] sm:$0xff] %v1227
                  %v1229 = vld [vmem:[%s1215 + $0x30] sm:$0xff]
                  %1230 = vst [vmem:[%s1216 + $0x30] sm:$0xff] %v1229
                  %v1231 = vld [vmem:[%s1215 + $0x38] sm:$0xff]
                  %1232 = vst [vmem:[%s1216 + $0x38] sm:$0xff] %v1231
                  %v1233 = vld [vmem:[%s1215 + $0x40] sm:$0xff]
                  %1234 = vst [vmem:[%s1216 + $0x40] sm:$0xff] %v1233
                  %v1235 = vld [vmem:[%s1215 + $0x48] sm:$0xff]
                  %1236 = vst [vmem:[%s1216 + $0x48] sm:$0xff] %v1235
                  %v1237 = vld [vmem:[%s1215 + $0x50] sm:$0xff]
                  %1238 = vst [vmem:[%s1216 + $0x50] sm:$0xff] %v1237
                  %v1239 = vld [vmem:[%s1215 + $0x58] sm:$0xff]
                  %1240 = vst [vmem:[%s1216 + $0x58] sm:$0xff] %v1239
                  %v1241 = vld [vmem:[%s1215 + $0x60] sm:$0xff]
                  %1242 = vst [vmem:[%s1216 + $0x60] sm:$0xff] %v1241
                  %v1243 = vld [vmem:[%s1215 + $0x68] sm:$0xff]
                  %1244 = vst [vmem:[%s1216 + $0x68] sm:$0xff] %v1243
                  %v1245 = vld [vmem:[%s1215 + $0x70] sm:$0xff]
                  %1246 = vst [vmem:[%s1216 + $0x70] sm:$0xff] %v1245
                  %v1247 = vld [vmem:[%s1215 + $0x78] sm:$0xff]
                  %1248 = vst [vmem:[%s1216 + $0x78] sm:$0xff] %v1247
                  %v1249 = vld [vmem:[%s1215 + $0x80] sm:$0xff]
                  %1250 = vst [vmem:[%s1216 + $0x80] sm:$0xff] %v1249
                  %v1251 = vld [vmem:[%s1215 + $0x88] sm:$0xff]
                  %1252 = vst [vmem:[%s1216 + $0x88] sm:$0xff] %v1251
                  %v1253 = vld [vmem:[%s1215 + $0x90] sm:$0xff]
                  %1254 = vst [vmem:[%s1216 + $0x90] sm:$0xff] %v1253
                  %v1255 = vld [vmem:[%s1215 + $0x98] sm:$0xff]
                  %1256 = vst [vmem:[%s1216 + $0x98] sm:$0xff] %v1255
                  %v1257 = vld [vmem:[%s1215 + $0xa0] sm:$0xff]
                  %1258 = vst [vmem:[%s1216 + $0xa0] sm:$0xff] %v1257
                  %v1259 = vld [vmem:[%s1215 + $0xa8] sm:$0xff]
                  %1260 = vst [vmem:[%s1216 + $0xa8] sm:$0xff] %v1259
                  %v1261 = vld [vmem:[%s1215 + $0xb0] sm:$0xff]
                  %1262 = vst [vmem:[%s1216 + $0xb0] sm:$0xff] %v1261
                  %v1263 = vld [vmem:[%s1215 + $0xb8] sm:$0xff]
                  %1264 = vst [vmem:[%s1216 + $0xb8] sm:$0xff] %v1263
                  %v1265 = vld [vmem:[%s1215 + $0xc0] sm:$0xff]
                  %1266 = vst [vmem:[%s1216 + $0xc0] sm:$0xff] %v1265
                  %v1267 = vld [vmem:[%s1215 + $0xc8] sm:$0xff]
                  %1268 = vst [vmem:[%s1216 + $0xc8] sm:$0xff] %v1267
                  %v1269 = vld [vmem:[%s1215 + $0xd0] sm:$0xff]
                  %1270 = vst [vmem:[%s1216 + $0xd0] sm:$0xff] %v1269
                  %v1271 = vld [vmem:[%s1215 + $0xd8] sm:$0xff]
                  %1272 = vst [vmem:[%s1216 + $0xd8] sm:$0xff] %v1271
                  %v1273 = vld [vmem:[%s1215 + $0xe0] sm:$0xff]
                  %1274 = vst [vmem:[%s1216 + $0xe0] sm:$0xff] %v1273
                  %v1275 = vld [vmem:[%s1215 + $0xe8] sm:$0xff]
                  %1276 = vst [vmem:[%s1216 + $0xe8] sm:$0xff] %v1275
                  %v1277 = vld [vmem:[%s1215 + $0xf0] sm:$0xff]
                  %1278 = vst [vmem:[%s1216 + $0xf0] sm:$0xff] %v1277
                  %v1279 = vld [vmem:[%s1215 + $0xf8] sm:$0xff]
                  %1280 = vst [vmem:[%s1216 + $0xf8] sm:$0xff] %v1279
                  %v1281 = vld [vmem:[%s1215 + $0x100] sm:$0xff]
                  %1282 = vst [vmem:[%s1216 + $0x100] sm:$0xff] %v1281
                  %v1283 = vld [vmem:[%s1215 + $0x108] sm:$0xff]
                  %1284 = vst [vmem:[%s1216 + $0x108] sm:$0xff] %v1283
                  %v1285 = vld [vmem:[%s1215 + $0x110] sm:$0xff]
                  %1286 = vst [vmem:[%s1216 + $0x110] sm:$0xff] %v1285
                  %v1287 = vld [vmem:[%s1215 + $0x118] sm:$0xff]
                  %1288 = vst [vmem:[%s1216 + $0x118] sm:$0xff] %v1287
                  %v1289 = vld [vmem:[%s1215 + $0x120] sm:$0xff]
                  %1290 = vst [vmem:[%s1216 + $0x120] sm:$0xff] %v1289
                  %v1291 = vld [vmem:[%s1215 + $0x128] sm:$0xff]
                  %1292 = vst [vmem:[%s1216 + $0x128] sm:$0xff] %v1291
                  %v1293 = vld [vmem:[%s1215 + $0x130] sm:$0xff]
                  %1294 = vst [vmem:[%s1216 + $0x130] sm:$0xff] %v1293
                  %v1295 = vld [vmem:[%s1215 + $0x138] sm:$0xff]
                  %1296 = vst [vmem:[%s1216 + $0x138] sm:$0xff] %v1295
                  %v1297 = vld [vmem:[%s1215 + $0x140] sm:$0xff]
                  %1298 = vst [vmem:[%s1216 + $0x140] sm:$0xff] %v1297
                  %v1299 = vld [vmem:[%s1215 + $0x148] sm:$0xff]
                  %1300 = vst [vmem:[%s1216 + $0x148] sm:$0xff] %v1299
                  %v1301 = vld [vmem:[%s1215 + $0x150] sm:$0xff]
                  %1302 = vst [vmem:[%s1216 + $0x150] sm:$0xff] %v1301
                  %v1303 = vld [vmem:[%s1215 + $0x158] sm:$0xff]
                  %1304 = vst [vmem:[%s1216 + $0x158] sm:$0xff] %v1303
                  %v1305 = vld [vmem:[%s1215 + $0x160] sm:$0xff]
                  %1306 = vst [vmem:[%s1216 + $0x160] sm:$0xff] %v1305
                  %v1307 = vld [vmem:[%s1215 + $0x168] sm:$0xff]
                  %1308 = vst [vmem:[%s1216 + $0x168] sm:$0xff] %v1307
                  %v1309 = vld [vmem:[%s1215 + $0x170] sm:$0xff]
                  %1310 = vst [vmem:[%s1216 + $0x170] sm:$0xff] %v1309
                  %v1311 = vld [vmem:[%s1215 + $0x178] sm:$0xff]
                  %1312 = vst [vmem:[%s1216 + $0x178] sm:$0xff] %v1311
                  %v1313 = vld [vmem:[%s1215 + $0x180] sm:$0xff]
                  %1314 = vst [vmem:[%s1216 + $0x180] sm:$0xff] %v1313
                  %v1315 = vld [vmem:[%s1215 + $0x188] sm:$0xff]
                  %1316 = vst [vmem:[%s1216 + $0x188] sm:$0xff] %v1315
                  %v1317 = vld [vmem:[%s1215 + $0x190] sm:$0xff]
                  %1318 = vst [vmem:[%s1216 + $0x190] sm:$0xff] %v1317
                  %v1319 = vld [vmem:[%s1215 + $0x198] sm:$0xff]
                  %1320 = vst [vmem:[%s1216 + $0x198] sm:$0xff] %v1319
                  %v1321 = vld [vmem:[%s1215 + $0x1a0] sm:$0xff]
                  %1322 = vst [vmem:[%s1216 + $0x1a0] sm:$0xff] %v1321
                  %v1323 = vld [vmem:[%s1215 + $0x1a8] sm:$0xff]
                  %1324 = vst [vmem:[%s1216 + $0x1a8] sm:$0xff] %v1323
                  %v1325 = vld [vmem:[%s1215 + $0x1b0] sm:$0xff]
                  %1326 = vst [vmem:[%s1216 + $0x1b0] sm:$0xff] %v1325
                  %v1327 = vld [vmem:[%s1215 + $0x1b8] sm:$0xff]
                  %1328 = vst [vmem:[%s1216 + $0x1b8] sm:$0xff] %v1327
                  %v1329 = vld [vmem:[%s1215 + $0x1c0] sm:$0xff]
                  %1330 = vst [vmem:[%s1216 + $0x1c0] sm:$0xff] %v1329
                  %v1331 = vld [vmem:[%s1215 + $0x1c8] sm:$0xff]
                  %1332 = vst [vmem:[%s1216 + $0x1c8] sm:$0xff] %v1331
                  %v1333 = vld [vmem:[%s1215 + $0x1d0] sm:$0xff]
                  %1334 = vst [vmem:[%s1216 + $0x1d0] sm:$0xff] %v1333
                  %v1335 = vld [vmem:[%s1215 + $0x1d8] sm:$0xff]
                  %1336 = vst [vmem:[%s1216 + $0x1d8] sm:$0xff] %v1335
                  %v1337 = vld [vmem:[%s1215 + $0x1e0] sm:$0xff]
                  %1338 = vst [vmem:[%s1216 + $0x1e0] sm:$0xff] %v1337
                  %v1339 = vld [vmem:[%s1215 + $0x1e8] sm:$0xff]
                  %1340 = vst [vmem:[%s1216 + $0x1e8] sm:$0xff] %v1339
                  %v1341 = vld [vmem:[%s1215 + $0x1f0] sm:$0xff]
                  %1342 = vst [vmem:[%s1216 + $0x1f0] sm:$0xff] %v1341
                  %v1343 = vld [vmem:[%s1215 + $0x1f8] sm:$0xff]
                  %1344 = vst [vmem:[%s1216 + $0x1f8] sm:$0xff] %v1343
                  %s1345 = sadd.s32 1, %s1214
                  %p1346 = scmp.ge.s32.totalorder %s1345, %s1207
                  %s1347 = scalar_select %p1346, 0, %s1345
                  %s1348 = smul.u32 %s1347, 512
                  %s1349 = smul.u32 %s1347, 512
                  %s1350 = scalar_lea.vmem %s1015, %s1348 [#allocation6]
                  %s1351 = scalar_lea.vmem %s1026, %s1349
                $region79: #{forward.9} parent=73 // loop_footer
                  %s1211 = sadd.s32 %s1209, 1
                $region80: #{forward.9} parent=73 // loop_footer_branch
                  %1208 = sbr.rel target = $region76
                $region81: #{forward.9} parent=73 // loop_exit
                  _
                %s1352 = sshrl.u32 %s1022, 6
                %s1353 = sand.u32 %s1022, 63
                %s1354 = smul.u32 %s1352, 64
                %s1355 = smul.u32 8, %s1354
                %s1356 = scalar_lea.vmem %s1015, %s1355 [#allocation6]
                %s1357 = smul.u32 8, %s1354
                %s1358 = scalar_lea.vmem %s1026, %s1357
                // While loop
                $region82: #{forward.9} parent=73 // loop_pre_header
                  _
                $region83: #{forward.9} parent=73 // loop_header
                  %s1360 = sphi 0, %s1362
                  %p1361 = scmp.ge.s32.totalorder %s1360, %s1353
                  %s1365 = sphi 0, %s1372
                  %s1366 = sphi %s1356, %s1375
                  %s1367 = sphi %s1358, %s1376
                $region84: #{forward.9} parent=73 // loop_header_branch
                  %1364 = sbr.rel (%p1361) target = $region88
                $region85: #{forward.9} parent=73 // loop_body
                  %v1368 = vld [vmem:[%s1366] sm:$0xff]
                  %1369 = vst [vmem:[%s1367] sm:$0xff] %v1368
                  %s1370 = sadd.s32 1, %s1365
                  %p1371 = scmp.ge.s32.totalorder %s1370, %s1353
                  %s1372 = scalar_select %p1371, 0, %s1370
                  %s1373 = smul.u32 %s1372, 8
                  %s1374 = smul.u32 %s1372, 8
                  %s1375 = scalar_lea.vmem %s1356, %s1373 [#allocation6]
                  %s1376 = scalar_lea.vmem %s1358, %s1374
                $region86: #{forward.9} parent=73 // loop_footer
                  %s1362 = sadd.s32 %s1360, 1
                $region87: #{forward.9} parent=73 // loop_footer_branch
                  %1359 = sbr.rel target = $region83
                $region88: #{forward.9} parent=73 // loop_exit
                  _
              $region74: #{forward.9} parent=51 // pred_fallthru
                _
              // Predicated region
              $region89: #{forward.9} parent=51 // pred_check
                _
              $region90: #{forward.9} parent=51 // pred_check_branch
                %1378 = sbr.rel target = $region92
              $region91: #{forward.9} parent=51 // pred_region
                _
              $region92: #{forward.9} parent=51 // pred_fallthru
                _
            $region52: #{forward.9} parent=47 // pred_fallthru
              _
            // Predicated region
            $region53: #{forward.9} parent=47 // pred_check
              _
            $region54: #{forward.9} parent=47 // pred_check_branch
              %1033 = sbr.rel target = $region56
            $region55: #{forward.9} parent=47 // pred_region
              %s1035 = sshrl.u32 %s1022, 6
              // While loop
              $region57: #{forward.9} parent=55 // loop_pre_header
                _
              $region58: #{forward.9} parent=55 // loop_header
                %s1037 = sphi 0, %s1039
                %p1038 = scmp.ge.s32.totalorder %s1037, %s1035
                %s1042 = sphi 0, %s1175
                %s1043 = sphi %s1015, %s1178
                %s1044 = sphi %s1026, %s1179
              $region59: #{forward.9} parent=55 // loop_header_branch
                %1041 = sbr.rel (%p1038) target = $region63
              $region60: #{forward.9} parent=55 // loop_body
                %v1045 = vld [vmem:[%s1043] sm:$0xff]
                %1046 = vst [vmem:[%s1044] sm:$0xff] %v1045
                %v1047 = vld [vmem:[%s1043 + $0x8] sm:$0xff]
                %1048 = vst [vmem:[%s1044 + $0x8] sm:$0xff] %v1047
                %v1049 = vld [vmem:[%s1043 + $0x10] sm:$0xff]
                %1050 = vst [vmem:[%s1044 + $0x10] sm:$0xff] %v1049
                %v1051 = vld [vmem:[%s1043 + $0x18] sm:$0xff]
                %1052 = vst [vmem:[%s1044 + $0x18] sm:$0xff] %v1051
                %v1053 = vld [vmem:[%s1043 + $0x20] sm:$0xff]
                %1054 = vst [vmem:[%s1044 + $0x20] sm:$0xff] %v1053
                %v1055 = vld [vmem:[%s1043 + $0x28] sm:$0xff]
                %1056 = vst [vmem:[%s1044 + $0x28] sm:$0xff] %v1055
                %v1057 = vld [vmem:[%s1043 + $0x30] sm:$0xff]
                %1058 = vst [vmem:[%s1044 + $0x30] sm:$0xff] %v1057
                %v1059 = vld [vmem:[%s1043 + $0x38] sm:$0xff]
                %1060 = vst [vmem:[%s1044 + $0x38] sm:$0xff] %v1059
                %v1061 = vld [vmem:[%s1043 + $0x40] sm:$0xff]
                %1062 = vst [vmem:[%s1044 + $0x40] sm:$0xff] %v1061
                %v1063 = vld [vmem:[%s1043 + $0x48] sm:$0xff]
                %1064 = vst [vmem:[%s1044 + $0x48] sm:$0xff] %v1063
                %v1065 = vld [vmem:[%s1043 + $0x50] sm:$0xff]
                %1066 = vst [vmem:[%s1044 + $0x50] sm:$0xff] %v1065
                %v1067 = vld [vmem:[%s1043 + $0x58] sm:$0xff]
                %1068 = vst [vmem:[%s1044 + $0x58] sm:$0xff] %v1067
                %v1069 = vld [vmem:[%s1043 + $0x60] sm:$0xff]
                %1070 = vst [vmem:[%s1044 + $0x60] sm:$0xff] %v1069
                %v1071 = vld [vmem:[%s1043 + $0x68] sm:$0xff]
                %1072 = vst [vmem:[%s1044 + $0x68] sm:$0xff] %v1071
                %v1073 = vld [vmem:[%s1043 + $0x70] sm:$0xff]
                %1074 = vst [vmem:[%s1044 + $0x70] sm:$0xff] %v1073
                %v1075 = vld [vmem:[%s1043 + $0x78] sm:$0xff]
                %1076 = vst [vmem:[%s1044 + $0x78] sm:$0xff] %v1075
                %v1077 = vld [vmem:[%s1043 + $0x80] sm:$0xff]
                %1078 = vst [vmem:[%s1044 + $0x80] sm:$0xff] %v1077
                %v1079 = vld [vmem:[%s1043 + $0x88] sm:$0xff]
                %1080 = vst [vmem:[%s1044 + $0x88] sm:$0xff] %v1079
                %v1081 = vld [vmem:[%s1043 + $0x90] sm:$0xff]
                %1082 = vst [vmem:[%s1044 + $0x90] sm:$0xff] %v1081
                %v1083 = vld [vmem:[%s1043 + $0x98] sm:$0xff]
                %1084 = vst [vmem:[%s1044 + $0x98] sm:$0xff] %v1083
                %v1085 = vld [vmem:[%s1043 + $0xa0] sm:$0xff]
                %1086 = vst [vmem:[%s1044 + $0xa0] sm:$0xff] %v1085
                %v1087 = vld [vmem:[%s1043 + $0xa8] sm:$0xff]
                %1088 = vst [vmem:[%s1044 + $0xa8] sm:$0xff] %v1087
                %v1089 = vld [vmem:[%s1043 + $0xb0] sm:$0xff]
                %1090 = vst [vmem:[%s1044 + $0xb0] sm:$0xff] %v1089
                %v1091 = vld [vmem:[%s1043 + $0xb8] sm:$0xff]
                %1092 = vst [vmem:[%s1044 + $0xb8] sm:$0xff] %v1091
                %v1093 = vld [vmem:[%s1043 + $0xc0] sm:$0xff]
                %1094 = vst [vmem:[%s1044 + $0xc0] sm:$0xff] %v1093
                %v1095 = vld [vmem:[%s1043 + $0xc8] sm:$0xff]
                %1096 = vst [vmem:[%s1044 + $0xc8] sm:$0xff] %v1095
                %v1097 = vld [vmem:[%s1043 + $0xd0] sm:$0xff]
                %1098 = vst [vmem:[%s1044 + $0xd0] sm:$0xff] %v1097
                %v1099 = vld [vmem:[%s1043 + $0xd8] sm:$0xff]
                %1100 = vst [vmem:[%s1044 + $0xd8] sm:$0xff] %v1099
                %v1101 = vld [vmem:[%s1043 + $0xe0] sm:$0xff]
                %1102 = vst [vmem:[%s1044 + $0xe0] sm:$0xff] %v1101
                %v1103 = vld [vmem:[%s1043 + $0xe8] sm:$0xff]
                %1104 = vst [vmem:[%s1044 + $0xe8] sm:$0xff] %v1103
                %v1105 = vld [vmem:[%s1043 + $0xf0] sm:$0xff]
                %1106 = vst [vmem:[%s1044 + $0xf0] sm:$0xff] %v1105
                %v1107 = vld [vmem:[%s1043 + $0xf8] sm:$0xff]
                %1108 = vst [vmem:[%s1044 + $0xf8] sm:$0xff] %v1107
                %v1109 = vld [vmem:[%s1043 + $0x100] sm:$0xff]
                %1110 = vst [vmem:[%s1044 + $0x100] sm:$0xff] %v1109
                %v1111 = vld [vmem:[%s1043 + $0x108] sm:$0xff]
                %1112 = vst [vmem:[%s1044 + $0x108] sm:$0xff] %v1111
                %v1113 = vld [vmem:[%s1043 + $0x110] sm:$0xff]
                %1114 = vst [vmem:[%s1044 + $0x110] sm:$0xff] %v1113
                %v1115 = vld [vmem:[%s1043 + $0x118] sm:$0xff]
                %1116 = vst [vmem:[%s1044 + $0x118] sm:$0xff] %v1115
                %v1117 = vld [vmem:[%s1043 + $0x120] sm:$0xff]
                %1118 = vst [vmem:[%s1044 + $0x120] sm:$0xff] %v1117
                %v1119 = vld [vmem:[%s1043 + $0x128] sm:$0xff]
                %1120 = vst [vmem:[%s1044 + $0x128] sm:$0xff] %v1119
                %v1121 = vld [vmem:[%s1043 + $0x130] sm:$0xff]
                %1122 = vst [vmem:[%s1044 + $0x130] sm:$0xff] %v1121
                %v1123 = vld [vmem:[%s1043 + $0x138] sm:$0xff]
                %1124 = vst [vmem:[%s1044 + $0x138] sm:$0xff] %v1123
                %v1125 = vld [vmem:[%s1043 + $0x140] sm:$0xff]
                %1126 = vst [vmem:[%s1044 + $0x140] sm:$0xff] %v1125
                %v1127 = vld [vmem:[%s1043 + $0x148] sm:$0xff]
                %1128 = vst [vmem:[%s1044 + $0x148] sm:$0xff] %v1127
                %v1129 = vld [vmem:[%s1043 + $0x150] sm:$0xff]
                %1130 = vst [vmem:[%s1044 + $0x150] sm:$0xff] %v1129
                %v1131 = vld [vmem:[%s1043 + $0x158] sm:$0xff]
                %1132 = vst [vmem:[%s1044 + $0x158] sm:$0xff] %v1131
                %v1133 = vld [vmem:[%s1043 + $0x160] sm:$0xff]
                %1134 = vst [vmem:[%s1044 + $0x160] sm:$0xff] %v1133
                %v1135 = vld [vmem:[%s1043 + $0x168] sm:$0xff]
                %1136 = vst [vmem:[%s1044 + $0x168] sm:$0xff] %v1135
                %v1137 = vld [vmem:[%s1043 + $0x170] sm:$0xff]
                %1138 = vst [vmem:[%s1044 + $0x170] sm:$0xff] %v1137
                %v1139 = vld [vmem:[%s1043 + $0x178] sm:$0xff]
                %1140 = vst [vmem:[%s1044 + $0x178] sm:$0xff] %v1139
                %v1141 = vld [vmem:[%s1043 + $0x180] sm:$0xff]
                %1142 = vst [vmem:[%s1044 + $0x180] sm:$0xff] %v1141
                %v1143 = vld [vmem:[%s1043 + $0x188] sm:$0xff]
                %1144 = vst [vmem:[%s1044 + $0x188] sm:$0xff] %v1143
                %v1145 = vld [vmem:[%s1043 + $0x190] sm:$0xff]
                %1146 = vst [vmem:[%s1044 + $0x190] sm:$0xff] %v1145
                %v1147 = vld [vmem:[%s1043 + $0x198] sm:$0xff]
                %1148 = vst [vmem:[%s1044 + $0x198] sm:$0xff] %v1147
                %v1149 = vld [vmem:[%s1043 + $0x1a0] sm:$0xff]
                %1150 = vst [vmem:[%s1044 + $0x1a0] sm:$0xff] %v1149
                %v1151 = vld [vmem:[%s1043 + $0x1a8] sm:$0xff]
                %1152 = vst [vmem:[%s1044 + $0x1a8] sm:$0xff] %v1151
                %v1153 = vld [vmem:[%s1043 + $0x1b0] sm:$0xff]
                %1154 = vst [vmem:[%s1044 + $0x1b0] sm:$0xff] %v1153
                %v1155 = vld [vmem:[%s1043 + $0x1b8] sm:$0xff]
                %1156 = vst [vmem:[%s1044 + $0x1b8] sm:$0xff] %v1155
                %v1157 = vld [vmem:[%s1043 + $0x1c0] sm:$0xff]
                %1158 = vst [vmem:[%s1044 + $0x1c0] sm:$0xff] %v1157
                %v1159 = vld [vmem:[%s1043 + $0x1c8] sm:$0xff]
                %1160 = vst [vmem:[%s1044 + $0x1c8] sm:$0xff] %v1159
                %v1161 = vld [vmem:[%s1043 + $0x1d0] sm:$0xff]
                %1162 = vst [vmem:[%s1044 + $0x1d0] sm:$0xff] %v1161
                %v1163 = vld [vmem:[%s1043 + $0x1d8] sm:$0xff]
                %1164 = vst [vmem:[%s1044 + $0x1d8] sm:$0xff] %v1163
                %v1165 = vld [vmem:[%s1043 + $0x1e0] sm:$0xff]
                %1166 = vst [vmem:[%s1044 + $0x1e0] sm:$0xff] %v1165
                %v1167 = vld [vmem:[%s1043 + $0x1e8] sm:$0xff]
                %1168 = vst [vmem:[%s1044 + $0x1e8] sm:$0xff] %v1167
                %v1169 = vld [vmem:[%s1043 + $0x1f0] sm:$0xff]
                %1170 = vst [vmem:[%s1044 + $0x1f0] sm:$0xff] %v1169
                %v1171 = vld [vmem:[%s1043 + $0x1f8] sm:$0xff]
                %1172 = vst [vmem:[%s1044 + $0x1f8] sm:$0xff] %v1171
                %s1173 = sadd.s32 1, %s1042
                %p1174 = scmp.ge.s32.totalorder %s1173, %s1035
                %s1175 = scalar_select %p1174, 0, %s1173
                %s1176 = smul.u32 %s1175, 512
                %s1177 = smul.u32 %s1175, 512
                %s1178 = scalar_lea.vmem %s1015, %s1176 [#allocation6]
                %s1179 = scalar_lea.vmem %s1026, %s1177
              $region61: #{forward.9} parent=55 // loop_footer
                %s1039 = sadd.s32 %s1037, 1
              $region62: #{forward.9} parent=55 // loop_footer_branch
                %1036 = sbr.rel target = $region58
              $region63: #{forward.9} parent=55 // loop_exit
                _
              %s1180 = sshrl.u32 %s1022, 6
              %s1181 = sand.u32 %s1022, 63
              %s1182 = smul.u32 %s1180, 64
              %s1183 = smul.u32 8, %s1182
              %s1184 = scalar_lea.vmem %s1015, %s1183 [#allocation6]
              %s1185 = smul.u32 8, %s1182
              %s1186 = scalar_lea.vmem %s1026, %s1185
              // While loop
              $region64: #{forward.9} parent=55 // loop_pre_header
                _
              $region65: #{forward.9} parent=55 // loop_header
                %s1188 = sphi 0, %s1190
                %p1189 = scmp.ge.s32.totalorder %s1188, %s1181
                %s1193 = sphi 0, %s1200
                %s1194 = sphi %s1184, %s1203
                %s1195 = sphi %s1186, %s1204
              $region66: #{forward.9} parent=55 // loop_header_branch
                %1192 = sbr.rel (%p1189) target = $region70
              $region67: #{forward.9} parent=55 // loop_body
                %v1196 = vld [vmem:[%s1194] sm:$0xff]
                %1197 = vst [vmem:[%s1195] sm:$0xff] %v1196
                %s1198 = sadd.s32 1, %s1193
                %p1199 = scmp.ge.s32.totalorder %s1198, %s1181
                %s1200 = scalar_select %p1199, 0, %s1198
                %s1201 = smul.u32 %s1200, 8
                %s1202 = smul.u32 %s1200, 8
                %s1203 = scalar_lea.vmem %s1184, %s1201 [#allocation6]
                %s1204 = scalar_lea.vmem %s1186, %s1202
              $region68: #{forward.9} parent=55 // loop_footer
                %s1190 = sadd.s32 %s1188, 1
              $region69: #{forward.9} parent=55 // loop_footer_branch
                %1187 = sbr.rel target = $region65
              $region70: #{forward.9} parent=55 // loop_exit
                _
            $region56: #{forward.9} parent=47 // pred_fallthru
              _
          $region48: #{forward.9} parent=43 // pred_fallthru
            _
          %1379 = vnop
        $region44: #{forward.9} parent=31 // pred_fallthru
          _
      $region32: #{forward.9} parent=5 // pred_fallthru
        _
      %p1380 = scmp.le.s32.totalorder 2, %s11
      // Predicated region
      $region93: #{forward.9} parent=5 // pred_check
        %p1381 = pneg %p1380
      $region94: #{forward.9} parent=5 // pred_check_branch
        %1383 = sbr.rel (%p1381) target = $region96
      $region95: #{forward.9} parent=5 // pred_region
        %s1384 = ssub.s32 %s11, 2
        // Predicated region
        $region97: #{forward.9} parent=95 // pred_check
          %p1385 = pneg %p108
        $region98: #{forward.9} parent=95 // pred_check_branch
          %1387 = sbr.rel (%p1385) target = $region100
        $region99: #{forward.9} parent=95 // pred_region
          %s1388 = sand.u32 %s93, 1
          %s1389 = sand.u32 %s93, 1
          %s1390 = smul.addr %s1389, 512
          %s1391 = scalar_lea.vmem [#allocation6], %s1390
        $region100: #{forward.9} parent=95 // pred_fallthru
          _
      $region96: #{forward.9} parent=5 // pred_fallthru
        _
    $region6: #{forward.9} parent=1 // loop_footer
      %s15 = sadd.s32 1, %s11
    $region7: #{forward.9} parent=1 // loop_footer_branch
      %10 = sbr.rel target = $region3
    $region8: #{forward.9} parent=1 // loop_exit
      _
    %1392 = vsyncpa [#allocation3], 1
    %s1393 = scalar_lea.sflag [#allocation3], 1
    %1394 = vsyncpa %s1393, 1
    %1395 = vsyncpa [#allocation5], 1

// kernel: forward.10
$region0: #{forward.10}
  #allocation0 [shape = 'u32[]', space=smem, size = 0x4, offset = 0x4, fixed_abs, tag = 'smem constant byte address 0x4 - core index']
  #allocation1 [shape = 'u32[144,128]{1,0:T(1,128)}', space=vmem, size = 0x12000, scoped, tag = 'internal scratch']
  %s0 = inlined_call_operand.vmem [shape: bf16[200,27], index: 0, kind: input, shape index: {}]
  %s1 = inlined_call_operand.hbm [shape: bf16[27,128], index: 1, kind: input, shape index: {}]
  %s2 = inlined_call_operand.hbm [shape: f32[1,128], index: 2, kind: input, shape index: {}]
  %s3 = inlined_call_operand.vmem [shape: f32[200,128], index: 3, kind: output, shape index: {}]
  %s4 = sld [smem:[#allocation0]]
  $region30: #{forward.10} parent=0
    _
  %s6 = ssub.s32 1, %s4
  %s7 = scalar_select 0, %s6, %s4
  $region1: #{forward.10} parent=0
    #allocation2 [shape = 'u8[8192]{0}', space=vmem, size = 0x2000, scoped, tag = 'input window, operand 1, single buffered']
    #allocation3 [shape = 's32[1]{0}', space=sflag, size = 0x4, scoped, tag = 'scoped memory for forward.10']
    #allocation4 [shape = 'u8[512]{0}', space=vmem, size = 0x400, scoped, tag = 'input window, operand 2, single buffered']
    #allocation5 [shape = 's32[1]{0}', space=sflag, size = 0x4, scoped, tag = 'scoped memory for forward.10']
    %8 = vsyncpa [#allocation3], 0
    %9 = vsyncpa [#allocation5], 0
    // Predicated region
    $region2: #{forward.10} parent=1 // pred_check
      _
    $region3: #{forward.10} parent=1 // pred_check_branch
      %11 = sbr.rel (0) target = $region5
    $region4: #{forward.10} parent=1 // pred_region
      _
    $region5: #{forward.10} parent=1 // pred_fallthru
      _
    // Predicated region
    $region6: #{forward.10} parent=1 // pred_check
      _
    $region7: #{forward.10} parent=1 // pred_check_branch
      %13 = sbr.rel (0) target = $region9
    $region8: #{forward.10} parent=1 // pred_region
      %s15 = ssub.s32 256, 256
      %16 = vsyncadd [#allocation3], %s15
      %s17 = sshll.u32 [#allocation2], 4
      %s18 = int_to_ptr.vmem [resolvable:$true] %s17
      %23 = dma.hbm_to_vmem [thread:$0]  %s1, 256, %s18, [#allocation3], 64, 64, 4
    $region9: #{forward.10} parent=1 // pred_fallthru
      _
    // Predicated region
    $region10: #{forward.10} parent=1 // pred_check
      _
    $region11: #{forward.10} parent=1 // pred_check_branch
      %25 = sbr.rel (0) target = $region13
    $region12: #{forward.10} parent=1 // pred_region
      %s27 = ssub.s32 16, 16
      %28 = vsyncadd [#allocation5], %s27
      %s30 = sshll.u32 [#allocation4], 4
      %s31 = int_to_ptr.vmem [resolvable:$true] %s30
      %33 = dma.hbm_to_vmem [thread:$0]  %s2, 16, %s31, [#allocation5]
    $region13: #{forward.10} parent=1 // pred_fallthru
      _
    // Predicated region
    $region14: #{forward.10} parent=1 // pred_check
      _
    $region15: #{forward.10} parent=1 // pred_check_branch
      %35 = sbr.rel (0) target = $region17
    $region16: #{forward.10} parent=1 // pred_region
      %36 = dma.done [#allocation3], 256
    $region17: #{forward.10} parent=1 // pred_fallthru
      _
    // Predicated region
    $region18: #{forward.10} parent=1 // pred_check
      _
    $region19: #{forward.10} parent=1 // pred_check_branch
      %38 = sbr.rel (0) target = $region21
    $region20: #{forward.10} parent=1 // pred_region
      %39 = dma.done [#allocation5], 16
    $region21: #{forward.10} parent=1 // pred_fallthru
      _
    %v41 = vld [vmem:[%s0] sm:$0xf]
    %v42 = vld [vmem:[%s0 + $0x4] sm:$0xf]
    %v43 = vld [vmem:[%s0 + $0x8] sm:$0xf]
    %v44 = vld [vmem:[%s0 + $0xc] sm:$0xf]
    %v45 = vld [vmem:[%s0 + $0x10] sm:$0xf]
    %v46 = vld [vmem:[%s0 + $0x14] sm:$0xf]
    %v47 = vld [vmem:[%s0 + $0x18] sm:$0xf]
    %v48 = vld [vmem:[%s0 + $0x1c] sm:$0xf]
    %v49 = vld [vmem:[%s0 + $0x20] sm:$0xf]
    %v50 = vld [vmem:[%s0 + $0x24] sm:$0xf]
    %v51 = vld [vmem:[%s0 + $0x28] sm:$0xf]
    %v52 = vld [vmem:[%s0 + $0x2c] sm:$0xf]
    %v53 = vld [vmem:[%s0 + $0x30] sm:$0xf]
    %v54 = vld [vmem:[%s0 + $0x34] sm:$0xf]
    %v55 = vld [vmem:[%s0 + $0x38] sm:$0xf]
    %v56 = vld [vmem:[%s0 + $0x3c] sm:$0xf]
    %v57 = vld [vmem:[%s0 + $0x40] sm:$0xf]
    %v58 = vld [vmem:[%s0 + $0x44] sm:$0xf]
    %v59 = vld [vmem:[%s0 + $0x48] sm:$0xf]
    %v60 = vld [vmem:[%s0 + $0x4c] sm:$0xf]
    %v61 = vld [vmem:[%s0 + $0x50] sm:$0xf]
    %v62 = vld [vmem:[%s0 + $0x54] sm:$0xf]
    %v63 = vld [vmem:[%s0 + $0x58] sm:$0xf]
    %v64 = vld [vmem:[%s0 + $0x5c] sm:$0xf]
    %v65 = vld [vmem:[%s0 + $0x60] sm:$0xf]
    %v66 = vld [vmem:[#allocation2] sm:$0xf]
    %v67 = vld [vmem:[#allocation2 + $0x4] sm:$0xf]
    %v68 = vld [vmem:[#allocation2 + $0x8] sm:$0xf]
    %v69 = vld [vmem:[#allocation2 + $0xc] sm:$0x3]
    %v70 = vld [vmem:[#allocation4] sm:$0x1]
    %v72 = vlaneseq
    %v73 = vshrl.u32 %v72, 7
    %v74 = vsub.s32 0, %v73
    %v75 = vrot.slane %v70, %v74
    %v102 = vunpack.c.l.b16 %v41
    %v103 = vunpack.c.l.b16 %v42
    %v104 = vunpack.c.l.b16 %v43
    %v105 = vunpack.c.l.b16 %v44
    %v106 = vunpack.c.l.b16 %v45
    %v107 = vunpack.c.l.b16 %v46
    %v108 = vunpack.c.l.b16 %v47
    %v109 = vunpack.c.l.b16 %v48
    %v110 = vunpack.c.l.b16 %v49
    %v111 = vunpack.c.l.b16 %v50
    %v112 = vunpack.c.l.b16 %v51
    %v113 = vunpack.c.l.b16 %v52
    %v114 = vunpack.c.l.b16 %v53
    %v115 = vunpack.c.l.b16 %v54
    %v116 = vunpack.c.l.b16 %v55
    %v117 = vunpack.c.l.b16 %v56
    %v118 = vunpack.c.l.b16 %v57
    %v119 = vunpack.c.l.b16 %v58
    %v120 = vunpack.c.l.b16 %v59
    %v121 = vunpack.c.l.b16 %v60
    %v122 = vunpack.c.l.b16 %v61
    %v123 = vunpack.c.l.b16 %v62
    %v124 = vunpack.c.l.b16 %v63
    %v125 = vunpack.c.l.b16 %v64
    %v126 = vunpack.c.l.b16 %v65
    %v127 = vpack.c.b16 %v103, %v102
    %v128 = vpack.c.b16 %v105, %v104
    %v129 = vpack.c.b16 %v107, %v106
    %v130 = vpack.c.b16 %v109, %v108
    %v131 = vpack.c.b16 %v111, %v110
    %v132 = vpack.c.b16 %v113, %v112
    %v133 = vpack.c.b16 %v115, %v114
    %v134 = vpack.c.b16 %v117, %v116
    %v135 = vpack.c.b16 %v119, %v118
    %v136 = vpack.c.b16 %v121, %v120
    %v137 = vpack.c.b16 %v123, %v122
    %v138 = vpack.c.b16 %v125, %v124
    %v139 = vpack.c.b16 %v126, %v126
    %v144 = vunpack.c.l.b16 %v66
    %v145 = vunpack.c.l.b16 %v67
    %v146 = vunpack.c.l.b16 %v68
    %v147 = vunpack.c.l.b16 %v69
    %v148 = vpack.c.b16 %v145, %v144
    %v149 = vpack.c.b16 %v147, %v146
    %vm151 = vcmask 220160
    %v153 = vsel %vm151, %v127, 0
    %v156 = vsel %vm151, %v128, 0
    %v159 = vsel %vm151, %v129, 0
    %v162 = vsel %vm151, %v130, 0
    %v165 = vsel %vm151, %v131, 0
    %v168 = vsel %vm151, %v132, 0
    %v171 = vsel %vm151, %v133, 0
    %v174 = vsel %vm151, %v134, 0
    %v177 = vsel %vm151, %v135, 0
    %v180 = vsel %vm151, %v136, 0
    %v183 = vsel %vm151, %v137, 0
    %v186 = vsel %vm151, %v138, 0
    %v189 = vsel %vm151, %v139, 0
    %vm191 = vcmask 1044480
    %vm192 = vcmask 1045504
    %v193 = vsel %vm191, 4294967295, 65535
    %v194 = vsel %vm192, %v193, 0
    %v196 = vand.u32 %v149, %v194
    %198 = vmatprep.subr.bf16.mxu0 0
    %199 = vmatpush1.bf16.msra.mxu0 %v148
    %200 = vmatprep.subr.bf16.mxu0 0
    %201 = vmatpush1.bf16.msra.mxu0 %v196
    %202 = vmatprep.subr.bf16.mxu0 0
    %203 = vmatpush1.bf16.msra.mxu0 0
    %204 = vmatprep.subr.bf16.mxu0 0
    %205 = vmatpush1.bf16.msra.mxu0 0
    %206 = vmatprep.subr.bf16.mxu0 0
    %207 = vmatpush1.bf16.msra.mxu0 0
    %208 = vmatprep.subr.bf16.mxu0 0
    %209 = vmatpush1.bf16.msra.mxu0 0
    %210 = vmatprep.subr.bf16.mxu0 0
    %211 = vmatpush1.bf16.msra.mxu0 0
    %212 = vmatprep.subr.bf16.mxu0 0
    %213 = vmatpush1.bf16.msra.mxu0 0
    %214 = vmatprep.subr.bf16.mxu0 0
    %215 = vmatpush1.bf16.msra.mxu0 0
    %216 = vmatprep.subr.bf16.mxu0 0
    %217 = vmatpush1.bf16.msra.mxu0 0
    %218 = vmatprep.subr.bf16.mxu0 0
    %219 = vmatpush1.bf16.msra.mxu0 0
    %220 = vmatprep.subr.bf16.mxu0 0
    %221 = vmatpush1.bf16.msra.mxu0 0
    %222 = vmatprep.subr.bf16.mxu0 0
    %223 = vmatpush1.bf16.msra.mxu0 0
    %224 = vmatprep.subr.bf16.mxu0 0
    %225 = vmatpush1.bf16.msra.mxu0 0
    %226 = vmatprep.subr.bf16.mxu0 0
    %227 = vmatpush1.bf16.msra.mxu0 0
    %228 = vmatprep.subr.bf16.mxu0 0
    %229 = vmatpush1.bf16.msra.mxu0 0
    %230 = vmatprep.mubr.bf16.mxu0 0
    %231 = vmatmul.mubr.bf16.gmra.mrb[0].mxu0 %v153
    %v232 = vpop.f32.mrb[0].mxu0
    %v233 = vadd.f32 %v75, %v232
    %v234 = vpop.f32.mrb[0].mxu0
    %v235 = vpop.f32.mrb[0].mxu0
    %v236 = vadd.f32 %v75, %v235
    %v237 = vpop.f32.mrb[0].mxu0
    %238 = vmatprep.mubr.bf16.mxu0 0
    %239 = vmatmul.mubr.bf16.gmra.mrb[0].mxu0 %v156
    %v240 = vpop.f32.mrb[0].mxu0
    %v241 = vadd.f32 %v75, %v240
    %v242 = vpop.f32.mrb[0].mxu0
    %v243 = vpop.f32.mrb[0].mxu0
    %v244 = vadd.f32 %v75, %v243
    %v245 = vpop.f32.mrb[0].mxu0
    %246 = vmatprep.mubr.bf16.mxu0 0
    %247 = vmatmul.mubr.bf16.gmra.mrb[0].mxu0 %v159
    %v248 = vpop.f32.mrb[0].mxu0
    %v249 = vadd.f32 %v75, %v248
    %v250 = vpop.f32.mrb[0].mxu0
    %v251 = vpop.f32.mrb[0].mxu0
    %v252 = vadd.f32 %v75, %v251
    %v253 = vpop.f32.mrb[0].mxu0
    %254 = vmatprep.mubr.bf16.mxu0 0
    %255 = vmatmul.mubr.bf16.gmra.mrb[0].mxu0 %v162
    %v256 = vpop.f32.mrb[0].mxu0
    %v257 = vadd.f32 %v75, %v256
    %v258 = vpop.f32.mrb[0].mxu0
    %v259 = vpop.f32.mrb[0].mxu0
    %v260 = vadd.f32 %v75, %v259
    %v261 = vpop.f32.mrb[0].mxu0
    %262 = vmatprep.mubr.bf16.mxu0 0
    %263 = vmatmul.mubr.bf16.gmra.mrb[0].mxu0 %v165
    %v264 = vpop.f32.mrb[0].mxu0
    %v265 = vadd.f32 %v75, %v264
    %v266 = vpop.f32.mrb[0].mxu0
    %v267 = vpop.f32.mrb[0].mxu0
    %v268 = vadd.f32 %v75, %v267
    %v269 = vpop.f32.mrb[0].mxu0
    %270 = vmatprep.mubr.bf16.mxu0 0
    %271 = vmatmul.mubr.bf16.gmra.mrb[0].mxu0 %v168
    %v272 = vpop.f32.mrb[0].mxu0
    %v273 = vadd.f32 %v75, %v272
    %v274 = vpop.f32.mrb[0].mxu0
    %v275 = vpop.f32.mrb[0].mxu0
    %v276 = vadd.f32 %v75, %v275
    %v277 = vpop.f32.mrb[0].mxu0
    %278 = vmatprep.mubr.bf16.mxu0 0
    %279 = vmatmul.mubr.bf16.gmra.mrb[0].mxu0 %v171
    %v280 = vpop.f32.mrb[0].mxu0
    %v281 = vadd.f32 %v75, %v280
    %v282 = vpop.f32.mrb[0].mxu0
    %v283 = vpop.f32.mrb[0].mxu0
    %v284 = vadd.f32 %v75, %v283
    %v285 = vpop.f32.mrb[0].mxu0
    %286 = vmatprep.mubr.bf16.mxu0 0
    %287 = vmatmul.mubr.bf16.gmra.mrb[0].mxu0 %v174
    %v288 = vpop.f32.mrb[0].mxu0
    %v289 = vadd.f32 %v75, %v288
    %v290 = vpop.f32.mrb[0].mxu0
    %v291 = vpop.f32.mrb[0].mxu0
    %v292 = vadd.f32 %v75, %v291
    %v293 = vpop.f32.mrb[0].mxu0
    %294 = vmatprep.mubr.bf16.mxu0 0
    %295 = vmatmul.mubr.bf16.gmra.mrb[0].mxu0 %v177
    %v296 = vpop.f32.mrb[0].mxu0
    %v297 = vadd.f32 %v75, %v296
    %v298 = vpop.f32.mrb[0].mxu0
    %v299 = vpop.f32.mrb[0].mxu0
    %v300 = vadd.f32 %v75, %v299
    %v301 = vpop.f32.mrb[0].mxu0
    %302 = vmatprep.mubr.bf16.mxu0 0
    %303 = vmatmul.mubr.bf16.gmra.mrb[0].mxu0 %v180
    %v304 = vpop.f32.mrb[0].mxu0
    %v305 = vadd.f32 %v75, %v304
    %v306 = vpop.f32.mrb[0].mxu0
    %v307 = vpop.f32.mrb[0].mxu0
    %v308 = vadd.f32 %v75, %v307
    %v309 = vpop.f32.mrb[0].mxu0
    %310 = vmatprep.mubr.bf16.mxu0 0
    %311 = vmatmul.mubr.bf16.gmra.mrb[0].mxu0 %v183
    %v312 = vpop.f32.mrb[0].mxu0
    %v313 = vadd.f32 %v75, %v312
    %v314 = vpop.f32.mrb[0].mxu0
    %v315 = vpop.f32.mrb[0].mxu0
    %v316 = vadd.f32 %v75, %v315
    %v317 = vpop.f32.mrb[0].mxu0
    %318 = vmatprep.mubr.bf16.mxu0 0
    %319 = vmatmul.mubr.bf16.gmra.mrb[0].mxu0 %v186
    %v320 = vpop.f32.mrb[0].mxu0
    %v321 = vadd.f32 %v75, %v320
    %v322 = vpop.f32.mrb[0].mxu0
    %v323 = vpop.f32.mrb[0].mxu0
    %v324 = vadd.f32 %v75, %v323
    %v325 = vpop.f32.mrb[0].mxu0
    %326 = vmatprep.mubr.bf16.mxu0 0
    %327 = vmatmul.mubr.bf16.gmra.mrb[0].mxu0 %v189
    %v328 = vpop.f32.mrb[0].mxu0
    %v329 = vadd.f32 %v75, %v328
    %v330 = vpop.f32.mrb[0].mxu0
    %v331 = vpop.f32.mrb[0].mxu0
    %v332 = vpop.f32.mrb[0].mxu0
    %333 = vdwg.mxu0
    %v334 = vmax.f32 %v233, 0.0
    %v335 = vmax.f32 %v236, 0.0
    %v336 = vmax.f32 %v241, 0.0
    %v337 = vmax.f32 %v244, 0.0
    %v338 = vmax.f32 %v249, 0.0
    %v339 = vmax.f32 %v252, 0.0
    %v340 = vmax.f32 %v257, 0.0
    %v341 = vmax.f32 %v260, 0.0
    %v342 = vmax.f32 %v265, 0.0
    %v343 = vmax.f32 %v268, 0.0
    %v344 = vmax.f32 %v273, 0.0
    %v345 = vmax.f32 %v276, 0.0
    %v346 = vmax.f32 %v281, 0.0
    %v347 = vmax.f32 %v284, 0.0
    %v348 = vmax.f32 %v289, 0.0
    %v349 = vmax.f32 %v292, 0.0
    %v350 = vmax.f32 %v297, 0.0
    %v351 = vmax.f32 %v300, 0.0
    %v352 = vmax.f32 %v305, 0.0
    %v353 = vmax.f32 %v308, 0.0
    %v354 = vmax.f32 %v313, 0.0
    %v355 = vmax.f32 %v316, 0.0
    %v356 = vmax.f32 %v321, 0.0
    %v357 = vmax.f32 %v324, 0.0
    %v358 = vmax.f32 %v329, 0.0
    %359 = vst [vmem:[%s3] sm:$0xff] %v334
    %360 = vst [vmem:[%s3 + $0x8] sm:$0xff] %v335
    %361 = vst [vmem:[%s3 + $0x10] sm:$0xff] %v336
    %362 = vst [vmem:[%s3 + $0x18] sm:$0xff] %v337
    %363 = vst [vmem:[%s3 + $0x20] sm:$0xff] %v338
    %364 = vst [vmem:[%s3 + $0x28] sm:$0xff] %v339
    %365 = vst [vmem:[%s3 + $0x30] sm:$0xff] %v340
    %366 = vst [vmem:[%s3 + $0x38] sm:$0xff] %v341
    %367 = vst [vmem:[%s3 + $0x40] sm:$0xff] %v342
    %368 = vst [vmem:[%s3 + $0x48] sm:$0xff] %v343
    %369 = vst [vmem:[%s3 + $0x50] sm:$0xff] %v344
    %370 = vst [vmem:[%s3 + $0x58] sm:$0xff] %v345
    %371 = vst [vmem:[%s3 + $0x60] sm:$0xff] %v346
    %372 = vst [vmem:[%s3 + $0x68] sm:$0xff] %v347
    %373 = vst [vmem:[%s3 + $0x70] sm:$0xff] %v348
    %374 = vst [vmem:[%s3 + $0x78] sm:$0xff] %v349
    %375 = vst [vmem:[%s3 + $0x80] sm:$0xff] %v350
    %376 = vst [vmem:[%s3 + $0x88] sm:$0xff] %v351
    %377 = vst [vmem:[%s3 + $0x90] sm:$0xff] %v352
    %378 = vst [vmem:[%s3 + $0x98] sm:$0xff] %v353
    %379 = vst [vmem:[%s3 + $0xa0] sm:$0xff] %v354
    %380 = vst [vmem:[%s3 + $0xa8] sm:$0xff] %v355
    %381 = vst [vmem:[%s3 + $0xb0] sm:$0xff] %v356
    %382 = vst [vmem:[%s3 + $0xb8] sm:$0xff] %v357
    %383 = vst [vmem:[%s3 + $0xc0] sm:$0xff] %v358
    // Predicated region
    $region22: #{forward.10} parent=1 // pred_check
      _
    $region23: #{forward.10} parent=1 // pred_check_branch
      %385 = sbr.rel (0) target = $region25
    $region24: #{forward.10} parent=1 // pred_region
      _
    $region25: #{forward.10} parent=1 // pred_fallthru
      _
    // Predicated region
    $region26: #{forward.10} parent=1 // pred_check
      _
    $region27: #{forward.10} parent=1 // pred_check_branch
      %387 = sbr.rel (0) target = $region29
    $region28: #{forward.10} parent=1 // pred_region
      _
    $region29: #{forward.10} parent=1 // pred_fallthru
      _
    %388 = vsyncpa [#allocation3], 1
    %389 = vsyncpa [#allocation5], 1

// kernel: forward.11
$region0: #{forward.11}
  #allocation0 [shape = 'u32[]', space=smem, size = 0x4, offset = 0x4, fixed_abs, tag = 'smem constant byte address 0x4 - core index']
  #allocation1 [shape = 'u32[144,128]{1,0:T(1,128)}', space=vmem, size = 0x12000, scoped, tag = 'internal scratch']
  %s0 = inlined_call_operand.vmem [shape: f32[4,8,128], index: 0, kind: input, shape index: {}]
  %s1 = inlined_call_operand.vmem [shape: f32[8,128], index: 1, kind: output, shape index: {0}]
  %s2 = inlined_call_operand.vmem [shape: s32[8,128], index: 2, kind: output, shape index: {1}]
  %3 = xla_tuple %s1, %s2
  %s4 = sld [smem:[#allocation0]]
  $region22: #{forward.11} parent=0
    _
  %s6 = ssub.s32 1, %s4
  %s7 = scalar_select 0, %s6, %s4
  // Predicated region
  $region2: #{forward.11} parent=0 // pred_check
    _
  $region3: #{forward.11} parent=0 // pred_check_branch
    %9 = sbr.rel (0) target = $region5
  $region4: #{forward.11} parent=0 // pred_region
    _
  $region5: #{forward.11} parent=0 // pred_fallthru
    _
  %v10 = vld [vmem:[%s0] sm:$0xff]
  %s11 = scalar_lea.vmem %s0, 8
  %v12 = vld [vmem:[%s11] sm:$0xff]
  %vm13 = vcmp.gt.f32.partialorder %v12, %v10
  %v14 = vsel %vm13, %v12, %v10
  %v15 = vsel %vm13, 1, 0
  %s16 = scalar_lea.vmem %s0, 16
  %v17 = vld [vmem:[%s16] sm:$0xff]
  %vm18 = vcmp.gt.f32.partialorder %v17, %v14
  %v19 = vsel %vm18, %v17, %v14
  %v20 = vsel %vm18, 2, %v15
  %s21 = scalar_lea.vmem %s0, 24
  %v22 = vld [vmem:[%s21] sm:$0xff]
  %vm23 = vcmp.gt.f32.partialorder %v22, %v19
  %v24 = vsel %vm23, %v22, %v19
  %v25 = vsel %vm23, 3, %v20
  %26 = vst [vmem:[%s1] sm:$0xff] %v24
  %27 = vst [vmem:[%s2] sm:$0xff] %v25
  // Predicated region
  $region6: #{forward.11} parent=0 // pred_check
    _
  $region7: #{forward.11} parent=0 // pred_check_branch
    %29 = sbr.rel (0) target = $region9
  $region8: #{forward.11} parent=0 // pred_region
    _
  $region9: #{forward.11} parent=0 // pred_fallthru
    _
  // Predicated region
  $region10: #{forward.11} parent=0 // pred_check
    _
  $region11: #{forward.11} parent=0 // pred_check_branch
    %31 = sbr.rel (0) target = $region13
  $region12: #{forward.11} parent=0 // pred_region
    _
  $region13: #{forward.11} parent=0 // pred_fallthru
    _
  // Predicated region
  $region14: #{forward.11} parent=0 // pred_check
    _
  $region15: #{forward.11} parent=0 // pred_check_branch
    %33 = sbr.rel (0) target = $region17
  $region16: #{forward.11} parent=0 // pred_region
    _
  $region17: #{forward.11} parent=0 // pred_fallthru
    _
  // Predicated region
  $region18: #{forward.11} parent=0 // pred_check
    _
  $region19: #{forward.11} parent=0 // pred_check_branch
    %35 = sbr.rel (0) target = $region21
  $region20: #{forward.11} parent=0 // pred_region
    _
  $region21: #{forward.11} parent=0 // pred_fallthru
    _

// kernel: forward.12
$region0: #{forward.12}
  #allocation0 [shape = 'u32[]', space=smem, size = 0x4, offset = 0x4, fixed_abs, tag = 'smem constant byte address 0x4 - core index']
  #allocation1 [shape = 'u32[144,128]{1,0:T(1,128)}', space=vmem, size = 0x12000, scoped, tag = 'internal scratch']
  %s0 = inlined_call_operand.vmem [shape: bf16[8,54], index: 0, kind: input, shape index: {}]
  %s1 = inlined_call_operand.hbm [shape: bf16[54,128], index: 1, kind: input, shape index: {}]
  %s2 = inlined_call_operand.hbm [shape: f32[1,128], index: 2, kind: input, shape index: {}]
  %s3 = inlined_call_operand.vmem [shape: f32[8,128], index: 3, kind: output, shape index: {}]
  %s4 = sld [smem:[#allocation0]]
  $region30: #{forward.12} parent=0
    _
  %s6 = ssub.s32 1, %s4
  %s7 = scalar_select 0, %s6, %s4
  $region1: #{forward.12} parent=0
    #allocation2 [shape = 'u8[14336]{0}', space=vmem, size = 0x3800, scoped, tag = 'input window, operand 1, single buffered']
    #allocation3 [shape = 's32[1]{0}', space=sflag, size = 0x4, scoped, tag = 'scoped memory for forward.12']
    #allocation4 [shape = 'u8[512]{0}', space=vmem, size = 0x400, scoped, tag = 'input window, operand 2, single buffered']
    #allocation5 [shape = 's32[1]{0}', space=sflag, size = 0x4, scoped, tag = 'scoped memory for forward.12']
    %8 = vsyncpa [#allocation3], 0
    %9 = vsyncpa [#allocation5], 0
    // Predicated region
    $region2: #{forward.12} parent=1 // pred_check
      _
    $region3: #{forward.12} parent=1 // pred_check_branch
      %11 = sbr.rel (0) target = $region5
    $region4: #{forward.12} parent=1 // pred_region
      _
    $region5: #{forward.12} parent=1 // pred_fallthru
      _
    // Predicated region
    $region6: #{forward.12} parent=1 // pred_check
      _
    $region7: #{forward.12} parent=1 // pred_check_branch
      %13 = sbr.rel (0) target = $region9
    $region8: #{forward.12} parent=1 // pred_region
      %s15 = ssub.s32 448, 448
      %16 = vsyncadd [#allocation3], %s15
      %s17 = sshll.u32 [#allocation2], 4
      %s18 = int_to_ptr.vmem [resolvable:$true] %s17
      %23 = dma.hbm_to_vmem [thread:$0]  %s1, 448, %s18, [#allocation3], 64, 64, 4
    $region9: #{forward.12} parent=1 // pred_fallthru
      _
    // Predicated region
    $region10: #{forward.12} parent=1 // pred_check
      _
    $region11: #{forward.12} parent=1 // pred_check_branch
      %25 = sbr.rel (0) target = $region13
    $region12: #{forward.12} parent=1 // pred_region
      %s27 = ssub.s32 16, 16
      %28 = vsyncadd [#allocation5], %s27
      %s30 = sshll.u32 [#allocation4], 4
      %s31 = int_to_ptr.vmem [resolvable:$true] %s30
      %33 = dma.hbm_to_vmem [thread:$0]  %s2, 16, %s31, [#allocation5]
    $region13: #{forward.12} parent=1 // pred_fallthru
      _
    // Predicated region
    $region14: #{forward.12} parent=1 // pred_check
      _
    $region15: #{forward.12} parent=1 // pred_check_branch
      %35 = sbr.rel (0) target = $region17
    $region16: #{forward.12} parent=1 // pred_region
      %36 = dma.done [#allocation3], 448
    $region17: #{forward.12} parent=1 // pred_fallthru
      _
    // Predicated region
    $region18: #{forward.12} parent=1 // pred_check
      _
    $region19: #{forward.12} parent=1 // pred_check_branch
      %38 = sbr.rel (0) target = $region21
    $region20: #{forward.12} parent=1 // pred_region
      %39 = dma.done [#allocation5], 16
    $region21: #{forward.12} parent=1 // pred_fallthru
      _
    %v41 = vld [vmem:[%s0] sm:$0xf]
    %v42 = vld [vmem:[#allocation2] sm:$0xf]
    %v43 = vld [vmem:[#allocation2 + $0x4] sm:$0xf]
    %v44 = vld [vmem:[#allocation2 + $0x8] sm:$0xf]
    %v45 = vld [vmem:[#allocation2 + $0xc] sm:$0xf]
    %v46 = vld [vmem:[#allocation2 + $0x10] sm:$0xf]
    %v47 = vld [vmem:[#allocation2 + $0x14] sm:$0xf]
    %v48 = vld [vmem:[#allocation2 + $0x18] sm:$0x7]
    %v49 = vld [vmem:[#allocation4] sm:$0x1]
    %v51 = vlaneseq
    %v52 = vshrl.u32 %v51, 7
    %v53 = vsub.s32 0, %v52
    %v54 = vrot.slane %v49, %v53
    %v63 = vunpack.c.l.b16 %v42
    %v64 = vunpack.c.l.b16 %v43
    %v65 = vunpack.c.l.b16 %v44
    %v66 = vunpack.c.l.b16 %v45
    %v67 = vunpack.c.l.b16 %v46
    %v68 = vunpack.c.l.b16 %v47
    %v69 = vunpack.c.l.b16 %v48
    %v70 = vpack.c.b16 %v64, %v63
    %v71 = vpack.c.b16 %v66, %v65
    %v72 = vpack.c.b16 %v68, %v67
    %v73 = vpack.c.b16 %v69, %v69
    %vm77 = vcmask 441344
    %v79 = vsel %vm77, %v41, 0
    %vm81 = vcmask 1042432
    %v83 = vsel %vm81, %v73, 0
    %85 = vmatprep.subr.bf16.mxu0 0
    %86 = vmatpush1.bf16.msra.mxu0 %v70
    %87 = vmatprep.subr.bf16.mxu0 0
    %88 = vmatpush1.bf16.msra.mxu0 %v71
    %89 = vmatprep.subr.bf16.mxu0 0
    %90 = vmatpush1.bf16.msra.mxu0 %v72
    %91 = vmatprep.subr.bf16.mxu0 0
    %92 = vmatpush1.bf16.msra.mxu0 %v83
    %93 = vmatprep.subr.bf16.mxu0 0
    %94 = vmatpush1.bf16.msra.mxu0 0
    %95 = vmatprep.subr.bf16.mxu0 0
    %96 = vmatpush1.bf16.msra.mxu0 0
    %97 = vmatprep.subr.bf16.mxu0 0
    %98 = vmatpush1.bf16.msra.mxu0 0
    %99 = vmatprep.subr.bf16.mxu0 0
    %100 = vmatpush1.bf16.msra.mxu0 0
    %101 = vmatprep.subr.bf16.mxu0 0
    %102 = vmatpush1.bf16.msra.mxu0 0
    %103 = vmatprep.subr.bf16.mxu0 0
    %104 = vmatpush1.bf16.msra.mxu0 0
    %105 = vmatprep.subr.bf16.mxu0 0
    %106 = vmatpush1.bf16.msra.mxu0 0
    %107 = vmatprep.subr.bf16.mxu0 0
    %108 = vmatpush1.bf16.msra.mxu0 0
    %109 = vmatprep.subr.bf16.mxu0 0
    %110 = vmatpush1.bf16.msra.mxu0 0
    %111 = vmatprep.subr.bf16.mxu0 0
    %112 = vmatpush1.bf16.msra.mxu0 0
    %113 = vmatprep.subr.bf16.mxu0 0
    %114 = vmatpush1.bf16.msra.mxu0 0
    %115 = vmatprep.subr.bf16.mxu0 0
    %116 = vmatpush1.bf16.msra.mxu0 0
    %117 = vmatprep.mubr.bf16.mxu0 0
    %118 = vmatmul.mubr.bf16.gmra.mrb[0].mxu0 %v79
    %v119 = vpop.f32.mrb[0].mxu0
    %v120 = vadd.f32 %v54, %v119
    %v121 = vpop.f32.mrb[0].mxu0
    %v122 = vpop.f32.mrb[0].mxu0
    %v123 = vpop.f32.mrb[0].mxu0
    %124 = vdwg.mxu0
    %v125 = vmax.f32 %v120, 0.0
    %126 = vst [vmem:[%s3] sm:$0xff] %v125
    // Predicated region
    $region22: #{forward.12} parent=1 // pred_check
      _
    $region23: #{forward.12} parent=1 // pred_check_branch
      %128 = sbr.rel (0) target = $region25
    $region24: #{forward.12} parent=1 // pred_region
      _
    $region25: #{forward.12} parent=1 // pred_fallthru
      _
    // Predicated region
    $region26: #{forward.12} parent=1 // pred_check
      _
    $region27: #{forward.12} parent=1 // pred_check_branch
      %130 = sbr.rel (0) target = $region29
    $region28: #{forward.12} parent=1 // pred_region
      _
    $region29: #{forward.12} parent=1 // pred_fallthru
      _
    %131 = vsyncpa [#allocation3], 1
    %132 = vsyncpa [#allocation5], 1

// kernel: forward.14
$region0: #{forward.14}
  #allocation0 [shape = 'u32[]', space=smem, size = 0x4, offset = 0x4, fixed_abs, tag = 'smem constant byte address 0x4 - core index']
  #allocation1 [shape = 'u32[144,128]{1,0:T(1,128)}', space=vmem, size = 0x12000, scoped, tag = 'internal scratch']
  %s0 = inlined_call_operand.vmem [shape: bf16[8,9], index: 0, kind: input, shape index: {}]
  %s1 = inlined_call_operand.hbm [shape: bf16[9,128], index: 1, kind: input, shape index: {}]
  %s2 = inlined_call_operand.vmem [shape: f32[8,128], index: 2, kind: output, shape index: {}]
  %s3 = sld [smem:[#allocation0]]
  $region22: #{forward.14} parent=0
    _
  %s5 = ssub.s32 1, %s3
  %s6 = scalar_select 0, %s5, %s3
  $region1: #{forward.14} parent=0
    #allocation2 [shape = 'u8[4096]{0}', space=vmem, size = 0x1000, scoped, tag = 'input window, operand 1, single buffered']
    #allocation3 [shape = 's32[1]{0}', space=sflag, size = 0x4, scoped, tag = 'scoped memory for forward.14']
    %7 = vsyncpa [#allocation3], 0
    // Predicated region
    $region2: #{forward.14} parent=1 // pred_check
      _
    $region3: #{forward.14} parent=1 // pred_check_branch
      %9 = sbr.rel (0) target = $region5
    $region4: #{forward.14} parent=1 // pred_region
      _
    $region5: #{forward.14} parent=1 // pred_fallthru
      _
    // Predicated region
    $region6: #{forward.14} parent=1 // pred_check
      _
    $region7: #{forward.14} parent=1 // pred_check_branch
      %11 = sbr.rel (0) target = $region9
    $region8: #{forward.14} parent=1 // pred_region
      %s13 = ssub.s32 128, 128
      %14 = vsyncadd [#allocation3], %s13
      %s15 = sshll.u32 [#allocation2], 4
      %s16 = int_to_ptr.vmem [resolvable:$true] %s15
      %21 = dma.hbm_to_vmem [thread:$0]  %s1, 128, %s16, [#allocation3], 64, 64, 4
    $region9: #{forward.14} parent=1 // pred_fallthru
      _
    // Predicated region
    $region10: #{forward.14} parent=1 // pred_check
      _
    $region11: #{forward.14} parent=1 // pred_check_branch
      %23 = sbr.rel (0) target = $region13
    $region12: #{forward.14} parent=1 // pred_region
      %24 = dma.done [#allocation3], 128
    $region13: #{forward.14} parent=1 // pred_fallthru
      _
    %v26 = vld [vmem:[%s0] sm:$0xf]
    %v27 = vld [vmem:[#allocation2] sm:$0xf]
    %v28 = vld [vmem:[#allocation2 + $0x4] sm:$0x1]
    %v31 = vunpack.c.l.b16 %v27
    %v32 = vunpack.c.l.b16 %v28
    %v33 = vpack.c.b16 %v32, %v31
    %vm34 = vcmask 72704
    %v36 = vsel %vm34, %v26, 0
    %vm38 = vcmask 1043456
    %vm39 = vcmask 1044480
    %v40 = vsel %vm38, 4294967295, 65535
    %v41 = vsel %vm39, %v40, 0
    %v43 = vand.u32 %v33, %v41
    %45 = vmatprep.subr.bf16.mxu0 0
    %46 = vmatpush1.bf16.msra.mxu0 %v43
    %47 = vmatprep.subr.bf16.mxu0 0
    %48 = vmatpush1.bf16.msra.mxu0 0
    %49 = vmatprep.subr.bf16.mxu0 0
    %50 = vmatpush1.bf16.msra.mxu0 0
    %51 = vmatprep.subr.bf16.mxu0 0
    %52 = vmatpush1.bf16.msra.mxu0 0
    %53 = vmatprep.subr.bf16.mxu0 0
    %54 = vmatpush1.bf16.msra.mxu0 0
    %55 = vmatprep.subr.bf16.mxu0 0
    %56 = vmatpush1.bf16.msra.mxu0 0
    %57 = vmatprep.subr.bf16.mxu0 0
    %58 = vmatpush1.bf16.msra.mxu0 0
    %59 = vmatprep.subr.bf16.mxu0 0
    %60 = vmatpush1.bf16.msra.mxu0 0
    %61 = vmatprep.subr.bf16.mxu0 0
    %62 = vmatpush1.bf16.msra.mxu0 0
    %63 = vmatprep.subr.bf16.mxu0 0
    %64 = vmatpush1.bf16.msra.mxu0 0
    %65 = vmatprep.subr.bf16.mxu0 0
    %66 = vmatpush1.bf16.msra.mxu0 0
    %67 = vmatprep.subr.bf16.mxu0 0
    %68 = vmatpush1.bf16.msra.mxu0 0
    %69 = vmatprep.subr.bf16.mxu0 0
    %70 = vmatpush1.bf16.msra.mxu0 0
    %71 = vmatprep.subr.bf16.mxu0 0
    %72 = vmatpush1.bf16.msra.mxu0 0
    %73 = vmatprep.subr.bf16.mxu0 0
    %74 = vmatpush1.bf16.msra.mxu0 0
    %75 = vmatprep.subr.bf16.mxu0 0
    %76 = vmatpush1.bf16.msra.mxu0 0
    %77 = vmatprep.mubr.bf16.mxu0 0
    %78 = vmatmul.mubr.bf16.gmra.mrb[0].mxu0 %v36
    %v79 = vpop.f32.mrb[0].mxu0
    %v80 = vadd.f32 0.0, %v79
    %v81 = vpop.f32.mrb[0].mxu0
    %v82 = vpop.f32.mrb[0].mxu0
    %v83 = vpop.f32.mrb[0].mxu0
    %84 = vdwg.mxu0
    %85 = vst [vmem:[%s2] sm:$0xff] %v80
    // Predicated region
    $region14: #{forward.14} parent=1 // pred_check
      _
    $region15: #{forward.14} parent=1 // pred_check_branch
      %87 = sbr.rel (0) target = $region17
    $region16: #{forward.14} parent=1 // pred_region
      _
    $region17: #{forward.14} parent=1 // pred_fallthru
      _
    // Predicated region
    $region18: #{forward.14} parent=1 // pred_check
      _
    $region19: #{forward.14} parent=1 // pred_check_branch
      %89 = sbr.rel (0) target = $region21
    $region20: #{forward.14} parent=1 // pred_region
      _
    $region21: #{forward.14} parent=1 // pred_fallthru
      _
    %90 = vsyncpa [#allocation3], 1

// kernel: forward.13
$region0: #{forward.13}
  #allocation0 [shape = 'u32[]', space=smem, size = 0x4, offset = 0x4, fixed_abs, tag = 'smem constant byte address 0x4 - core index']
  #allocation1 [shape = 'u32[144,128]{1,0:T(1,128)}', space=vmem, size = 0x12000, scoped, tag = 'internal scratch']
  %s0 = inlined_call_operand.vmem [shape: bf16[8,128], index: 0, kind: input, shape index: {}]
  %s1 = inlined_call_operand.hbm [shape: bf16[128,128], index: 1, kind: input, shape index: {}]
  %s2 = inlined_call_operand.hbm [shape: f32[1,128], index: 2, kind: input, shape index: {}]
  %s3 = inlined_call_operand.hbm [shape: bf16[128,128], index: 3, kind: input, shape index: {}]
  %s4 = inlined_call_operand.hbm [shape: f32[1,128], index: 4, kind: input, shape index: {}]
  %s5 = inlined_call_operand.hbm [shape: bf16[128,128], index: 5, kind: input, shape index: {}]
  %s6 = inlined_call_operand.hbm [shape: f32[1,128], index: 6, kind: input, shape index: {}]
  %s7 = inlined_call_operand.hbm [shape: bf16[128,128], index: 7, kind: input, shape index: {}]
  %s8 = inlined_call_operand.hbm [shape: f32[1,128], index: 8, kind: input, shape index: {}]
  %s9 = inlined_call_operand.vmem [shape: f32[8,128], index: 9, kind: output, shape index: {}]
  %s10 = sld [smem:[#allocation0]]
  $region78: #{forward.13} parent=0
    _
  %s12 = ssub.s32 1, %s10
  %s13 = scalar_select 0, %s12, %s10
  $region1: #{forward.13} parent=0
    #allocation2 [shape = 'u8[32768]{0}', space=vmem, size = 0x8000, scoped, tag = 'input window, operand 1, single buffered']
    #allocation3 [shape = 's32[1]{0}', space=sflag, size = 0x4, scoped, tag = 'scoped memory for forward.13']
    #allocation4 [shape = 'u8[512]{0}', space=vmem, size = 0x400, scoped, tag = 'input window, operand 2, single buffered']
    #allocation5 [shape = 's32[1]{0}', space=sflag, size = 0x4, scoped, tag = 'scoped memory for forward.13']
    #allocation6 [shape = 'u8[32768]{0}', space=vmem, size = 0x8000, scoped, tag = 'input window, operand 3, single buffered']
    #allocation7 [shape = 'u8[512]{0}', space=vmem, size = 0x400, scoped, tag = 'input window, operand 4, single buffered']
    #allocation8 [shape = 's32[1]{0}', space=sflag, size = 0x4, scoped, tag = 'scoped memory for forward.13']
    #allocation9 [shape = 'u8[32768]{0}', space=vmem, size = 0x8000, scoped, tag = 'input window, operand 5, single buffered']
    #allocation10 [shape = 'u8[512]{0}', space=vmem, size = 0x400, scoped, tag = 'input window, operand 6, single buffered']
    #allocation11 [shape = 's32[1]{0}', space=sflag, size = 0x4, scoped, tag = 'scoped memory for forward.13']
    #allocation12 [shape = 'u8[32768]{0}', space=vmem, size = 0x8000, scoped, tag = 'input window, operand 7, single buffered']
    #allocation13 [shape = 'u8[512]{0}', space=vmem, size = 0x400, scoped, tag = 'input window, operand 8, single buffered']
    #allocation14 [shape = 's32[1]{0}', space=sflag, size = 0x4, scoped, tag = 'scoped memory for forward.13']
    %14 = vsyncpa [#allocation3], 0
    %15 = vsyncpa [#allocation5], 0
    %16 = vsyncpa [#allocation8], 0
    %17 = vsyncpa [#allocation11], 0
    %18 = vsyncpa [#allocation14], 0
    // Predicated region
    $region2: #{forward.13} parent=1 // pred_check
      _
    $region3: #{forward.13} parent=1 // pred_check_branch
      %20 = sbr.rel (0) target = $region5
    $region4: #{forward.13} parent=1 // pred_region
      _
    $region5: #{forward.13} parent=1 // pred_fallthru
      _
    // Predicated region
    $region6: #{forward.13} parent=1 // pred_check
      _
    $region7: #{forward.13} parent=1 // pred_check_branch
      %22 = sbr.rel (0) target = $region9
    $region8: #{forward.13} parent=1 // pred_region
      %s24 = ssub.s32 1024, 1024
      %25 = vsyncadd [#allocation3], %s24
      %s26 = sshll.u32 [#allocation2], 4
      %s27 = int_to_ptr.vmem [resolvable:$true] %s26
      %32 = dma.hbm_to_vmem [thread:$0]  %s1, 1024, %s27, [#allocation3], 64, 64, 4
    $region9: #{forward.13} parent=1 // pred_fallthru
      _
    // Predicated region
    $region10: #{forward.13} parent=1 // pred_check
      _
    $region11: #{forward.13} parent=1 // pred_check_branch
      %34 = sbr.rel (0) target = $region13
    $region12: #{forward.13} parent=1 // pred_region
      %s36 = ssub.s32 16, 16
      %37 = vsyncadd [#allocation5], %s36
      %s39 = sshll.u32 [#allocation4], 4
      %s40 = int_to_ptr.vmem [resolvable:$true] %s39
      %42 = dma.hbm_to_vmem [thread:$0]  %s2, 16, %s40, [#allocation5]
    $region13: #{forward.13} parent=1 // pred_fallthru
      _
    // Predicated region
    $region14: #{forward.13} parent=1 // pred_check
      _
    $region15: #{forward.13} parent=1 // pred_check_branch
      %44 = sbr.rel (0) target = $region17
    $region16: #{forward.13} parent=1 // pred_region
      %s46 = ssub.s32 1024, 1024
      %47 = vsyncadd [#allocation5], %s46
      %s48 = sshll.u32 [#allocation6], 4
      %s49 = int_to_ptr.vmem [resolvable:$true] %s48
      %54 = dma.hbm_to_vmem [thread:$0]  %s3, 1024, %s49, [#allocation5], 64, 64, 4
    $region17: #{forward.13} parent=1 // pred_fallthru
      _
    // Predicated region
    $region18: #{forward.13} parent=1 // pred_check
      _
    $region19: #{forward.13} parent=1 // pred_check_branch
      %56 = sbr.rel (0) target = $region21
    $region20: #{forward.13} parent=1 // pred_region
      %s58 = ssub.s32 16, 16
      %59 = vsyncadd [#allocation8], %s58
      %s61 = sshll.u32 [#allocation7], 4
      %s62 = int_to_ptr.vmem [resolvable:$true] %s61
      %64 = dma.hbm_to_vmem [thread:$0]  %s4, 16, %s62, [#allocation8]
    $region21: #{forward.13} parent=1 // pred_fallthru
      _
    // Predicated region
    $region22: #{forward.13} parent=1 // pred_check
      _
    $region23: #{forward.13} parent=1 // pred_check_branch
      %66 = sbr.rel (0) target = $region25
    $region24: #{forward.13} parent=1 // pred_region
      %s68 = ssub.s32 1024, 1024
      %69 = vsyncadd [#allocation8], %s68
      %s70 = sshll.u32 [#allocation9], 4
      %s71 = int_to_ptr.vmem [resolvable:$true] %s70
      %76 = dma.hbm_to_vmem [thread:$0]  %s5, 1024, %s71, [#allocation8], 64, 64, 4
    $region25: #{forward.13} parent=1 // pred_fallthru
      _
    // Predicated region
    $region26: #{forward.13} parent=1 // pred_check
      _
    $region27: #{forward.13} parent=1 // pred_check_branch
      %78 = sbr.rel (0) target = $region29
    $region28: #{forward.13} parent=1 // pred_region
      %s80 = ssub.s32 16, 16
      %81 = vsyncadd [#allocation11], %s80
      %s83 = sshll.u32 [#allocation10], 4
      %s84 = int_to_ptr.vmem [resolvable:$true] %s83
      %86 = dma.hbm_to_vmem [thread:$0]  %s6, 16, %s84, [#allocation11]
    $region29: #{forward.13} parent=1 // pred_fallthru
      _
    // Predicated region
    $region30: #{forward.13} parent=1 // pred_check
      _
    $region31: #{forward.13} parent=1 // pred_check_branch
      %88 = sbr.rel (0) target = $region33
    $region32: #{forward.13} parent=1 // pred_region
      %s90 = ssub.s32 1024, 1024
      %91 = vsyncadd [#allocation11], %s90
      %s92 = sshll.u32 [#allocation12], 4
      %s93 = int_to_ptr.vmem [resolvable:$true] %s92
      %98 = dma.hbm_to_vmem [thread:$0]  %s7, 1024, %s93, [#allocation11], 64, 64, 4
    $region33: #{forward.13} parent=1 // pred_fallthru
      _
    // Predicated region
    $region34: #{forward.13} parent=1 // pred_check
      _
    $region35: #{forward.13} parent=1 // pred_check_branch
      %100 = sbr.rel (0) target = $region37
    $region36: #{forward.13} parent=1 // pred_region
      %s102 = ssub.s32 16, 16
      %103 = vsyncadd [#allocation14], %s102
      %s105 = sshll.u32 [#allocation13], 4
      %s106 = int_to_ptr.vmem [resolvable:$true] %s105
      %108 = dma.hbm_to_vmem [thread:$0]  %s8, 16, %s106, [#allocation14]
    $region37: #{forward.13} parent=1 // pred_fallthru
      _
    // Predicated region
    $region38: #{forward.13} parent=1 // pred_check
      _
    $region39: #{forward.13} parent=1 // pred_check_branch
      %110 = sbr.rel (0) target = $region41
    $region40: #{forward.13} parent=1 // pred_region
      %111 = dma.done [#allocation3], 1024
    $region41: #{forward.13} parent=1 // pred_fallthru
      _
    // Predicated region
    $region42: #{forward.13} parent=1 // pred_check
      _
    $region43: #{forward.13} parent=1 // pred_check_branch
      %113 = sbr.rel (0) target = $region45
    $region44: #{forward.13} parent=1 // pred_region
      %114 = dma.done [#allocation5], 16
    $region45: #{forward.13} parent=1 // pred_fallthru
      _
    // Predicated region
    $region46: #{forward.13} parent=1 // pred_check
      _
    $region47: #{forward.13} parent=1 // pred_check_branch
      %116 = sbr.rel (0) target = $region49
    $region48: #{forward.13} parent=1 // pred_region
      %117 = dma.done [#allocation5], 1024
    $region49: #{forward.13} parent=1 // pred_fallthru
      _
    // Predicated region
    $region50: #{forward.13} parent=1 // pred_check
      _
    $region51: #{forward.13} parent=1 // pred_check_branch
      %119 = sbr.rel (0) target = $region53
    $region52: #{forward.13} parent=1 // pred_region
      %120 = dma.done [#allocation8], 16
    $region53: #{forward.13} parent=1 // pred_fallthru
      _
    // Predicated region
    $region54: #{forward.13} parent=1 // pred_check
      _
    $region55: #{forward.13} parent=1 // pred_check_branch
      %122 = sbr.rel (0) target = $region57
    $region56: #{forward.13} parent=1 // pred_region
      %123 = dma.done [#allocation8], 1024
    $region57: #{forward.13} parent=1 // pred_fallthru
      _
    // Predicated region
    $region58: #{forward.13} parent=1 // pred_check
      _
    $region59: #{forward.13} parent=1 // pred_check_branch
      %125 = sbr.rel (0) target = $region61
    $region60: #{forward.13} parent=1 // pred_region
      %126 = dma.done [#allocation11], 16
    $region61: #{forward.13} parent=1 // pred_fallthru
      _
    // Predicated region
    $region62: #{forward.13} parent=1 // pred_check
      _
    $region63: #{forward.13} parent=1 // pred_check_branch
      %128 = sbr.rel (0) target = $region65
    $region64: #{forward.13} parent=1 // pred_region
      %129 = dma.done [#allocation11], 1024
    $region65: #{forward.13} parent=1 // pred_fallthru
      _
    // Predicated region
    $region66: #{forward.13} parent=1 // pred_check
      _
    $region67: #{forward.13} parent=1 // pred_check_branch
      %131 = sbr.rel (0) target = $region69
    $region68: #{forward.13} parent=1 // pred_region
      %132 = dma.done [#allocation14], 16
    $region69: #{forward.13} parent=1 // pred_fallthru
      _
    %v134 = vld [vmem:[%s0] sm:$0xf]
    %v135 = vld [vmem:[#allocation2] sm:$0xf]
    %v136 = vld [vmem:[#allocation2 + $0x4] sm:$0xf]
    %v137 = vld [vmem:[#allocation2 + $0x8] sm:$0xf]
    %v138 = vld [vmem:[#allocation2 + $0xc] sm:$0xf]
    %v139 = vld [vmem:[#allocation2 + $0x10] sm:$0xf]
    %v140 = vld [vmem:[#allocation2 + $0x14] sm:$0xf]
    %v141 = vld [vmem:[#allocation2 + $0x18] sm:$0xf]
    %v142 = vld [vmem:[#allocation2 + $0x1c] sm:$0xf]
    %v143 = vld [vmem:[#allocation2 + $0x20] sm:$0xf]
    %v144 = vld [vmem:[#allocation2 + $0x24] sm:$0xf]
    %v145 = vld [vmem:[#allocation2 + $0x28] sm:$0xf]
    %v146 = vld [vmem:[#allocation2 + $0x2c] sm:$0xf]
    %v147 = vld [vmem:[#allocation2 + $0x30] sm:$0xf]
    %v148 = vld [vmem:[#allocation2 + $0x34] sm:$0xf]
    %v149 = vld [vmem:[#allocation2 + $0x38] sm:$0xf]
    %v150 = vld [vmem:[#allocation2 + $0x3c] sm:$0xf]
    %v151 = vld [vmem:[#allocation4] sm:$0x1]
    %v153 = vlaneseq
    %v154 = vshrl.u32 %v153, 7
    %v155 = vsub.s32 0, %v154
    %v156 = vrot.slane %v151, %v155
    %v174 = vunpack.c.l.b16 %v135
    %v175 = vunpack.c.l.b16 %v136
    %v176 = vunpack.c.l.b16 %v137
    %v177 = vunpack.c.l.b16 %v138
    %v178 = vunpack.c.l.b16 %v139
    %v179 = vunpack.c.l.b16 %v140
    %v180 = vunpack.c.l.b16 %v141
    %v181 = vunpack.c.l.b16 %v142
    %v182 = vunpack.c.l.b16 %v143
    %v183 = vunpack.c.l.b16 %v144
    %v184 = vunpack.c.l.b16 %v145
    %v185 = vunpack.c.l.b16 %v146
    %v186 = vunpack.c.l.b16 %v147
    %v187 = vunpack.c.l.b16 %v148
    %v188 = vunpack.c.l.b16 %v149
    %v189 = vunpack.c.l.b16 %v150
    %v190 = vpack.c.b16 %v175, %v174
    %v191 = vpack.c.b16 %v177, %v176
    %v192 = vpack.c.b16 %v179, %v178
    %v193 = vpack.c.b16 %v181, %v180
    %v194 = vpack.c.b16 %v183, %v182
    %v195 = vpack.c.b16 %v185, %v184
    %v196 = vpack.c.b16 %v187, %v186
    %v197 = vpack.c.b16 %v189, %v188
    %206 = vmatprep.subr.bf16.mxu0 0
    %207 = vmatpush1.bf16.msra.mxu0 %v190
    %208 = vmatprep.subr.bf16.mxu0 0
    %209 = vmatpush1.bf16.msra.mxu0 %v191
    %210 = vmatprep.subr.bf16.mxu0 0
    %211 = vmatpush1.bf16.msra.mxu0 %v192
    %212 = vmatprep.subr.bf16.mxu0 0
    %213 = vmatpush1.bf16.msra.mxu0 %v193
    %214 = vmatprep.subr.bf16.mxu0 0
    %215 = vmatpush1.bf16.msra.mxu0 %v194
    %216 = vmatprep.subr.bf16.mxu0 0
    %217 = vmatpush1.bf16.msra.mxu0 %v195
    %218 = vmatprep.subr.bf16.mxu0 0
    %219 = vmatpush1.bf16.msra.mxu0 %v196
    %220 = vmatprep.subr.bf16.mxu0 0
    %221 = vmatpush1.bf16.msra.mxu0 %v197
    %222 = vmatprep.subr.bf16.mxu0 0
    %223 = vmatpush1.bf16.msra.mxu0 0
    %224 = vmatprep.subr.bf16.mxu0 0
    %225 = vmatpush1.bf16.msra.mxu0 0
    %226 = vmatprep.subr.bf16.mxu0 0
    %227 = vmatpush1.bf16.msra.mxu0 0
    %228 = vmatprep.subr.bf16.mxu0 0
    %229 = vmatpush1.bf16.msra.mxu0 0
    %230 = vmatprep.subr.bf16.mxu0 0
    %231 = vmatpush1.bf16.msra.mxu0 0
    %232 = vmatprep.subr.bf16.mxu0 0
    %233 = vmatpush1.bf16.msra.mxu0 0
    %234 = vmatprep.subr.bf16.mxu0 0
    %235 = vmatpush1.bf16.msra.mxu0 0
    %236 = vmatprep.subr.bf16.mxu0 0
    %237 = vmatpush1.bf16.msra.mxu0 0
    %238 = vmatprep.mubr.bf16.mxu0 0
    %239 = vmatmul.mubr.bf16.gmra.mrb[0].mxu0 %v134
    %v240 = vpop.f32.mrb[0].mxu0
    %v241 = vadd.f32 %v156, %v240
    %v242 = vpop.f32.mrb[0].mxu0
    %v243 = vpop.f32.mrb[0].mxu0
    %v244 = vpop.f32.mrb[0].mxu0
    %245 = vdwg.mxu0
    %v246 = vmax.f32 %v241, 0.0
    %v247 = vpack.c.bf16 %v246, %v246
    %v248 = vld [vmem:[#allocation6] sm:$0xf]
    %v249 = vld [vmem:[#allocation6 + $0x4] sm:$0xf]
    %v250 = vld [vmem:[#allocation6 + $0x8] sm:$0xf]
    %v251 = vld [vmem:[#allocation6 + $0xc] sm:$0xf]
    %v252 = vld [vmem:[#allocation6 + $0x10] sm:$0xf]
    %v253 = vld [vmem:[#allocation6 + $0x14] sm:$0xf]
    %v254 = vld [vmem:[#allocation6 + $0x18] sm:$0xf]
    %v255 = vld [vmem:[#allocation6 + $0x1c] sm:$0xf]
    %v256 = vld [vmem:[#allocation6 + $0x20] sm:$0xf]
    %v257 = vld [vmem:[#allocation6 + $0x24] sm:$0xf]
    %v258 = vld [vmem:[#allocation6 + $0x28] sm:$0xf]
    %v259 = vld [vmem:[#allocation6 + $0x2c] sm:$0xf]
    %v260 = vld [vmem:[#allocation6 + $0x30] sm:$0xf]
    %v261 = vld [vmem:[#allocation6 + $0x34] sm:$0xf]
    %v262 = vld [vmem:[#allocation6 + $0x38] sm:$0xf]
    %v263 = vld [vmem:[#allocation6 + $0x3c] sm:$0xf]
    %v264 = vld [vmem:[#allocation7] sm:$0x1]
    %v266 = vlaneseq
    %v267 = vshrl.u32 %v266, 7
    %v268 = vsub.s32 0, %v267
    %v269 = vrot.slane %v264, %v268
    %v287 = vunpack.c.l.b16 %v248
    %v288 = vunpack.c.l.b16 %v249
    %v289 = vunpack.c.l.b16 %v250
    %v290 = vunpack.c.l.b16 %v251
    %v291 = vunpack.c.l.b16 %v252
    %v292 = vunpack.c.l.b16 %v253
    %v293 = vunpack.c.l.b16 %v254
    %v294 = vunpack.c.l.b16 %v255
    %v295 = vunpack.c.l.b16 %v256
    %v296 = vunpack.c.l.b16 %v257
    %v297 = vunpack.c.l.b16 %v258
    %v298 = vunpack.c.l.b16 %v259
    %v299 = vunpack.c.l.b16 %v260
    %v300 = vunpack.c.l.b16 %v261
    %v301 = vunpack.c.l.b16 %v262
    %v302 = vunpack.c.l.b16 %v263
    %v303 = vpack.c.b16 %v288, %v287
    %v304 = vpack.c.b16 %v290, %v289
    %v305 = vpack.c.b16 %v292, %v291
    %v306 = vpack.c.b16 %v294, %v293
    %v307 = vpack.c.b16 %v296, %v295
    %v308 = vpack.c.b16 %v298, %v297
    %v309 = vpack.c.b16 %v300, %v299
    %v310 = vpack.c.b16 %v302, %v301
    %319 = vmatprep.subr.bf16.mxu0 0
    %320 = vmatpush1.bf16.msra.mxu0 %v303
    %321 = vmatprep.subr.bf16.mxu0 0
    %322 = vmatpush1.bf16.msra.mxu0 %v304
    %323 = vmatprep.subr.bf16.mxu0 0
    %324 = vmatpush1.bf16.msra.mxu0 %v305
    %325 = vmatprep.subr.bf16.mxu0 0
    %326 = vmatpush1.bf16.msra.mxu0 %v306
    %327 = vmatprep.subr.bf16.mxu0 0
    %328 = vmatpush1.bf16.msra.mxu0 %v307
    %329 = vmatprep.subr.bf16.mxu0 0
    %330 = vmatpush1.bf16.msra.mxu0 %v308
    %331 = vmatprep.subr.bf16.mxu0 0
    %332 = vmatpush1.bf16.msra.mxu0 %v309
    %333 = vmatprep.subr.bf16.mxu0 0
    %334 = vmatpush1.bf16.msra.mxu0 %v310
    %335 = vmatprep.subr.bf16.mxu0 0
    %336 = vmatpush1.bf16.msra.mxu0 0
    %337 = vmatprep.subr.bf16.mxu0 0
    %338 = vmatpush1.bf16.msra.mxu0 0
    %339 = vmatprep.subr.bf16.mxu0 0
    %340 = vmatpush1.bf16.msra.mxu0 0
    %341 = vmatprep.subr.bf16.mxu0 0
    %342 = vmatpush1.bf16.msra.mxu0 0
    %343 = vmatprep.subr.bf16.mxu0 0
    %344 = vmatpush1.bf16.msra.mxu0 0
    %345 = vmatprep.subr.bf16.mxu0 0
    %346 = vmatpush1.bf16.msra.mxu0 0
    %347 = vmatprep.subr.bf16.mxu0 0
    %348 = vmatpush1.bf16.msra.mxu0 0
    %349 = vmatprep.subr.bf16.mxu0 0
    %350 = vmatpush1.bf16.msra.mxu0 0
    %351 = vmatprep.mubr.bf16.mxu0 0
    %352 = vmatmul.mubr.bf16.gmra.mrb[0].mxu0 %v247
    %v353 = vpop.f32.mrb[0].mxu0
    %v354 = vadd.f32 %v269, %v353
    %v355 = vpop.f32.mrb[0].mxu0
    %v356 = vpop.f32.mrb[0].mxu0
    %v357 = vpop.f32.mrb[0].mxu0
    %358 = vdwg.mxu0
    %v359 = vmax.f32 %v354, 0.0
    %v360 = vpack.c.bf16 %v359, %v359
    %v361 = vld [vmem:[#allocation9] sm:$0xf]
    %v362 = vld [vmem:[#allocation9 + $0x4] sm:$0xf]
    %v363 = vld [vmem:[#allocation9 + $0x8] sm:$0xf]
    %v364 = vld [vmem:[#allocation9 + $0xc] sm:$0xf]
    %v365 = vld [vmem:[#allocation9 + $0x10] sm:$0xf]
    %v366 = vld [vmem:[#allocation9 + $0x14] sm:$0xf]
    %v367 = vld [vmem:[#allocation9 + $0x18] sm:$0xf]
    %v368 = vld [vmem:[#allocation9 + $0x1c] sm:$0xf]
    %v369 = vld [vmem:[#allocation9 + $0x20] sm:$0xf]
    %v370 = vld [vmem:[#allocation9 + $0x24] sm:$0xf]
    %v371 = vld [vmem:[#allocation9 + $0x28] sm:$0xf]
    %v372 = vld [vmem:[#allocation9 + $0x2c] sm:$0xf]
    %v373 = vld [vmem:[#allocation9 + $0x30] sm:$0xf]
    %v374 = vld [vmem:[#allocation9 + $0x34] sm:$0xf]
    %v375 = vld [vmem:[#allocation9 + $0x38] sm:$0xf]
    %v376 = vld [vmem:[#allocation9 + $0x3c] sm:$0xf]
    %v377 = vld [vmem:[#allocation10] sm:$0x1]
    %v379 = vlaneseq
    %v380 = vshrl.u32 %v379, 7
    %v381 = vsub.s32 0, %v380
    %v382 = vrot.slane %v377, %v381
    %v400 = vunpack.c.l.b16 %v361
    %v401 = vunpack.c.l.b16 %v362
    %v402 = vunpack.c.l.b16 %v363
    %v403 = vunpack.c.l.b16 %v364
    %v404 = vunpack.c.l.b16 %v365
    %v405 = vunpack.c.l.b16 %v366
    %v406 = vunpack.c.l.b16 %v367
    %v407 = vunpack.c.l.b16 %v368
    %v408 = vunpack.c.l.b16 %v369
    %v409 = vunpack.c.l.b16 %v370
    %v410 = vunpack.c.l.b16 %v371
    %v411 = vunpack.c.l.b16 %v372
    %v412 = vunpack.c.l.b16 %v373
    %v413 = vunpack.c.l.b16 %v374
    %v414 = vunpack.c.l.b16 %v375
    %v415 = vunpack.c.l.b16 %v376
    %v416 = vpack.c.b16 %v401, %v400
    %v417 = vpack.c.b16 %v403, %v402
    %v418 = vpack.c.b16 %v405, %v404
    %v419 = vpack.c.b16 %v407, %v406
    %v420 = vpack.c.b16 %v409, %v408
    %v421 = vpack.c.b16 %v411, %v410
    %v422 = vpack.c.b16 %v413, %v412
    %v423 = vpack.c.b16 %v415, %v414
    %432 = vmatprep.subr.bf16.mxu0 0
    %433 = vmatpush1.bf16.msra.mxu0 %v416
    %434 = vmatprep.subr.bf16.mxu0 0
    %435 = vmatpush1.bf16.msra.mxu0 %v417
    %436 = vmatprep.subr.bf16.mxu0 0
    %437 = vmatpush1.bf16.msra.mxu0 %v418
    %438 = vmatprep.subr.bf16.mxu0 0
    %439 = vmatpush1.bf16.msra.mxu0 %v419
    %440 = vmatprep.subr.bf16.mxu0 0
    %441 = vmatpush1.bf16.msra.mxu0 %v420
    %442 = vmatprep.subr.bf16.mxu0 0
    %443 = vmatpush1.bf16.msra.mxu0 %v421
    %444 = vmatprep.subr.bf16.mxu0 0
    %445 = vmatpush1.bf16.msra.mxu0 %v422
    %446 = vmatprep.subr.bf16.mxu0 0
    %447 = vmatpush1.bf16.msra.mxu0 %v423
    %448 = vmatprep.subr.bf16.mxu0 0
    %449 = vmatpush1.bf16.msra.mxu0 0
    %450 = vmatprep.subr.bf16.mxu0 0
    %451 = vmatpush1.bf16.msra.mxu0 0
    %452 = vmatprep.subr.bf16.mxu0 0
    %453 = vmatpush1.bf16.msra.mxu0 0
    %454 = vmatprep.subr.bf16.mxu0 0
    %455 = vmatpush1.bf16.msra.mxu0 0
    %456 = vmatprep.subr.bf16.mxu0 0
    %457 = vmatpush1.bf16.msra.mxu0 0
    %458 = vmatprep.subr.bf16.mxu0 0
    %459 = vmatpush1.bf16.msra.mxu0 0
    %460 = vmatprep.subr.bf16.mxu0 0
    %461 = vmatpush1.bf16.msra.mxu0 0
    %462 = vmatprep.subr.bf16.mxu0 0
    %463 = vmatpush1.bf16.msra.mxu0 0
    %464 = vmatprep.mubr.bf16.mxu0 0
    %465 = vmatmul.mubr.bf16.gmra.mrb[0].mxu0 %v360
    %v466 = vpop.f32.mrb[0].mxu0
    %v467 = vadd.f32 %v382, %v466
    %v468 = vpop.f32.mrb[0].mxu0
    %v469 = vpop.f32.mrb[0].mxu0
    %v470 = vpop.f32.mrb[0].mxu0
    %471 = vdwg.mxu0
    %v472 = vmax.f32 %v467, 0.0
    %v473 = vpack.c.bf16 %v472, %v472
    %v474 = vld [vmem:[#allocation12] sm:$0xf]
    %v475 = vld [vmem:[#allocation12 + $0x4] sm:$0xf]
    %v476 = vld [vmem:[#allocation12 + $0x8] sm:$0xf]
    %v477 = vld [vmem:[#allocation12 + $0xc] sm:$0xf]
    %v478 = vld [vmem:[#allocation12 + $0x10] sm:$0xf]
    %v479 = vld [vmem:[#allocation12 + $0x14] sm:$0xf]
    %v480 = vld [vmem:[#allocation12 + $0x18] sm:$0xf]
    %v481 = vld [vmem:[#allocation12 + $0x1c] sm:$0xf]
    %v482 = vld [vmem:[#allocation12 + $0x20] sm:$0xf]
    %v483 = vld [vmem:[#allocation12 + $0x24] sm:$0xf]
    %v484 = vld [vmem:[#allocation12 + $0x28] sm:$0xf]
    %v485 = vld [vmem:[#allocation12 + $0x2c] sm:$0xf]
    %v486 = vld [vmem:[#allocation12 + $0x30] sm:$0xf]
    %v487 = vld [vmem:[#allocation12 + $0x34] sm:$0xf]
    %v488 = vld [vmem:[#allocation12 + $0x38] sm:$0xf]
    %v489 = vld [vmem:[#allocation12 + $0x3c] sm:$0xf]
    %v490 = vld [vmem:[#allocation13] sm:$0x1]
    %v492 = vlaneseq
    %v493 = vshrl.u32 %v492, 7
    %v494 = vsub.s32 0, %v493
    %v495 = vrot.slane %v490, %v494
    %v513 = vunpack.c.l.b16 %v474
    %v514 = vunpack.c.l.b16 %v475
    %v515 = vunpack.c.l.b16 %v476
    %v516 = vunpack.c.l.b16 %v477
    %v517 = vunpack.c.l.b16 %v478
    %v518 = vunpack.c.l.b16 %v479
    %v519 = vunpack.c.l.b16 %v480
    %v520 = vunpack.c.l.b16 %v481
    %v521 = vunpack.c.l.b16 %v482
    %v522 = vunpack.c.l.b16 %v483
    %v523 = vunpack.c.l.b16 %v484
    %v524 = vunpack.c.l.b16 %v485
    %v525 = vunpack.c.l.b16 %v486
    %v526 = vunpack.c.l.b16 %v487
    %v527 = vunpack.c.l.b16 %v488
    %v528 = vunpack.c.l.b16 %v489
    %v529 = vpack.c.b16 %v514, %v513
    %v530 = vpack.c.b16 %v516, %v515
    %v531 = vpack.c.b16 %v518, %v517
    %v532 = vpack.c.b16 %v520, %v519
    %v533 = vpack.c.b16 %v522, %v521
    %v534 = vpack.c.b16 %v524, %v523
    %v535 = vpack.c.b16 %v526, %v525
    %v536 = vpack.c.b16 %v528, %v527
    %545 = vmatprep.subr.bf16.mxu0 0
    %546 = vmatpush1.bf16.msra.mxu0 %v529
    %547 = vmatprep.subr.bf16.mxu0 0
    %548 = vmatpush1.bf16.msra.mxu0 %v530
    %549 = vmatprep.subr.bf16.mxu0 0
    %550 = vmatpush1.bf16.msra.mxu0 %v531
    %551 = vmatprep.subr.bf16.mxu0 0
    %552 = vmatpush1.bf16.msra.mxu0 %v532
    %553 = vmatprep.subr.bf16.mxu0 0
    %554 = vmatpush1.bf16.msra.mxu0 %v533
    %555 = vmatprep.subr.bf16.mxu0 0
    %556 = vmatpush1.bf16.msra.mxu0 %v534
    %557 = vmatprep.subr.bf16.mxu0 0
    %558 = vmatpush1.bf16.msra.mxu0 %v535
    %559 = vmatprep.subr.bf16.mxu0 0
    %560 = vmatpush1.bf16.msra.mxu0 %v536
    %561 = vmatprep.subr.bf16.mxu0 0
    %562 = vmatpush1.bf16.msra.mxu0 0
    %563 = vmatprep.subr.bf16.mxu0 0
    %564 = vmatpush1.bf16.msra.mxu0 0
    %565 = vmatprep.subr.bf16.mxu0 0
    %566 = vmatpush1.bf16.msra.mxu0 0
    %567 = vmatprep.subr.bf16.mxu0 0
    %568 = vmatpush1.bf16.msra.mxu0 0
    %569 = vmatprep.subr.bf16.mxu0 0
    %570 = vmatpush1.bf16.msra.mxu0 0
    %571 = vmatprep.subr.bf16.mxu0 0
    %572 = vmatpush1.bf16.msra.mxu0 0
    %573 = vmatprep.subr.bf16.mxu0 0
    %574 = vmatpush1.bf16.msra.mxu0 0
    %575 = vmatprep.subr.bf16.mxu0 0
    %576 = vmatpush1.bf16.msra.mxu0 0
    %577 = vmatprep.mubr.bf16.mxu0 0
    %578 = vmatmul.mubr.bf16.gmra.mrb[0].mxu0 %v473
    %v579 = vpop.f32.mrb[0].mxu0
    %v580 = vadd.f32 %v495, %v579
    %v581 = vpop.f32.mrb[0].mxu0
    %v582 = vpop.f32.mrb[0].mxu0
    %v583 = vpop.f32.mrb[0].mxu0
    %584 = vdwg.mxu0
    %v585 = vmax.f32 %v580, 0.0
    %586 = vst [vmem:[%s9] sm:$0xff] %v585
    // Predicated region
    $region70: #{forward.13} parent=1 // pred_check
      _
    $region71: #{forward.13} parent=1 // pred_check_branch
      %588 = sbr.rel (0) target = $region73
    $region72: #{forward.13} parent=1 // pred_region
      _
    $region73: #{forward.13} parent=1 // pred_fallthru
      _
    // Predicated region
    $region74: #{forward.13} parent=1 // pred_check
      _
    $region75: #{forward.13} parent=1 // pred_check_branch
      %590 = sbr.rel (0) target = $region77
    $region76: #{forward.13} parent=1 // pred_region
      _
    $region77: #{forward.13} parent=1 // pred_fallthru
      _
    %591 = vsyncpa [#allocation3], 1
    %592 = vsyncpa [#allocation5], 1
    %593 = vsyncpa [#allocation8], 1
    %594 = vsyncpa [#allocation11], 1
    %595 = vsyncpa [#allocation14], 1

// kernel: forward.16
$region0: #{forward.16}
  #allocation0 [shape = 'u32[]', space=smem, size = 0x4, offset = 0x4, fixed_abs, tag = 'smem constant byte address 0x4 - core index']
  #allocation1 [shape = 'u32[144,128]{1,0:T(1,128)}', space=vmem, size = 0x12000, scoped, tag = 'internal scratch']
  %s0 = inlined_call_operand.vmem [shape: bf16[200,6], index: 0, kind: input, shape index: {}]
  %s1 = inlined_call_operand.hbm [shape: bf16[6,128], index: 1, kind: input, shape index: {}]
  %s2 = inlined_call_operand.vmem [shape: f32[200,128], index: 2, kind: output, shape index: {}]
  %s3 = sld [smem:[#allocation0]]
  $region22: #{forward.16} parent=0
    _
  %s5 = ssub.s32 1, %s3
  %s6 = scalar_select 0, %s5, %s3
  $region1: #{forward.16} parent=0
    #allocation2 [shape = 'u8[2048]{0}', space=vmem, size = 0x800, scoped, tag = 'input window, operand 1, single buffered']
    #allocation3 [shape = 's32[1]{0}', space=sflag, size = 0x4, scoped, tag = 'scoped memory for forward.16']
    %7 = vsyncpa [#allocation3], 0
    // Predicated region
    $region2: #{forward.16} parent=1 // pred_check
      _
    $region3: #{forward.16} parent=1 // pred_check_branch
      %9 = sbr.rel (0) target = $region5
    $region4: #{forward.16} parent=1 // pred_region
      _
    $region5: #{forward.16} parent=1 // pred_fallthru
      _
    // Predicated region
    $region6: #{forward.16} parent=1 // pred_check
      _
    $region7: #{forward.16} parent=1 // pred_check_branch
      %11 = sbr.rel (0) target = $region9
    $region8: #{forward.16} parent=1 // pred_region
      %s13 = ssub.s32 64, 64
      %14 = vsyncadd [#allocation3], %s13
      %s16 = sshll.u32 [#allocation2], 4
      %s17 = int_to_ptr.vmem [resolvable:$true] %s16
      %19 = dma.hbm_to_vmem [thread:$0]  %s1, 64, %s17, [#allocation3]
    $region9: #{forward.16} parent=1 // pred_fallthru
      _
    // Predicated region
    $region10: #{forward.16} parent=1 // pred_check
      _
    $region11: #{forward.16} parent=1 // pred_check_branch
      %21 = sbr.rel (0) target = $region13
    $region12: #{forward.16} parent=1 // pred_region
      %22 = dma.done [#allocation3], 64
    $region13: #{forward.16} parent=1 // pred_fallthru
      _
    %v24 = vld [vmem:[%s0] sm:$0xf]
    %v25 = vld [vmem:[%s0 + $0x4] sm:$0xf]
    %v26 = vld [vmem:[%s0 + $0x8] sm:$0xf]
    %v27 = vld [vmem:[%s0 + $0xc] sm:$0xf]
    %v28 = vld [vmem:[%s0 + $0x10] sm:$0xf]
    %v29 = vld [vmem:[%s0 + $0x14] sm:$0xf]
    %v30 = vld [vmem:[%s0 + $0x18] sm:$0xf]
    %v31 = vld [vmem:[%s0 + $0x1c] sm:$0xf]
    %v32 = vld [vmem:[%s0 + $0x20] sm:$0xf]
    %v33 = vld [vmem:[%s0 + $0x24] sm:$0xf]
    %v34 = vld [vmem:[%s0 + $0x28] sm:$0xf]
    %v35 = vld [vmem:[%s0 + $0x2c] sm:$0xf]
    %v36 = vld [vmem:[%s0 + $0x30] sm:$0xf]
    %v37 = vld [vmem:[%s0 + $0x34] sm:$0xf]
    %v38 = vld [vmem:[%s0 + $0x38] sm:$0xf]
    %v39 = vld [vmem:[%s0 + $0x3c] sm:$0xf]
    %v40 = vld [vmem:[%s0 + $0x40] sm:$0xf]
    %v41 = vld [vmem:[%s0 + $0x44] sm:$0xf]
    %v42 = vld [vmem:[%s0 + $0x48] sm:$0xf]
    %v43 = vld [vmem:[%s0 + $0x4c] sm:$0xf]
    %v44 = vld [vmem:[%s0 + $0x50] sm:$0xf]
    %v45 = vld [vmem:[%s0 + $0x54] sm:$0xf]
    %v46 = vld [vmem:[%s0 + $0x58] sm:$0xf]
    %v47 = vld [vmem:[%s0 + $0x5c] sm:$0xf]
    %v48 = vld [vmem:[%s0 + $0x60] sm:$0xf]
    %v49 = vld [vmem:[#allocation2] sm:$0x7]
    %v75 = vunpack.c.l.b16 %v24
    %v76 = vunpack.c.l.b16 %v25
    %v77 = vunpack.c.l.b16 %v26
    %v78 = vunpack.c.l.b16 %v27
    %v79 = vunpack.c.l.b16 %v28
    %v80 = vunpack.c.l.b16 %v29
    %v81 = vunpack.c.l.b16 %v30
    %v82 = vunpack.c.l.b16 %v31
    %v83 = vunpack.c.l.b16 %v32
    %v84 = vunpack.c.l.b16 %v33
    %v85 = vunpack.c.l.b16 %v34
    %v86 = vunpack.c.l.b16 %v35
    %v87 = vunpack.c.l.b16 %v36
    %v88 = vunpack.c.l.b16 %v37
    %v89 = vunpack.c.l.b16 %v38
    %v90 = vunpack.c.l.b16 %v39
    %v91 = vunpack.c.l.b16 %v40
    %v92 = vunpack.c.l.b16 %v41
    %v93 = vunpack.c.l.b16 %v42
    %v94 = vunpack.c.l.b16 %v43
    %v95 = vunpack.c.l.b16 %v44
    %v96 = vunpack.c.l.b16 %v45
    %v97 = vunpack.c.l.b16 %v46
    %v98 = vunpack.c.l.b16 %v47
    %v99 = vunpack.c.l.b16 %v48
    %v100 = vpack.c.b16 %v76, %v75
    %v101 = vpack.c.b16 %v78, %v77
    %v102 = vpack.c.b16 %v80, %v79
    %v103 = vpack.c.b16 %v82, %v81
    %v104 = vpack.c.b16 %v84, %v83
    %v105 = vpack.c.b16 %v86, %v85
    %v106 = vpack.c.b16 %v88, %v87
    %v107 = vpack.c.b16 %v90, %v89
    %v108 = vpack.c.b16 %v92, %v91
    %v109 = vpack.c.b16 %v94, %v93
    %v110 = vpack.c.b16 %v96, %v95
    %v111 = vpack.c.b16 %v98, %v97
    %v112 = vpack.c.b16 %v99, %v99
    %vm113 = vcmask 48128
    %v115 = vsel %vm113, %v100, 0
    %v118 = vsel %vm113, %v101, 0
    %v121 = vsel %vm113, %v102, 0
    %v124 = vsel %vm113, %v103, 0
    %v127 = vsel %vm113, %v104, 0
    %v130 = vsel %vm113, %v105, 0
    %v133 = vsel %vm113, %v106, 0
    %v136 = vsel %vm113, %v107, 0
    %v139 = vsel %vm113, %v108, 0
    %v142 = vsel %vm113, %v109, 0
    %v145 = vsel %vm113, %v110, 0
    %v148 = vsel %vm113, %v111, 0
    %v151 = vsel %vm113, %v112, 0
    %vm153 = vcmask 1042432
    %v155 = vsel %vm153, %v49, 0
    %157 = vmatprep.subr.bf16.mxu0 0
    %158 = vmatpush1.bf16.msra.mxu0 %v155
    %159 = vmatprep.subr.bf16.mxu0 0
    %160 = vmatpush1.bf16.msra.mxu0 0
    %161 = vmatprep.subr.bf16.mxu0 0
    %162 = vmatpush1.bf16.msra.mxu0 0
    %163 = vmatprep.subr.bf16.mxu0 0
    %164 = vmatpush1.bf16.msra.mxu0 0
    %165 = vmatprep.subr.bf16.mxu0 0
    %166 = vmatpush1.bf16.msra.mxu0 0
    %167 = vmatprep.subr.bf16.mxu0 0
    %168 = vmatpush1.bf16.msra.mxu0 0
    %169 = vmatprep.subr.bf16.mxu0 0
    %170 = vmatpush1.bf16.msra.mxu0 0
    %171 = vmatprep.subr.bf16.mxu0 0
    %172 = vmatpush1.bf16.msra.mxu0 0
    %173 = vmatprep.subr.bf16.mxu0 0
    %174 = vmatpush1.bf16.msra.mxu0 0
    %175 = vmatprep.subr.bf16.mxu0 0
    %176 = vmatpush1.bf16.msra.mxu0 0
    %177 = vmatprep.subr.bf16.mxu0 0
    %178 = vmatpush1.bf16.msra.mxu0 0
    %179 = vmatprep.subr.bf16.mxu0 0
    %180 = vmatpush1.bf16.msra.mxu0 0
    %181 = vmatprep.subr.bf16.mxu0 0
    %182 = vmatpush1.bf16.msra.mxu0 0
    %183 = vmatprep.subr.bf16.mxu0 0
    %184 = vmatpush1.bf16.msra.mxu0 0
    %185 = vmatprep.subr.bf16.mxu0 0
    %186 = vmatpush1.bf16.msra.mxu0 0
    %187 = vmatprep.subr.bf16.mxu0 0
    %188 = vmatpush1.bf16.msra.mxu0 0
    %189 = vmatprep.mubr.bf16.mxu0 0
    %190 = vmatmul.mubr.bf16.gmra.mrb[0].mxu0 %v115
    %v191 = vpop.f32.mrb[0].mxu0
    %v192 = vadd.f32 0.0, %v191
    %v193 = vpop.f32.mrb[0].mxu0
    %v194 = vpop.f32.mrb[0].mxu0
    %v195 = vadd.f32 0.0, %v194
    %v196 = vpop.f32.mrb[0].mxu0
    %197 = vmatprep.mubr.bf16.mxu0 0
    %198 = vmatmul.mubr.bf16.gmra.mrb[0].mxu0 %v118
    %v199 = vpop.f32.mrb[0].mxu0
    %v200 = vadd.f32 0.0, %v199
    %v201 = vpop.f32.mrb[0].mxu0
    %v202 = vpop.f32.mrb[0].mxu0
    %v203 = vadd.f32 0.0, %v202
    %v204 = vpop.f32.mrb[0].mxu0
    %205 = vmatprep.mubr.bf16.mxu0 0
    %206 = vmatmul.mubr.bf16.gmra.mrb[0].mxu0 %v121
    %v207 = vpop.f32.mrb[0].mxu0
    %v208 = vadd.f32 0.0, %v207
    %v209 = vpop.f32.mrb[0].mxu0
    %v210 = vpop.f32.mrb[0].mxu0
    %v211 = vadd.f32 0.0, %v210
    %v212 = vpop.f32.mrb[0].mxu0
    %213 = vmatprep.mubr.bf16.mxu0 0
    %214 = vmatmul.mubr.bf16.gmra.mrb[0].mxu0 %v124
    %v215 = vpop.f32.mrb[0].mxu0
    %v216 = vadd.f32 0.0, %v215
    %v217 = vpop.f32.mrb[0].mxu0
    %v218 = vpop.f32.mrb[0].mxu0
    %v219 = vadd.f32 0.0, %v218
    %v220 = vpop.f32.mrb[0].mxu0
    %221 = vmatprep.mubr.bf16.mxu0 0
    %222 = vmatmul.mubr.bf16.gmra.mrb[0].mxu0 %v127
    %v223 = vpop.f32.mrb[0].mxu0
    %v224 = vadd.f32 0.0, %v223
    %v225 = vpop.f32.mrb[0].mxu0
    %v226 = vpop.f32.mrb[0].mxu0
    %v227 = vadd.f32 0.0, %v226
    %v228 = vpop.f32.mrb[0].mxu0
    %229 = vmatprep.mubr.bf16.mxu0 0
    %230 = vmatmul.mubr.bf16.gmra.mrb[0].mxu0 %v130
    %v231 = vpop.f32.mrb[0].mxu0
    %v232 = vadd.f32 0.0, %v231
    %v233 = vpop.f32.mrb[0].mxu0
    %v234 = vpop.f32.mrb[0].mxu0
    %v235 = vadd.f32 0.0, %v234
    %v236 = vpop.f32.mrb[0].mxu0
    %237 = vmatprep.mubr.bf16.mxu0 0
    %238 = vmatmul.mubr.bf16.gmra.mrb[0].mxu0 %v133
    %v239 = vpop.f32.mrb[0].mxu0
    %v240 = vadd.f32 0.0, %v239
    %v241 = vpop.f32.mrb[0].mxu0
    %v242 = vpop.f32.mrb[0].mxu0
    %v243 = vadd.f32 0.0, %v242
    %v244 = vpop.f32.mrb[0].mxu0
    %245 = vmatprep.mubr.bf16.mxu0 0
    %246 = vmatmul.mubr.bf16.gmra.mrb[0].mxu0 %v136
    %v247 = vpop.f32.mrb[0].mxu0
    %v248 = vadd.f32 0.0, %v247
    %v249 = vpop.f32.mrb[0].mxu0
    %v250 = vpop.f32.mrb[0].mxu0
    %v251 = vadd.f32 0.0, %v250
    %v252 = vpop.f32.mrb[0].mxu0
    %253 = vmatprep.mubr.bf16.mxu0 0
    %254 = vmatmul.mubr.bf16.gmra.mrb[0].mxu0 %v139
    %v255 = vpop.f32.mrb[0].mxu0
    %v256 = vadd.f32 0.0, %v255
    %v257 = vpop.f32.mrb[0].mxu0
    %v258 = vpop.f32.mrb[0].mxu0
    %v259 = vadd.f32 0.0, %v258
    %v260 = vpop.f32.mrb[0].mxu0
    %261 = vmatprep.mubr.bf16.mxu0 0
    %262 = vmatmul.mubr.bf16.gmra.mrb[0].mxu0 %v142
    %v263 = vpop.f32.mrb[0].mxu0
    %v264 = vadd.f32 0.0, %v263
    %v265 = vpop.f32.mrb[0].mxu0
    %v266 = vpop.f32.mrb[0].mxu0
    %v267 = vadd.f32 0.0, %v266
    %v268 = vpop.f32.mrb[0].mxu0
    %269 = vmatprep.mubr.bf16.mxu0 0
    %270 = vmatmul.mubr.bf16.gmra.mrb[0].mxu0 %v145
    %v271 = vpop.f32.mrb[0].mxu0
    %v272 = vadd.f32 0.0, %v271
    %v273 = vpop.f32.mrb[0].mxu0
    %v274 = vpop.f32.mrb[0].mxu0
    %v275 = vadd.f32 0.0, %v274
    %v276 = vpop.f32.mrb[0].mxu0
    %277 = vmatprep.mubr.bf16.mxu0 0
    %278 = vmatmul.mubr.bf16.gmra.mrb[0].mxu0 %v148
    %v279 = vpop.f32.mrb[0].mxu0
    %v280 = vadd.f32 0.0, %v279
    %v281 = vpop.f32.mrb[0].mxu0
    %v282 = vpop.f32.mrb[0].mxu0
    %v283 = vadd.f32 0.0, %v282
    %v284 = vpop.f32.mrb[0].mxu0
    %285 = vmatprep.mubr.bf16.mxu0 0
    %286 = vmatmul.mubr.bf16.gmra.mrb[0].mxu0 %v151
    %v287 = vpop.f32.mrb[0].mxu0
    %v288 = vadd.f32 0.0, %v287
    %v289 = vpop.f32.mrb[0].mxu0
    %v290 = vpop.f32.mrb[0].mxu0
    %v291 = vpop.f32.mrb[0].mxu0
    %292 = vdwg.mxu0
    %293 = vst [vmem:[%s2] sm:$0xff] %v192
    %294 = vst [vmem:[%s2 + $0x8] sm:$0xff] %v195
    %295 = vst [vmem:[%s2 + $0x10] sm:$0xff] %v200
    %296 = vst [vmem:[%s2 + $0x18] sm:$0xff] %v203
    %297 = vst [vmem:[%s2 + $0x20] sm:$0xff] %v208
    %298 = vst [vmem:[%s2 + $0x28] sm:$0xff] %v211
    %299 = vst [vmem:[%s2 + $0x30] sm:$0xff] %v216
    %300 = vst [vmem:[%s2 + $0x38] sm:$0xff] %v219
    %301 = vst [vmem:[%s2 + $0x40] sm:$0xff] %v224
    %302 = vst [vmem:[%s2 + $0x48] sm:$0xff] %v227
    %303 = vst [vmem:[%s2 + $0x50] sm:$0xff] %v232
    %304 = vst [vmem:[%s2 + $0x58] sm:$0xff] %v235
    %305 = vst [vmem:[%s2 + $0x60] sm:$0xff] %v240
    %306 = vst [vmem:[%s2 + $0x68] sm:$0xff] %v243
    %307 = vst [vmem:[%s2 + $0x70] sm:$0xff] %v248
    %308 = vst [vmem:[%s2 + $0x78] sm:$0xff] %v251
    %309 = vst [vmem:[%s2 + $0x80] sm:$0xff] %v256
    %310 = vst [vmem:[%s2 + $0x88] sm:$0xff] %v259
    %311 = vst [vmem:[%s2 + $0x90] sm:$0xff] %v264
    %312 = vst [vmem:[%s2 + $0x98] sm:$0xff] %v267
    %313 = vst [vmem:[%s2 + $0xa0] sm:$0xff] %v272
    %314 = vst [vmem:[%s2 + $0xa8] sm:$0xff] %v275
    %315 = vst [vmem:[%s2 + $0xb0] sm:$0xff] %v280
    %316 = vst [vmem:[%s2 + $0xb8] sm:$0xff] %v283
    %317 = vst [vmem:[%s2 + $0xc0] sm:$0xff] %v288
    // Predicated region
    $region14: #{forward.16} parent=1 // pred_check
      _
    $region15: #{forward.16} parent=1 // pred_check_branch
      %319 = sbr.rel (0) target = $region17
    $region16: #{forward.16} parent=1 // pred_region
      _
    $region17: #{forward.16} parent=1 // pred_fallthru
      _
    // Predicated region
    $region18: #{forward.16} parent=1 // pred_check
      _
    $region19: #{forward.16} parent=1 // pred_check_branch
      %321 = sbr.rel (0) target = $region21
    $region20: #{forward.16} parent=1 // pred_region
      _
    $region21: #{forward.16} parent=1 // pred_fallthru
      _
    %322 = vsyncpa [#allocation3], 1

// kernel: forward.15
$region0: #{forward.15}
  #allocation0 [shape = 'u32[]', space=smem, size = 0x4, offset = 0x4, fixed_abs, tag = 'smem constant byte address 0x4 - core index']
  #allocation1 [shape = 'u32[144,128]{1,0:T(1,128)}', space=vmem, size = 0x12000, scoped, tag = 'internal scratch']
  %s0 = inlined_call_operand.vmem [shape: f32[8,128], index: 0, kind: input, shape index: {}]
  %s1 = inlined_call_operand.vmem [shape: s32[8,128], index: 1, kind: input, shape index: {}]
  %s2 = inlined_call_operand.vmem [shape: f32[4,8,128], index: 2, kind: output, shape index: {}]
  %s3 = sld [smem:[#allocation0]]
  $region18: #{forward.15} parent=0
    _
  %s5 = ssub.s32 1, %s3
  %s6 = scalar_select 0, %s5, %s3
  // Predicated region
  $region2: #{forward.15} parent=0 // pred_check
    _
  $region3: #{forward.15} parent=0 // pred_check_branch
    %8 = sbr.rel (0) target = $region5
  $region4: #{forward.15} parent=0 // pred_region
    _
  $region5: #{forward.15} parent=0 // pred_fallthru
    _
  // Predicated region
  $region6: #{forward.15} parent=0 // pred_check
    _
  $region7: #{forward.15} parent=0 // pred_check_branch
    %10 = sbr.rel (0) target = $region9
  $region8: #{forward.15} parent=0 // pred_region
    _
  $region9: #{forward.15} parent=0 // pred_fallthru
    _
  %v11 = vld [vmem:[%s0] sm:$0xff]
  %v12 = vld [vmem:[%s1] sm:$0xff]
  %vm13 = vcmp.eq.s32.totalorder %v12, 0
  %v14 = vsel %vm13, %v11, 0.0
  %15 = vst [vmem:[%s2] sm:$0xff] %v14
  %vm16 = vcmp.eq.s32.totalorder %v12, 1
  %v17 = vsel %vm16, %v11, 0.0
  %s18 = scalar_lea.vmem %s2, 8
  %19 = vst [vmem:[%s18] sm:$0xff] %v17
  %vm20 = vcmp.eq.s32.totalorder %v12, 2
  %v21 = vsel %vm20, %v11, 0.0
  %s22 = scalar_lea.vmem %s2, 16
  %23 = vst [vmem:[%s22] sm:$0xff] %v21
  %vm24 = vcmp.eq.s32.totalorder %v12, 3
  %v25 = vsel %vm24, %v11, 0.0
  %s26 = scalar_lea.vmem %s2, 24
  %27 = vst [vmem:[%s26] sm:$0xff] %v25
  // Predicated region
  $region10: #{forward.15} parent=0 // pred_check
    _
  $region11: #{forward.15} parent=0 // pred_check_branch
    %29 = sbr.rel (0) target = $region13
  $region12: #{forward.15} parent=0 // pred_region
    _
  $region13: #{forward.15} parent=0 // pred_fallthru
    _
  // Predicated region
  $region14: #{forward.15} parent=0 // pred_check
    _
  $region15: #{forward.15} parent=0 // pred_check_branch
    %31 = sbr.rel (0) target = $region17
  $region16: #{forward.15} parent=0 // pred_region
    _
  $region17: #{forward.15} parent=0 // pred_fallthru
    _

// kernel: forward.17
$region0: #{forward.17}
  #allocation0 [shape = 'u32[]', space=smem, size = 0x4, offset = 0x4, fixed_abs, tag = 'smem constant byte address 0x4 - core index']
  #allocation1 [shape = 'u32[144,128]{1,0:T(1,128)}', space=vmem, size = 0x12000, scoped, tag = 'internal scratch']
  %s0 = inlined_call_operand.vmem [shape: bf16[3750,225], index: 0, kind: input, shape index: {}]
  %s1 = inlined_call_operand.vmem [shape: bf16[225,128], index: 1, kind: input, shape index: {}]
  %s2 = inlined_call_operand.vmem [shape: f32[1,128], index: 2, kind: input, shape index: {}]
  %s3 = inlined_call_operand.vmem [shape: f32[3750,128], index: 3, kind: output, shape index: {}]
  %s4 = sld [smem:[#allocation0]]
  $region93: #{forward.17} parent=0
    _
  %s6 = ssub.s32 1, %s4
  %s7 = scalar_select 0, %s6, %s4
  $region1: #{forward.17} parent=0
    #allocation2 [shape = 'u8[524288]{0}', space=vmem, size = 0x80000, scoped, tag = 'output window, operand 0']
    loop: start=0, step=1, limit=10
    $region2: #{forward.17} parent=1 // loop_pre_header
      _
    $region3: #{forward.17} parent=1 // loop_header
      %s9 = sphi 0, %s13
      %p10 = scmp.ge.s32.totalorder %s9, 10
      %s19 = sphi 0, %s21
      %s22 = sphi 0, %s19
      %s23 = sphi 0, %s22
      %s39 = sphi 0, %s23
      %s43 = sphi 0, %s43
      %s45 = sphi 0, %s43
      %s46 = sphi 0, %s45
      %s60 = sphi 0, %s46
      %s64 = sphi 0, %s64
      %s66 = sphi 0, %s64
      %s67 = sphi 0, %s66
      %s81 = sphi 0, %s67
      %s87 = sphi 0, %s89
      %s90 = sphi 0, %s87
      %s91 = sphi 0, %s90
      %s107 = sphi 0, %s91
    $region4: #{forward.17} parent=1 // loop_header_branch
      %12 = sbr.rel (%p10) target = $region8
    $region5: #{forward.17} parent=1 // loop_body
      %s14 = ssub.s32 %s9, 1
      %s15 = ssub.s32 %s9, 2
      %s16 = sadd.s32 %s9, 1
      %s17 = ssub.s32 %s9, %s16
      %p18 = scmp.eq.s32.totalorder %s17, 0
      %s20 = sadd.s32 %s19, 1
      %s21 = scalar_select %p18, %s19, %s20
      %p24 = pneg %p18
      %p25 = scmp.eq.s32.totalorder %s9, 7
      %p26 = por %p24, %p25
      %p27 = scmp.ne.s32.totalorder %s19, %s22
      %p28 = scmp.eq.s32.totalorder %s9, 0
      %p29 = por %p27, %p28
      %p30 = scmp.ne.s32.totalorder %s19, %s22
      %p31 = scmp.eq.s32.totalorder %s14, 7
      %p32 = por %p30, %p31
      %p33 = scmp.ne.s32.totalorder %s22, %s23
      %p34 = scmp.eq.s32.totalorder %s14, 0
      %p35 = por %p33, %p34
      %p36 = scmp.ne.s32.totalorder %s22, %s23
      %p37 = scmp.eq.s32.totalorder %s15, 7
      %p38 = por %p36, %p37
      %p40 = scmp.ne.s32.totalorder %s23, %s39
      %p41 = scmp.eq.s32.totalorder %s15, 0
      %p42 = por %p40, %p41
      %s44 = sadd.s32 %s43, 1
      %p47 = scmp.eq.s32.totalorder %s9, 7
      %p48 = scmp.ne.s32.totalorder %s43, %s45
      %p49 = scmp.eq.s32.totalorder %s9, 0
      %p50 = por %p48, %p49
      %p51 = scmp.ne.s32.totalorder %s43, %s45
      %p52 = scmp.eq.s32.totalorder %s14, 7
      %p53 = por %p51, %p52
      %p54 = scmp.ne.s32.totalorder %s45, %s46
      %p55 = scmp.eq.s32.totalorder %s14, 0
      %p56 = por %p54, %p55
      %p57 = scmp.ne.s32.totalorder %s45, %s46
      %p58 = scmp.eq.s32.totalorder %s15, 7
      %p59 = por %p57, %p58
      %p61 = scmp.ne.s32.totalorder %s46, %s60
      %p62 = scmp.eq.s32.totalorder %s15, 0
      %p63 = por %p61, %p62
      %s65 = sadd.s32 %s64, 1
      %p68 = scmp.eq.s32.totalorder %s9, 7
      %p69 = scmp.ne.s32.totalorder %s64, %s66
      %p70 = scmp.eq.s32.totalorder %s9, 0
      %p71 = por %p69, %p70
      %p72 = scmp.ne.s32.totalorder %s64, %s66
      %p73 = scmp.eq.s32.totalorder %s14, 7
      %p74 = por %p72, %p73
      %p75 = scmp.ne.s32.totalorder %s66, %s67
      %p76 = scmp.eq.s32.totalorder %s14, 0
      %p77 = por %p75, %p76
      %p78 = scmp.ne.s32.totalorder %s66, %s67
      %p79 = scmp.eq.s32.totalorder %s15, 7
      %p80 = por %p78, %p79
      %p82 = scmp.ne.s32.totalorder %s67, %s81
      %p83 = scmp.eq.s32.totalorder %s15, 0
      %p84 = por %p82, %p83
      %s85 = ssub.s32 %s9, %s16
      %p86 = scmp.eq.s32.totalorder %s85, 0
      %s88 = sadd.s32 %s87, 1
      %s89 = scalar_select %p86, %s87, %s88
      %p92 = pneg %p86
      %p93 = scmp.eq.s32.totalorder %s9, 7
      %p94 = por %p92, %p93
      %p95 = scmp.ne.s32.totalorder %s87, %s90
      %p96 = scmp.eq.s32.totalorder %s9, 0
      %p97 = por %p95, %p96
      %p98 = scmp.ne.s32.totalorder %s87, %s90
      %p99 = scmp.eq.s32.totalorder %s14, 7
      %p100 = por %p98, %p99
      %p101 = scmp.ne.s32.totalorder %s90, %s91
      %p102 = scmp.eq.s32.totalorder %s14, 0
      %p103 = por %p101, %p102
      %p104 = scmp.ne.s32.totalorder %s90, %s91
      %p105 = scmp.eq.s32.totalorder %s15, 7
      %p106 = por %p104, %p105
      %p108 = scmp.ne.s32.totalorder %s91, %s107
      %p109 = scmp.eq.s32.totalorder %s15, 0
      %p110 = por %p108, %p109
      %p111 = scmp.le.s32.totalorder 1, %s9
      %p112 = scmp.lt.s32.totalorder %s9, 9
      %p113 = pnand %p111, %p112
      %p114 = pneg %p113
      // Predicated region
      $region9: #{forward.17} parent=5 // pred_check
        _
      $region10: #{forward.17} parent=5 // pred_check_branch
        %116 = sbr.rel (%p113) target = $region12
      $region11: #{forward.17} parent=5 // pred_region
        %s117 = ssub.s32 %s9, 1
        // Predicated region
        $region13: #{forward.17} parent=11 // pred_check
          %p118 = pneg %p56
        $region14: #{forward.17} parent=11 // pred_check_branch
          %120 = sbr.rel (%p118) target = $region16
        $region15: #{forward.17} parent=11 // pred_region
          _
        $region16: #{forward.17} parent=11 // pred_fallthru
          _
        // Predicated region
        $region17: #{forward.17} parent=11 // pred_check
          %p121 = pneg %p77
        $region18: #{forward.17} parent=11 // pred_check_branch
          %123 = sbr.rel (%p121) target = $region20
        $region19: #{forward.17} parent=11 // pred_region
          _
        $region20: #{forward.17} parent=11 // pred_fallthru
          _
      $region12: #{forward.17} parent=5 // pred_fallthru
        _
      %p124 = scmp.lt.s32.totalorder %s9, 8
      // Predicated region
      $region21: #{forward.17} parent=5 // pred_check
        %p125 = pneg %p124
      $region22: #{forward.17} parent=5 // pred_check_branch
        %127 = sbr.rel (%p125) target = $region24
      $region23: #{forward.17} parent=5 // pred_region
        // Predicated region
        $region25: #{forward.17} parent=23 // pred_check
          %p128 = pneg %p29
        $region26: #{forward.17} parent=23 // pred_check_branch
          %130 = sbr.rel (%p128) target = $region28
        $region27: #{forward.17} parent=23 // pred_region
          %s131 = smul.u32 64, %s9
          %s132 = ssub.s32 469, %s131
          %p133 = scmp.lt.s32.totalorder %s132, 64
          %s134 = scalar_select %p133, %s132, 64
          %s135 = smul.u32 64, %s134
          %s136 = smul.u32 %s135, 2
          %p137 = scmp.lt.s32.totalorder %s131, 468
          %s138 = scalar_select %p137, %s131, 468
          %s139 = smul.addr %s138, 2
          %s140 = smul.addr %s139, 4
          %s141 = scalar_lea.vmem %s0, %s140
          %s142 = smul.u32 64, %s9
          %s143 = ssub.s32 469, %s142
          %p144 = scmp.lt.s32.totalorder %s143, 64
          %s145 = scalar_select %p144, %s143, 64
          %s146 = smul.u32 64, %s145
          %s147 = smul.u32 %s146, 2
        $region28: #{forward.17} parent=23 // pred_fallthru
          _
      $region24: #{forward.17} parent=5 // pred_fallthru
        _
      %p148 = scmp.le.s32.totalorder 1, %s9
      %p149 = scmp.lt.s32.totalorder %s9, 9
      %p150 = pnand %p148, %p149
      %p151 = pneg %p150
      // Predicated region
      $region29: #{forward.17} parent=5 // pred_check
        _
      $region30: #{forward.17} parent=5 // pred_check_branch
        %153 = sbr.rel (%p150) target = $region32
      $region31: #{forward.17} parent=5 // pred_region
        %s154 = ssub.s32 %s9, 1
        %s155 = smul.u32 64, %s14
        %s156 = ssub.s32 469, %s155
        %p157 = scmp.lt.s32.totalorder %s156, 64
        %s158 = scalar_select %p157, %s156, 64
        %s159 = smul.u32 64, %s158
        %s160 = smul.u32 %s159, 2
        %p161 = scmp.lt.s32.totalorder %s155, 468
        %s162 = scalar_select %p161, %s155, 468
        %s163 = smul.addr %s162, 2
        %s164 = smul.addr %s163, 4
        %s165 = scalar_lea.vmem %s0, %s164
        %p166 = pneg %p35
        %p167 = pneg %p32
        %p168 = pneg %p56
        %p169 = pneg %p53
        %p170 = pneg %p77
        %p171 = pneg %p74
        %p172 = pneg %p103
        %p173 = pneg %p100
        %s174 = sand.u32 %s90, 1
        %s175 = sand.u32 %s90, 1
        %s176 = smul.addr %s175, 512
        %s177 = scalar_lea.vmem [#allocation2], %s176
        %s178 = smul.u32 64, %s14
        %s179 = ssub.s32 469, %s178
        %p180 = scmp.lt.s32.totalorder %s179, 64
        %s181 = scalar_select %p180, %s179, 64
        %s182 = smul.u32 64, %s181
        %s183 = smul.u32 %s182, 2
        %p184 = scmp.lt.s32.totalorder %s178, 468
        %s185 = scalar_select %p184, %s178, 468
        %s186 = smul.addr %s185, 2
        %s187 = smul.addr %s186, 4
        %s188 = scalar_lea.vmem %s0, %s187
        %s189 = smul.u32 64, %s14
        %s190 = ssub.s32 469, %s189
        %p191 = scmp.lt.s32.totalorder %s190, 64
        %s192 = scalar_select %p191, %s190, 64
        %s193 = smul.u32 64, %s192
        %s194 = smul.u32 %s193, 2
        %s195 = smul.u32 64, %s14
        %s196 = ssub.s32 469, %s195
        %p197 = scmp.lt.s32.totalorder %s196, 64
        %s198 = scalar_select %p197, %s196, 64
        %s199 = smul.u32 128, %s198
        %v201 = vld [vmem:[%s188] sm:$0xff]
        %v202 = vld [vmem:[%s188 + $0x8] sm:$0xff]
        %v203 = vld [vmem:[%s188 + $0x10] sm:$0xff]
        %v204 = vld [vmem:[%s188 + $0x18] sm:$0xff]
        %v205 = vld [vmem:[%s188 + $0x20] sm:$0xff]
        %v206 = vld [vmem:[%s188 + $0x28] sm:$0xff]
        %v207 = vld [vmem:[%s188 + $0x30] sm:$0xff]
        %v208 = vld [vmem:[%s188 + $0x38] sm:$0xff]
        %v209 = vld [vmem:[%s188 + $0x40] sm:$0xff]
        %v210 = vld [vmem:[%s188 + $0x48] sm:$0xff]
        %v211 = vld [vmem:[%s188 + $0x50] sm:$0xff]
        %v212 = vld [vmem:[%s188 + $0x58] sm:$0xff]
        %v213 = vld [vmem:[%s188 + $0x60] sm:$0xff]
        %v214 = vld [vmem:[%s188 + $0x68] sm:$0xff]
        %v215 = vld [vmem:[%s188 + $0x70] sm:$0xff]
        %v216 = vld [vmem:[%s188 + $0x78] sm:$0xff]
        %v217 = vld [vmem:[%s188 + $0x80] sm:$0xff]
        %v218 = vld [vmem:[%s188 + $0x88] sm:$0xff]
        %v219 = vld [vmem:[%s188 + $0x90] sm:$0xff]
        %v220 = vld [vmem:[%s188 + $0x98] sm:$0xff]
        %v221 = vld [vmem:[%s188 + $0xa0] sm:$0xff]
        %v222 = vld [vmem:[%s188 + $0xa8] sm:$0xff]
        %v223 = vld [vmem:[%s188 + $0xb0] sm:$0xff]
        %v224 = vld [vmem:[%s188 + $0xb8] sm:$0xff]
        %v225 = vld [vmem:[%s188 + $0xc0] sm:$0xff]
        %v226 = vld [vmem:[%s188 + $0xc8] sm:$0xff]
        %v227 = vld [vmem:[%s188 + $0xd0] sm:$0xff]
        %v228 = vld [vmem:[%s188 + $0xd8] sm:$0xff]
        %v229 = vld [vmem:[%s188 + $0xe0] sm:$0xff]
        %v230 = vld [vmem:[%s188 + $0xe8] sm:$0xff]
        %v231 = vld [vmem:[%s188 + $0xf0] sm:$0xff]
        %v232 = vld [vmem:[%s188 + $0xf8] sm:$0xff]
        %v233 = vld [vmem:[%s188 + $0x100] sm:$0xff]
        %v234 = vld [vmem:[%s188 + $0x108] sm:$0xff]
        %v235 = vld [vmem:[%s188 + $0x110] sm:$0xff]
        %v236 = vld [vmem:[%s188 + $0x118] sm:$0xff]
        %v237 = vld [vmem:[%s188 + $0x120] sm:$0xff]
        %v238 = vld [vmem:[%s188 + $0x128] sm:$0xff]
        %v239 = vld [vmem:[%s188 + $0x130] sm:$0xff]
        %v240 = vld [vmem:[%s188 + $0x138] sm:$0xff]
        %v241 = vld [vmem:[%s188 + $0x140] sm:$0xff]
        %v242 = vld [vmem:[%s188 + $0x148] sm:$0xff]
        %v243 = vld [vmem:[%s188 + $0x150] sm:$0xff]
        %v244 = vld [vmem:[%s188 + $0x158] sm:$0xff]
        %v245 = vld [vmem:[%s188 + $0x160] sm:$0xff]
        %v246 = vld [vmem:[%s188 + $0x168] sm:$0xff]
        %v247 = vld [vmem:[%s188 + $0x170] sm:$0xff]
        %v248 = vld [vmem:[%s188 + $0x178] sm:$0xff]
        %v249 = vld [vmem:[%s188 + $0x180] sm:$0xff]
        %v250 = vld [vmem:[%s188 + $0x188] sm:$0xff]
        %v251 = vld [vmem:[%s188 + $0x190] sm:$0xff]
        %v252 = vld [vmem:[%s188 + $0x198] sm:$0xff]
        %v253 = vld [vmem:[%s188 + $0x1a0] sm:$0xff]
        %v254 = vld [vmem:[%s188 + $0x1a8] sm:$0xff]
        %v255 = vld [vmem:[%s188 + $0x1b0] sm:$0xff]
        %v256 = vld [vmem:[%s188 + $0x1b8] sm:$0xff]
        %v257 = vld [vmem:[%s188 + $0x1c0] sm:$0xff]
        %v258 = vld [vmem:[%s188 + $0x1c8] sm:$0xff]
        %v259 = vld [vmem:[%s188 + $0x1d0] sm:$0xff]
        %v260 = vld [vmem:[%s188 + $0x1d8] sm:$0xff]
        %v261 = vld [vmem:[%s188 + $0x1e0] sm:$0xff]
        %v262 = vld [vmem:[%s188 + $0x1e8] sm:$0xff]
        %v263 = vld [vmem:[%s188 + $0x1f0] sm:$0xff]
        %v264 = vld [vmem:[%s188 + $0x1f8] sm:$0xff]
        %v265 = vld [vmem:[%s1] sm:$0xf]
        %v266 = vld [vmem:[%s1 + $0x4] sm:$0xf]
        %v267 = vld [vmem:[%s1 + $0x8] sm:$0xf]
        %v268 = vld [vmem:[%s1 + $0xc] sm:$0xf]
        %v269 = vld [vmem:[%s1 + $0x10] sm:$0xf]
        %v270 = vld [vmem:[%s1 + $0x14] sm:$0xf]
        %v271 = vld [vmem:[%s1 + $0x18] sm:$0xf]
        %v272 = vld [vmem:[%s1 + $0x1c] sm:$0xf]
        %v273 = vld [vmem:[%s1 + $0x20] sm:$0xf]
        %v274 = vld [vmem:[%s1 + $0x24] sm:$0xf]
        %v275 = vld [vmem:[%s1 + $0x28] sm:$0xf]
        %v276 = vld [vmem:[%s1 + $0x2c] sm:$0xf]
        %v277 = vld [vmem:[%s1 + $0x30] sm:$0xf]
        %v278 = vld [vmem:[%s1 + $0x34] sm:$0xf]
        %v279 = vld [vmem:[%s1 + $0x38] sm:$0xf]
        %v280 = vld [vmem:[%s1 + $0x3c] sm:$0xf]
        %v281 = vld [vmem:[%s1 + $0x40] sm:$0xf]
        %v282 = vld [vmem:[%s1 + $0x44] sm:$0xf]
        %v283 = vld [vmem:[%s1 + $0x48] sm:$0xf]
        %v284 = vld [vmem:[%s1 + $0x4c] sm:$0xf]
        %v285 = vld [vmem:[%s1 + $0x50] sm:$0xf]
        %v286 = vld [vmem:[%s1 + $0x54] sm:$0xf]
        %v287 = vld [vmem:[%s1 + $0x58] sm:$0xf]
        %v288 = vld [vmem:[%s1 + $0x5c] sm:$0xf]
        %v289 = vld [vmem:[%s1 + $0x60] sm:$0xf]
        %v290 = vld [vmem:[%s1 + $0x64] sm:$0xf]
        %v291 = vld [vmem:[%s1 + $0x68] sm:$0xf]
        %v292 = vld [vmem:[%s1 + $0x6c] sm:$0xf]
        %v293 = vld [vmem:[%s1 + $0x70] sm:$0x1]
        %v294 = vld [vmem:[%s2] sm:$0x1]
        %v296 = vlaneseq
        %v297 = vshrl.u32 %v296, 7
        %v298 = vsub.s32 0, %v297
        %v299 = vrot.slane %v294, %v298
        %v365 = vunpack.c.l.b16 %v201
        %v366 = vunpack.c.h.b16 %v201
        %v367 = vunpack.c.l.b16 %v202
        %v368 = vunpack.c.h.b16 %v202
        %v369 = vunpack.c.l.b16 %v203
        %v370 = vunpack.c.h.b16 %v203
        %v371 = vunpack.c.l.b16 %v204
        %v372 = vunpack.c.h.b16 %v204
        %v373 = vunpack.c.l.b16 %v205
        %v374 = vunpack.c.h.b16 %v205
        %v375 = vunpack.c.l.b16 %v206
        %v376 = vunpack.c.h.b16 %v206
        %v377 = vunpack.c.l.b16 %v207
        %v378 = vunpack.c.h.b16 %v207
        %v379 = vunpack.c.l.b16 %v208
        %v380 = vunpack.c.h.b16 %v208
        %v381 = vunpack.c.l.b16 %v209
        %v382 = vunpack.c.h.b16 %v209
        %v383 = vunpack.c.l.b16 %v210
        %v384 = vunpack.c.h.b16 %v210
        %v385 = vunpack.c.l.b16 %v211
        %v386 = vunpack.c.h.b16 %v211
        %v387 = vunpack.c.l.b16 %v212
        %v388 = vunpack.c.h.b16 %v212
        %v389 = vunpack.c.l.b16 %v213
        %v390 = vunpack.c.h.b16 %v213
        %v391 = vunpack.c.l.b16 %v214
        %v392 = vunpack.c.h.b16 %v214
        %v393 = vunpack.c.l.b16 %v215
        %v394 = vunpack.c.h.b16 %v215
        %v395 = vunpack.c.l.b16 %v216
        %v396 = vunpack.c.h.b16 %v216
        %v397 = vunpack.c.l.b16 %v217
        %v398 = vunpack.c.h.b16 %v217
        %v399 = vunpack.c.l.b16 %v218
        %v400 = vunpack.c.h.b16 %v218
        %v401 = vunpack.c.l.b16 %v219
        %v402 = vunpack.c.h.b16 %v219
        %v403 = vunpack.c.l.b16 %v220
        %v404 = vunpack.c.h.b16 %v220
        %v405 = vunpack.c.l.b16 %v221
        %v406 = vunpack.c.h.b16 %v221
        %v407 = vunpack.c.l.b16 %v222
        %v408 = vunpack.c.h.b16 %v222
        %v409 = vunpack.c.l.b16 %v223
        %v410 = vunpack.c.h.b16 %v223
        %v411 = vunpack.c.l.b16 %v224
        %v412 = vunpack.c.h.b16 %v224
        %v413 = vunpack.c.l.b16 %v225
        %v414 = vunpack.c.h.b16 %v225
        %v415 = vunpack.c.l.b16 %v226
        %v416 = vunpack.c.h.b16 %v226
        %v417 = vunpack.c.l.b16 %v227
        %v418 = vunpack.c.h.b16 %v227
        %v419 = vunpack.c.l.b16 %v228
        %v420 = vunpack.c.h.b16 %v228
        %v421 = vunpack.c.l.b16 %v229
        %v422 = vunpack.c.h.b16 %v229
        %v423 = vunpack.c.l.b16 %v230
        %v424 = vunpack.c.h.b16 %v230
        %v425 = vunpack.c.l.b16 %v231
        %v426 = vunpack.c.h.b16 %v231
        %v427 = vunpack.c.l.b16 %v232
        %v428 = vunpack.c.h.b16 %v232
        %v429 = vunpack.c.l.b16 %v233
        %v430 = vunpack.c.h.b16 %v233
        %v431 = vunpack.c.l.b16 %v234
        %v432 = vunpack.c.h.b16 %v234
        %v433 = vunpack.c.l.b16 %v235
        %v434 = vunpack.c.h.b16 %v235
        %v435 = vunpack.c.l.b16 %v236
        %v436 = vunpack.c.h.b16 %v236
        %v437 = vunpack.c.l.b16 %v237
        %v438 = vunpack.c.h.b16 %v237
        %v439 = vunpack.c.l.b16 %v238
        %v440 = vunpack.c.h.b16 %v238
        %v441 = vunpack.c.l.b16 %v239
        %v442 = vunpack.c.h.b16 %v239
        %v443 = vunpack.c.l.b16 %v240
        %v444 = vunpack.c.h.b16 %v240
        %v445 = vunpack.c.l.b16 %v241
        %v446 = vunpack.c.h.b16 %v241
        %v447 = vunpack.c.l.b16 %v242
        %v448 = vunpack.c.h.b16 %v242
        %v449 = vunpack.c.l.b16 %v243
        %v450 = vunpack.c.h.b16 %v243
        %v451 = vunpack.c.l.b16 %v244
        %v452 = vunpack.c.h.b16 %v244
        %v453 = vunpack.c.l.b16 %v245
        %v454 = vunpack.c.h.b16 %v245
        %v455 = vunpack.c.l.b16 %v246
        %v456 = vunpack.c.h.b16 %v246
        %v457 = vunpack.c.l.b16 %v247
        %v458 = vunpack.c.h.b16 %v247
        %v459 = vunpack.c.l.b16 %v248
        %v460 = vunpack.c.h.b16 %v248
        %v461 = vunpack.c.l.b16 %v249
        %v462 = vunpack.c.h.b16 %v249
        %v463 = vunpack.c.l.b16 %v250
        %v464 = vunpack.c.h.b16 %v250
        %v465 = vunpack.c.l.b16 %v251
        %v466 = vunpack.c.h.b16 %v251
        %v467 = vunpack.c.l.b16 %v252
        %v468 = vunpack.c.h.b16 %v252
        %v469 = vunpack.c.l.b16 %v253
        %v470 = vunpack.c.h.b16 %v253
        %v471 = vunpack.c.l.b16 %v254
        %v472 = vunpack.c.h.b16 %v254
        %v473 = vunpack.c.l.b16 %v255
        %v474 = vunpack.c.h.b16 %v255
        %v475 = vunpack.c.l.b16 %v256
        %v476 = vunpack.c.h.b16 %v256
        %v477 = vunpack.c.l.b16 %v257
        %v478 = vunpack.c.h.b16 %v257
        %v479 = vunpack.c.l.b16 %v258
        %v480 = vunpack.c.h.b16 %v258
        %v481 = vunpack.c.l.b16 %v259
        %v482 = vunpack.c.h.b16 %v259
        %v483 = vunpack.c.l.b16 %v260
        %v484 = vunpack.c.h.b16 %v260
        %v485 = vunpack.c.l.b16 %v261
        %v486 = vunpack.c.h.b16 %v261
        %v487 = vunpack.c.l.b16 %v262
        %v488 = vunpack.c.h.b16 %v262
        %v489 = vunpack.c.l.b16 %v263
        %v490 = vunpack.c.h.b16 %v263
        %v491 = vunpack.c.l.b16 %v264
        %v492 = vunpack.c.h.b16 %v264
        %v493 = vpack.c.b16 %v367, %v365
        %v494 = vpack.c.b16 %v368, %v366
        %v495 = vpack.c.b16 %v371, %v369
        %v496 = vpack.c.b16 %v372, %v370
        %v497 = vpack.c.b16 %v375, %v373
        %v498 = vpack.c.b16 %v376, %v374
        %v499 = vpack.c.b16 %v379, %v377
        %v500 = vpack.c.b16 %v380, %v378
        %v501 = vpack.c.b16 %v383, %v381
        %v502 = vpack.c.b16 %v384, %v382
        %v503 = vpack.c.b16 %v387, %v385
        %v504 = vpack.c.b16 %v388, %v386
        %v505 = vpack.c.b16 %v391, %v389
        %v506 = vpack.c.b16 %v392, %v390
        %v507 = vpack.c.b16 %v395, %v393
        %v508 = vpack.c.b16 %v396, %v394
        %v509 = vpack.c.b16 %v399, %v397
        %v510 = vpack.c.b16 %v400, %v398
        %v511 = vpack.c.b16 %v403, %v401
        %v512 = vpack.c.b16 %v404, %v402
        %v513 = vpack.c.b16 %v407, %v405
        %v514 = vpack.c.b16 %v408, %v406
        %v515 = vpack.c.b16 %v411, %v409
        %v516 = vpack.c.b16 %v412, %v410
        %v517 = vpack.c.b16 %v415, %v413
        %v518 = vpack.c.b16 %v416, %v414
        %v519 = vpack.c.b16 %v419, %v417
        %v520 = vpack.c.b16 %v420, %v418
        %v521 = vpack.c.b16 %v423, %v421
        %v522 = vpack.c.b16 %v424, %v422
        %v523 = vpack.c.b16 %v427, %v425
        %v524 = vpack.c.b16 %v428, %v426
        %v525 = vpack.c.b16 %v431, %v429
        %v526 = vpack.c.b16 %v432, %v430
        %v527 = vpack.c.b16 %v435, %v433
        %v528 = vpack.c.b16 %v436, %v434
        %v529 = vpack.c.b16 %v439, %v437
        %v530 = vpack.c.b16 %v440, %v438
        %v531 = vpack.c.b16 %v443, %v441
        %v532 = vpack.c.b16 %v444, %v442
        %v533 = vpack.c.b16 %v447, %v445
        %v534 = vpack.c.b16 %v448, %v446
        %v535 = vpack.c.b16 %v451, %v449
        %v536 = vpack.c.b16 %v452, %v450
        %v537 = vpack.c.b16 %v455, %v453
        %v538 = vpack.c.b16 %v456, %v454
        %v539 = vpack.c.b16 %v459, %v457
        %v540 = vpack.c.b16 %v460, %v458
        %v541 = vpack.c.b16 %v463, %v461
        %v542 = vpack.c.b16 %v464, %v462
        %v543 = vpack.c.b16 %v467, %v465
        %v544 = vpack.c.b16 %v468, %v466
        %v545 = vpack.c.b16 %v471, %v469
        %v546 = vpack.c.b16 %v472, %v470
        %v547 = vpack.c.b16 %v475, %v473
        %v548 = vpack.c.b16 %v476, %v474
        %v549 = vpack.c.b16 %v479, %v477
        %v550 = vpack.c.b16 %v480, %v478
        %v551 = vpack.c.b16 %v483, %v481
        %v552 = vpack.c.b16 %v484, %v482
        %v553 = vpack.c.b16 %v487, %v485
        %v554 = vpack.c.b16 %v488, %v486
        %v555 = vpack.c.b16 %v491, %v489
        %v556 = vpack.c.b16 %v492, %v490
        %v618 = vunpack.c.l.b16 %v265
        %v619 = vunpack.c.l.b16 %v266
        %v620 = vunpack.c.l.b16 %v267
        %v621 = vunpack.c.l.b16 %v268
        %v622 = vunpack.c.l.b16 %v269
        %v623 = vunpack.c.l.b16 %v270
        %v624 = vunpack.c.l.b16 %v271
        %v625 = vunpack.c.l.b16 %v272
        %v626 = vunpack.c.l.b16 %v273
        %v627 = vunpack.c.l.b16 %v274
        %v628 = vunpack.c.l.b16 %v275
        %v629 = vunpack.c.l.b16 %v276
        %v630 = vunpack.c.l.b16 %v277
        %v631 = vunpack.c.l.b16 %v278
        %v632 = vunpack.c.l.b16 %v279
        %v633 = vunpack.c.l.b16 %v280
        %v634 = vunpack.c.l.b16 %v281
        %v635 = vunpack.c.l.b16 %v282
        %v636 = vunpack.c.l.b16 %v283
        %v637 = vunpack.c.l.b16 %v284
        %v638 = vunpack.c.l.b16 %v285
        %v639 = vunpack.c.l.b16 %v286
        %v640 = vunpack.c.l.b16 %v287
        %v641 = vunpack.c.l.b16 %v288
        %v642 = vunpack.c.l.b16 %v289
        %v643 = vunpack.c.l.b16 %v290
        %v644 = vunpack.c.l.b16 %v291
        %v645 = vunpack.c.l.b16 %v292
        %v646 = vunpack.c.l.b16 %v293
        %v647 = vpack.c.b16 %v619, %v618
        %v648 = vpack.c.b16 %v621, %v620
        %v649 = vpack.c.b16 %v623, %v622
        %v650 = vpack.c.b16 %v625, %v624
        %v651 = vpack.c.b16 %v627, %v626
        %v652 = vpack.c.b16 %v629, %v628
        %v653 = vpack.c.b16 %v631, %v630
        %v654 = vpack.c.b16 %v633, %v632
        %v655 = vpack.c.b16 %v635, %v634
        %v656 = vpack.c.b16 %v637, %v636
        %v657 = vpack.c.b16 %v639, %v638
        %v658 = vpack.c.b16 %v641, %v640
        %v659 = vpack.c.b16 %v643, %v642
        %v660 = vpack.c.b16 %v645, %v644
        %v661 = vpack.c.b16 %v646, %v646
        %vm676 = vcmask 793600
        %v678 = vsel %vm676, %v494, 0
        %v681 = vsel %vm676, %v496, 0
        %v684 = vsel %vm676, %v498, 0
        %v687 = vsel %vm676, %v500, 0
        %v690 = vsel %vm676, %v502, 0
        %v693 = vsel %vm676, %v504, 0
        %v696 = vsel %vm676, %v506, 0
        %v699 = vsel %vm676, %v508, 0
        %v702 = vsel %vm676, %v510, 0
        %v705 = vsel %vm676, %v512, 0
        %v708 = vsel %vm676, %v514, 0
        %v711 = vsel %vm676, %v516, 0
        %v714 = vsel %vm676, %v518, 0
        %v717 = vsel %vm676, %v520, 0
        %v720 = vsel %vm676, %v522, 0
        %v723 = vsel %vm676, %v524, 0
        %v726 = vsel %vm676, %v526, 0
        %v729 = vsel %vm676, %v528, 0
        %v732 = vsel %vm676, %v530, 0
        %v735 = vsel %vm676, %v532, 0
        %v738 = vsel %vm676, %v534, 0
        %v741 = vsel %vm676, %v536, 0
        %v744 = vsel %vm676, %v538, 0
        %v747 = vsel %vm676, %v540, 0
        %v750 = vsel %vm676, %v542, 0
        %v753 = vsel %vm676, %v544, 0
        %v756 = vsel %vm676, %v546, 0
        %v759 = vsel %vm676, %v548, 0
        %v762 = vsel %vm676, %v550, 0
        %v765 = vsel %vm676, %v552, 0
        %v768 = vsel %vm676, %v554, 0
        %v771 = vsel %vm676, %v556, 0
        %vm773 = vcmask 1040384
        %v774 = vsel 0, 4294967295, 65535
        %v775 = vsel %vm773, %v774, 0
        %v777 = vand.u32 %v661, %v775
        %779 = vmatprep.subr.bf16.mxu0 0
        %780 = vmatpush1.bf16.msra.mxu0 %v647
        %781 = vmatprep.subr.bf16.mxu0 0
        %782 = vmatpush1.bf16.msra.mxu0 %v648
        %783 = vmatprep.subr.bf16.mxu0 0
        %784 = vmatpush1.bf16.msra.mxu0 %v649
        %785 = vmatprep.subr.bf16.mxu0 0
        %786 = vmatpush1.bf16.msra.mxu0 %v650
        %787 = vmatprep.subr.bf16.mxu0 0
        %788 = vmatpush1.bf16.msra.mxu0 %v651
        %789 = vmatprep.subr.bf16.mxu0 0
        %790 = vmatpush1.bf16.msra.mxu0 %v652
        %791 = vmatprep.subr.bf16.mxu0 0
        %792 = vmatpush1.bf16.msra.mxu0 %v653
        %793 = vmatprep.subr.bf16.mxu0 0
        %794 = vmatpush1.bf16.msra.mxu0 %v654
        %795 = vmatprep.subr.bf16.mxu0 0
        %796 = vmatpush1.bf16.msra.mxu0 %v655
        %797 = vmatprep.subr.bf16.mxu0 0
        %798 = vmatpush1.bf16.msra.mxu0 %v656
        %799 = vmatprep.subr.bf16.mxu0 0
        %800 = vmatpush1.bf16.msra.mxu0 %v657
        %801 = vmatprep.subr.bf16.mxu0 0
        %802 = vmatpush1.bf16.msra.mxu0 %v658
        %803 = vmatprep.subr.bf16.mxu0 0
        %804 = vmatpush1.bf16.msra.mxu0 %v659
        %805 = vmatprep.subr.bf16.mxu0 0
        %806 = vmatpush1.bf16.msra.mxu0 %v660
        %807 = vmatprep.subr.bf16.mxu0 0
        %808 = vmatpush1.bf16.msra.mxu0 %v777
        %809 = vmatprep.subr.bf16.mxu0 0
        %810 = vmatpush1.bf16.msra.mxu0 0
        %811 = vmatprep.mubr.bf16.mxu0 %v678
        %812 = vmatmul.mubr.bf16.gmra.mrb[0].mxu0 %v493
        %v813 = vpop.f32.mrb[0].mxu0
        %v814 = vadd.f32 %v299, %v813
        %v815 = vpop.f32.mrb[0].mxu0
        %v816 = vpop.f32.mrb[0].mxu0
        %v817 = vadd.f32 %v299, %v816
        %v818 = vpop.f32.mrb[0].mxu0
        %819 = vmatprep.mubr.bf16.mxu0 %v681
        %820 = vmatmul.mubr.bf16.gmra.mrb[0].mxu0 %v495
        %v821 = vpop.f32.mrb[0].mxu0
        %v822 = vadd.f32 %v299, %v821
        %v823 = vpop.f32.mrb[0].mxu0
        %v824 = vpop.f32.mrb[0].mxu0
        %v825 = vadd.f32 %v299, %v824
        %v826 = vpop.f32.mrb[0].mxu0
        %827 = vmatprep.mubr.bf16.mxu0 %v684
        %828 = vmatmul.mubr.bf16.gmra.mrb[0].mxu0 %v497
        %v829 = vpop.f32.mrb[0].mxu0
        %v830 = vadd.f32 %v299, %v829
        %v831 = vpop.f32.mrb[0].mxu0
        %v832 = vpop.f32.mrb[0].mxu0
        %v833 = vadd.f32 %v299, %v832
        %v834 = vpop.f32.mrb[0].mxu0
        %835 = vmatprep.mubr.bf16.mxu0 %v687
        %836 = vmatmul.mubr.bf16.gmra.mrb[0].mxu0 %v499
        %v837 = vpop.f32.mrb[0].mxu0
        %v838 = vadd.f32 %v299, %v837
        %v839 = vpop.f32.mrb[0].mxu0
        %v840 = vpop.f32.mrb[0].mxu0
        %v841 = vadd.f32 %v299, %v840
        %v842 = vpop.f32.mrb[0].mxu0
        %843 = vmatprep.mubr.bf16.mxu0 %v690
        %844 = vmatmul.mubr.bf16.gmra.mrb[0].mxu0 %v501
        %v845 = vpop.f32.mrb[0].mxu0
        %v846 = vadd.f32 %v299, %v845
        %v847 = vpop.f32.mrb[0].mxu0
        %v848 = vpop.f32.mrb[0].mxu0
        %v849 = vadd.f32 %v299, %v848
        %v850 = vpop.f32.mrb[0].mxu0
        %851 = vmatprep.mubr.bf16.mxu0 %v693
        %852 = vmatmul.mubr.bf16.gmra.mrb[0].mxu0 %v503
        %v853 = vpop.f32.mrb[0].mxu0
        %v854 = vadd.f32 %v299, %v853
        %v855 = vpop.f32.mrb[0].mxu0
        %v856 = vpop.f32.mrb[0].mxu0
        %v857 = vadd.f32 %v299, %v856
        %v858 = vpop.f32.mrb[0].mxu0
        %859 = vmatprep.mubr.bf16.mxu0 %v696
        %860 = vmatmul.mubr.bf16.gmra.mrb[0].mxu0 %v505
        %v861 = vpop.f32.mrb[0].mxu0
        %v862 = vadd.f32 %v299, %v861
        %v863 = vpop.f32.mrb[0].mxu0
        %v864 = vpop.f32.mrb[0].mxu0
        %v865 = vadd.f32 %v299, %v864
        %v866 = vpop.f32.mrb[0].mxu0
        %867 = vmatprep.mubr.bf16.mxu0 %v699
        %868 = vmatmul.mubr.bf16.gmra.mrb[0].mxu0 %v507
        %v869 = vpop.f32.mrb[0].mxu0
        %v870 = vadd.f32 %v299, %v869
        %v871 = vpop.f32.mrb[0].mxu0
        %v872 = vpop.f32.mrb[0].mxu0
        %v873 = vadd.f32 %v299, %v872
        %v874 = vpop.f32.mrb[0].mxu0
        %875 = vmatprep.mubr.bf16.mxu0 %v702
        %876 = vmatmul.mubr.bf16.gmra.mrb[0].mxu0 %v509
        %v877 = vpop.f32.mrb[0].mxu0
        %v878 = vadd.f32 %v299, %v877
        %v879 = vpop.f32.mrb[0].mxu0
        %v880 = vpop.f32.mrb[0].mxu0
        %v881 = vadd.f32 %v299, %v880
        %v882 = vpop.f32.mrb[0].mxu0
        %883 = vmatprep.mubr.bf16.mxu0 %v705
        %884 = vmatmul.mubr.bf16.gmra.mrb[0].mxu0 %v511
        %v885 = vpop.f32.mrb[0].mxu0
        %v886 = vadd.f32 %v299, %v885
        %v887 = vpop.f32.mrb[0].mxu0
        %v888 = vpop.f32.mrb[0].mxu0
        %v889 = vadd.f32 %v299, %v888
        %v890 = vpop.f32.mrb[0].mxu0
        %891 = vmatprep.mubr.bf16.mxu0 %v708
        %892 = vmatmul.mubr.bf16.gmra.mrb[0].mxu0 %v513
        %v893 = vpop.f32.mrb[0].mxu0
        %v894 = vadd.f32 %v299, %v893
        %v895 = vpop.f32.mrb[0].mxu0
        %v896 = vpop.f32.mrb[0].mxu0
        %v897 = vadd.f32 %v299, %v896
        %v898 = vpop.f32.mrb[0].mxu0
        %899 = vmatprep.mubr.bf16.mxu0 %v711
        %900 = vmatmul.mubr.bf16.gmra.mrb[0].mxu0 %v515
        %v901 = vpop.f32.mrb[0].mxu0
        %v902 = vadd.f32 %v299, %v901
        %v903 = vpop.f32.mrb[0].mxu0
        %v904 = vpop.f32.mrb[0].mxu0
        %v905 = vadd.f32 %v299, %v904
        %v906 = vpop.f32.mrb[0].mxu0
        %907 = vmatprep.mubr.bf16.mxu0 %v714
        %908 = vmatmul.mubr.bf16.gmra.mrb[0].mxu0 %v517
        %v909 = vpop.f32.mrb[0].mxu0
        %v910 = vadd.f32 %v299, %v909
        %v911 = vpop.f32.mrb[0].mxu0
        %v912 = vpop.f32.mrb[0].mxu0
        %v913 = vadd.f32 %v299, %v912
        %v914 = vpop.f32.mrb[0].mxu0
        %915 = vmatprep.mubr.bf16.mxu0 %v717
        %916 = vmatmul.mubr.bf16.gmra.mrb[0].mxu0 %v519
        %v917 = vpop.f32.mrb[0].mxu0
        %v918 = vadd.f32 %v299, %v917
        %v919 = vpop.f32.mrb[0].mxu0
        %v920 = vpop.f32.mrb[0].mxu0
        %v921 = vadd.f32 %v299, %v920
        %v922 = vpop.f32.mrb[0].mxu0
        %923 = vmatprep.mubr.bf16.mxu0 %v720
        %924 = vmatmul.mubr.bf16.gmra.mrb[0].mxu0 %v521
        %v925 = vpop.f32.mrb[0].mxu0
        %v926 = vadd.f32 %v299, %v925
        %v927 = vpop.f32.mrb[0].mxu0
        %v928 = vpop.f32.mrb[0].mxu0
        %v929 = vadd.f32 %v299, %v928
        %v930 = vpop.f32.mrb[0].mxu0
        %931 = vmatprep.mubr.bf16.mxu0 %v723
        %932 = vmatmul.mubr.bf16.gmra.mrb[0].mxu0 %v523
        %v933 = vpop.f32.mrb[0].mxu0
        %v934 = vadd.f32 %v299, %v933
        %v935 = vpop.f32.mrb[0].mxu0
        %v936 = vpop.f32.mrb[0].mxu0
        %v937 = vadd.f32 %v299, %v936
        %v938 = vpop.f32.mrb[0].mxu0
        %939 = vmatprep.mubr.bf16.mxu0 %v726
        %940 = vmatmul.mubr.bf16.gmra.mrb[0].mxu0 %v525
        %v941 = vpop.f32.mrb[0].mxu0
        %v942 = vadd.f32 %v299, %v941
        %v943 = vpop.f32.mrb[0].mxu0
        %v944 = vpop.f32.mrb[0].mxu0
        %v945 = vadd.f32 %v299, %v944
        %v946 = vpop.f32.mrb[0].mxu0
        %947 = vmatprep.mubr.bf16.mxu0 %v729
        %948 = vmatmul.mubr.bf16.gmra.mrb[0].mxu0 %v527
        %v949 = vpop.f32.mrb[0].mxu0
        %v950 = vadd.f32 %v299, %v949
        %v951 = vpop.f32.mrb[0].mxu0
        %v952 = vpop.f32.mrb[0].mxu0
        %v953 = vadd.f32 %v299, %v952
        %v954 = vpop.f32.mrb[0].mxu0
        %955 = vmatprep.mubr.bf16.mxu0 %v732
        %956 = vmatmul.mubr.bf16.gmra.mrb[0].mxu0 %v529
        %v957 = vpop.f32.mrb[0].mxu0
        %v958 = vadd.f32 %v299, %v957
        %v959 = vpop.f32.mrb[0].mxu0
        %v960 = vpop.f32.mrb[0].mxu0
        %v961 = vadd.f32 %v299, %v960
        %v962 = vpop.f32.mrb[0].mxu0
        %963 = vmatprep.mubr.bf16.mxu0 %v735
        %964 = vmatmul.mubr.bf16.gmra.mrb[0].mxu0 %v531
        %v965 = vpop.f32.mrb[0].mxu0
        %v966 = vadd.f32 %v299, %v965
        %v967 = vpop.f32.mrb[0].mxu0
        %v968 = vpop.f32.mrb[0].mxu0
        %v969 = vadd.f32 %v299, %v968
        %v970 = vpop.f32.mrb[0].mxu0
        %971 = vmatprep.mubr.bf16.mxu0 %v738
        %972 = vmatmul.mubr.bf16.gmra.mrb[0].mxu0 %v533
        %v973 = vpop.f32.mrb[0].mxu0
        %v974 = vadd.f32 %v299, %v973
        %v975 = vpop.f32.mrb[0].mxu0
        %v976 = vpop.f32.mrb[0].mxu0
        %v977 = vadd.f32 %v299, %v976
        %v978 = vpop.f32.mrb[0].mxu0
        %979 = vmatprep.mubr.bf16.mxu0 %v741
        %980 = vmatmul.mubr.bf16.gmra.mrb[0].mxu0 %v535
        %v981 = vpop.f32.mrb[0].mxu0
        %v982 = vadd.f32 %v299, %v981
        %v983 = vpop.f32.mrb[0].mxu0
        %v984 = vpop.f32.mrb[0].mxu0
        %v985 = vadd.f32 %v299, %v984
        %v986 = vpop.f32.mrb[0].mxu0
        %987 = vmatprep.mubr.bf16.mxu0 %v744
        %988 = vmatmul.mubr.bf16.gmra.mrb[0].mxu0 %v537
        %v989 = vpop.f32.mrb[0].mxu0
        %v990 = vadd.f32 %v299, %v989
        %v991 = vpop.f32.mrb[0].mxu0
        %v992 = vpop.f32.mrb[0].mxu0
        %v993 = vadd.f32 %v299, %v992
        %v994 = vpop.f32.mrb[0].mxu0
        %995 = vmatprep.mubr.bf16.mxu0 %v747
        %996 = vmatmul.mubr.bf16.gmra.mrb[0].mxu0 %v539
        %v997 = vpop.f32.mrb[0].mxu0
        %v998 = vadd.f32 %v299, %v997
        %v999 = vpop.f32.mrb[0].mxu0
        %v1000 = vpop.f32.mrb[0].mxu0
        %v1001 = vadd.f32 %v299, %v1000
        %v1002 = vpop.f32.mrb[0].mxu0
        %1003 = vmatprep.mubr.bf16.mxu0 %v750
        %1004 = vmatmul.mubr.bf16.gmra.mrb[0].mxu0 %v541
        %v1005 = vpop.f32.mrb[0].mxu0
        %v1006 = vadd.f32 %v299, %v1005
        %v1007 = vpop.f32.mrb[0].mxu0
        %v1008 = vpop.f32.mrb[0].mxu0
        %v1009 = vadd.f32 %v299, %v1008
        %v1010 = vpop.f32.mrb[0].mxu0
        %1011 = vmatprep.mubr.bf16.mxu0 %v753
        %1012 = vmatmul.mubr.bf16.gmra.mrb[0].mxu0 %v543
        %v1013 = vpop.f32.mrb[0].mxu0
        %v1014 = vadd.f32 %v299, %v1013
        %v1015 = vpop.f32.mrb[0].mxu0
        %v1016 = vpop.f32.mrb[0].mxu0
        %v1017 = vadd.f32 %v299, %v1016
        %v1018 = vpop.f32.mrb[0].mxu0
        %1019 = vmatprep.mubr.bf16.mxu0 %v756
        %1020 = vmatmul.mubr.bf16.gmra.mrb[0].mxu0 %v545
        %v1021 = vpop.f32.mrb[0].mxu0
        %v1022 = vadd.f32 %v299, %v1021
        %v1023 = vpop.f32.mrb[0].mxu0
        %v1024 = vpop.f32.mrb[0].mxu0
        %v1025 = vadd.f32 %v299, %v1024
        %v1026 = vpop.f32.mrb[0].mxu0
        %1027 = vmatprep.mubr.bf16.mxu0 %v759
        %1028 = vmatmul.mubr.bf16.gmra.mrb[0].mxu0 %v547
        %v1029 = vpop.f32.mrb[0].mxu0
        %v1030 = vadd.f32 %v299, %v1029
        %v1031 = vpop.f32.mrb[0].mxu0
        %v1032 = vpop.f32.mrb[0].mxu0
        %v1033 = vadd.f32 %v299, %v1032
        %v1034 = vpop.f32.mrb[0].mxu0
        %1035 = vmatprep.mubr.bf16.mxu0 %v762
        %1036 = vmatmul.mubr.bf16.gmra.mrb[0].mxu0 %v549
        %v1037 = vpop.f32.mrb[0].mxu0
        %v1038 = vadd.f32 %v299, %v1037
        %v1039 = vpop.f32.mrb[0].mxu0
        %v1040 = vpop.f32.mrb[0].mxu0
        %v1041 = vadd.f32 %v299, %v1040
        %v1042 = vpop.f32.mrb[0].mxu0
        %1043 = vmatprep.mubr.bf16.mxu0 %v765
        %1044 = vmatmul.mubr.bf16.gmra.mrb[0].mxu0 %v551
        %v1045 = vpop.f32.mrb[0].mxu0
        %v1046 = vadd.f32 %v299, %v1045
        %v1047 = vpop.f32.mrb[0].mxu0
        %v1048 = vpop.f32.mrb[0].mxu0
        %v1049 = vadd.f32 %v299, %v1048
        %v1050 = vpop.f32.mrb[0].mxu0
        %1051 = vmatprep.mubr.bf16.mxu0 %v768
        %1052 = vmatmul.mubr.bf16.gmra.mrb[0].mxu0 %v553
        %v1053 = vpop.f32.mrb[0].mxu0
        %v1054 = vadd.f32 %v299, %v1053
        %v1055 = vpop.f32.mrb[0].mxu0
        %v1056 = vpop.f32.mrb[0].mxu0
        %v1057 = vadd.f32 %v299, %v1056
        %v1058 = vpop.f32.mrb[0].mxu0
        %1059 = vmatprep.mubr.bf16.mxu0 %v771
        %1060 = vmatmul.mubr.bf16.gmra.mrb[0].mxu0 %v555
        %v1061 = vpop.f32.mrb[0].mxu0
        %v1062 = vadd.f32 %v299, %v1061
        %v1063 = vpop.f32.mrb[0].mxu0
        %v1064 = vpop.f32.mrb[0].mxu0
        %v1065 = vadd.f32 %v299, %v1064
        %v1066 = vpop.f32.mrb[0].mxu0
        %1067 = vdwg.mxu0
        %v1068 = vsub.f32 0.0, %v814
        %v1069 = vsub.f32 0.0, %v817
        %v1070 = vsub.f32 0.0, %v822
        %v1071 = vsub.f32 0.0, %v825
        %v1072 = vsub.f32 0.0, %v830
        %v1073 = vsub.f32 0.0, %v833
        %v1074 = vsub.f32 0.0, %v838
        %v1075 = vsub.f32 0.0, %v841
        %v1076 = vsub.f32 0.0, %v846
        %v1077 = vsub.f32 0.0, %v849
        %v1078 = vsub.f32 0.0, %v854
        %v1079 = vsub.f32 0.0, %v857
        %v1080 = vsub.f32 0.0, %v862
        %v1081 = vsub.f32 0.0, %v865
        %v1082 = vsub.f32 0.0, %v870
        %v1083 = vsub.f32 0.0, %v873
        %v1084 = vsub.f32 0.0, %v878
        %v1085 = vsub.f32 0.0, %v881
        %v1086 = vsub.f32 0.0, %v886
        %v1087 = vsub.f32 0.0, %v889
        %v1088 = vsub.f32 0.0, %v894
        %v1089 = vsub.f32 0.0, %v897
        %v1090 = vsub.f32 0.0, %v902
        %v1091 = vsub.f32 0.0, %v905
        %v1092 = vsub.f32 0.0, %v910
        %v1093 = vsub.f32 0.0, %v913
        %v1094 = vsub.f32 0.0, %v918
        %v1095 = vsub.f32 0.0, %v921
        %v1096 = vsub.f32 0.0, %v926
        %v1097 = vsub.f32 0.0, %v929
        %v1098 = vsub.f32 0.0, %v934
        %v1099 = vsub.f32 0.0, %v937
        %v1100 = vsub.f32 0.0, %v942
        %v1101 = vsub.f32 0.0, %v945
        %v1102 = vsub.f32 0.0, %v950
        %v1103 = vsub.f32 0.0, %v953
        %v1104 = vsub.f32 0.0, %v958
        %v1105 = vsub.f32 0.0, %v961
        %v1106 = vsub.f32 0.0, %v966
        %v1107 = vsub.f32 0.0, %v969
        %v1108 = vsub.f32 0.0, %v974
        %v1109 = vsub.f32 0.0, %v977
        %v1110 = vsub.f32 0.0, %v982
        %v1111 = vsub.f32 0.0, %v985
        %v1112 = vsub.f32 0.0, %v990
        %v1113 = vsub.f32 0.0, %v993
        %v1114 = vsub.f32 0.0, %v998
        %v1115 = vsub.f32 0.0, %v1001
        %v1116 = vsub.f32 0.0, %v1006
        %v1117 = vsub.f32 0.0, %v1009
        %v1118 = vsub.f32 0.0, %v1014
        %v1119 = vsub.f32 0.0, %v1017
        %v1120 = vsub.f32 0.0, %v1022
        %v1121 = vsub.f32 0.0, %v1025
        %v1122 = vsub.f32 0.0, %v1030
        %v1123 = vsub.f32 0.0, %v1033
        %v1124 = vsub.f32 0.0, %v1038
        %v1125 = vsub.f32 0.0, %v1041
        %v1126 = vsub.f32 0.0, %v1046
        %v1127 = vsub.f32 0.0, %v1049
        %v1128 = vsub.f32 0.0, %v1054
        %v1129 = vsub.f32 0.0, %v1057
        %v1130 = vsub.f32 0.0, %v1062
        %v1131 = vsub.f32 0.0, %v1065
        %v1132 = vmul.f32 %v1068, 1.442695
        %v1133 = vpow.pop %v1132
        %v1134 = vmul.f32 %v1069, 1.442695
        %v1135 = vpow.pop %v1134
        %v1136 = vmul.f32 %v1070, 1.442695
        %v1137 = vpow.pop %v1136
        %v1138 = vmul.f32 %v1071, 1.442695
        %v1139 = vpow.pop %v1138
        %v1140 = vmul.f32 %v1072, 1.442695
        %v1141 = vpow.pop %v1140
        %v1142 = vmul.f32 %v1073, 1.442695
        %v1143 = vpow.pop %v1142
        %v1144 = vmul.f32 %v1074, 1.442695
        %v1145 = vpow.pop %v1144
        %v1146 = vmul.f32 %v1075, 1.442695
        %v1147 = vpow.pop %v1146
        %v1148 = vmul.f32 %v1076, 1.442695
        %v1149 = vpow.pop %v1148
        %v1150 = vmul.f32 %v1077, 1.442695
        %v1151 = vpow.pop %v1150
        %v1152 = vmul.f32 %v1078, 1.442695
        %v1153 = vpow.pop %v1152
        %v1154 = vmul.f32 %v1079, 1.442695
        %v1155 = vpow.pop %v1154
        %v1156 = vmul.f32 %v1080, 1.442695
        %v1157 = vpow.pop %v1156
        %v1158 = vmul.f32 %v1081, 1.442695
        %v1159 = vpow.pop %v1158
        %v1160 = vmul.f32 %v1082, 1.442695
        %v1161 = vpow.pop %v1160
        %v1162 = vmul.f32 %v1083, 1.442695
        %v1163 = vpow.pop %v1162
        %v1164 = vmul.f32 %v1084, 1.442695
        %v1165 = vpow.pop %v1164
        %v1166 = vmul.f32 %v1085, 1.442695
        %v1167 = vpow.pop %v1166
        %v1168 = vmul.f32 %v1086, 1.442695
        %v1169 = vpow.pop %v1168
        %v1170 = vmul.f32 %v1087, 1.442695
        %v1171 = vpow.pop %v1170
        %v1172 = vmul.f32 %v1088, 1.442695
        %v1173 = vpow.pop %v1172
        %v1174 = vmul.f32 %v1089, 1.442695
        %v1175 = vpow.pop %v1174
        %v1176 = vmul.f32 %v1090, 1.442695
        %v1177 = vpow.pop %v1176
        %v1178 = vmul.f32 %v1091, 1.442695
        %v1179 = vpow.pop %v1178
        %v1180 = vmul.f32 %v1092, 1.442695
        %v1181 = vpow.pop %v1180
        %v1182 = vmul.f32 %v1093, 1.442695
        %v1183 = vpow.pop %v1182
        %v1184 = vmul.f32 %v1094, 1.442695
        %v1185 = vpow.pop %v1184
        %v1186 = vmul.f32 %v1095, 1.442695
        %v1187 = vpow.pop %v1186
        %v1188 = vmul.f32 %v1096, 1.442695
        %v1189 = vpow.pop %v1188
        %v1190 = vmul.f32 %v1097, 1.442695
        %v1191 = vpow.pop %v1190
        %v1192 = vmul.f32 %v1098, 1.442695
        %v1193 = vpow.pop %v1192
        %v1194 = vmul.f32 %v1099, 1.442695
        %v1195 = vpow.pop %v1194
        %v1196 = vmul.f32 %v1100, 1.442695
        %v1197 = vpow.pop %v1196
        %v1198 = vmul.f32 %v1101, 1.442695
        %v1199 = vpow.pop %v1198
        %v1200 = vmul.f32 %v1102, 1.442695
        %v1201 = vpow.pop %v1200
        %v1202 = vmul.f32 %v1103, 1.442695
        %v1203 = vpow.pop %v1202
        %v1204 = vmul.f32 %v1104, 1.442695
        %v1205 = vpow.pop %v1204
        %v1206 = vmul.f32 %v1105, 1.442695
        %v1207 = vpow.pop %v1206
        %v1208 = vmul.f32 %v1106, 1.442695
        %v1209 = vpow.pop %v1208
        %v1210 = vmul.f32 %v1107, 1.442695
        %v1211 = vpow.pop %v1210
        %v1212 = vmul.f32 %v1108, 1.442695
        %v1213 = vpow.pop %v1212
        %v1214 = vmul.f32 %v1109, 1.442695
        %v1215 = vpow.pop %v1214
        %v1216 = vmul.f32 %v1110, 1.442695
        %v1217 = vpow.pop %v1216
        %v1218 = vmul.f32 %v1111, 1.442695
        %v1219 = vpow.pop %v1218
        %v1220 = vmul.f32 %v1112, 1.442695
        %v1221 = vpow.pop %v1220
        %v1222 = vmul.f32 %v1113, 1.442695
        %v1223 = vpow.pop %v1222
        %v1224 = vmul.f32 %v1114, 1.442695
        %v1225 = vpow.pop %v1224
        %v1226 = vmul.f32 %v1115, 1.442695
        %v1227 = vpow.pop %v1226
        %v1228 = vmul.f32 %v1116, 1.442695
        %v1229 = vpow.pop %v1228
        %v1230 = vmul.f32 %v1117, 1.442695
        %v1231 = vpow.pop %v1230
        %v1232 = vmul.f32 %v1118, 1.442695
        %v1233 = vpow.pop %v1232
        %v1234 = vmul.f32 %v1119, 1.442695
        %v1235 = vpow.pop %v1234
        %v1236 = vmul.f32 %v1120, 1.442695
        %v1237 = vpow.pop %v1236
        %v1238 = vmul.f32 %v1121, 1.442695
        %v1239 = vpow.pop %v1238
        %v1240 = vmul.f32 %v1122, 1.442695
        %v1241 = vpow.pop %v1240
        %v1242 = vmul.f32 %v1123, 1.442695
        %v1243 = vpow.pop %v1242
        %v1244 = vmul.f32 %v1124, 1.442695
        %v1245 = vpow.pop %v1244
        %v1246 = vmul.f32 %v1125, 1.442695
        %v1247 = vpow.pop %v1246
        %v1248 = vmul.f32 %v1126, 1.442695
        %v1249 = vpow.pop %v1248
        %v1250 = vmul.f32 %v1127, 1.442695
        %v1251 = vpow.pop %v1250
        %v1252 = vmul.f32 %v1128, 1.442695
        %v1253 = vpow.pop %v1252
        %v1254 = vmul.f32 %v1129, 1.442695
        %v1255 = vpow.pop %v1254
        %v1256 = vmul.f32 %v1130, 1.442695
        %v1257 = vpow.pop %v1256
        %v1258 = vmul.f32 %v1131, 1.442695
        %v1259 = vpow.pop %v1258
        %v1260 = vadd.f32 %v1133, 1.0
        %v1261 = vadd.f32 %v1135, 1.0
        %v1262 = vadd.f32 %v1137, 1.0
        %v1263 = vadd.f32 %v1139, 1.0
        %v1264 = vadd.f32 %v1141, 1.0
        %v1265 = vadd.f32 %v1143, 1.0
        %v1266 = vadd.f32 %v1145, 1.0
        %v1267 = vadd.f32 %v1147, 1.0
        %v1268 = vadd.f32 %v1149, 1.0
        %v1269 = vadd.f32 %v1151, 1.0
        %v1270 = vadd.f32 %v1153, 1.0
        %v1271 = vadd.f32 %v1155, 1.0
        %v1272 = vadd.f32 %v1157, 1.0
        %v1273 = vadd.f32 %v1159, 1.0
        %v1274 = vadd.f32 %v1161, 1.0
        %v1275 = vadd.f32 %v1163, 1.0
        %v1276 = vadd.f32 %v1165, 1.0
        %v1277 = vadd.f32 %v1167, 1.0
        %v1278 = vadd.f32 %v1169, 1.0
        %v1279 = vadd.f32 %v1171, 1.0
        %v1280 = vadd.f32 %v1173, 1.0
        %v1281 = vadd.f32 %v1175, 1.0
        %v1282 = vadd.f32 %v1177, 1.0
        %v1283 = vadd.f32 %v1179, 1.0
        %v1284 = vadd.f32 %v1181, 1.0
        %v1285 = vadd.f32 %v1183, 1.0
        %v1286 = vadd.f32 %v1185, 1.0
        %v1287 = vadd.f32 %v1187, 1.0
        %v1288 = vadd.f32 %v1189, 1.0
        %v1289 = vadd.f32 %v1191, 1.0
        %v1290 = vadd.f32 %v1193, 1.0
        %v1291 = vadd.f32 %v1195, 1.0
        %v1292 = vadd.f32 %v1197, 1.0
        %v1293 = vadd.f32 %v1199, 1.0
        %v1294 = vadd.f32 %v1201, 1.0
        %v1295 = vadd.f32 %v1203, 1.0
        %v1296 = vadd.f32 %v1205, 1.0
        %v1297 = vadd.f32 %v1207, 1.0
        %v1298 = vadd.f32 %v1209, 1.0
        %v1299 = vadd.f32 %v1211, 1.0
        %v1300 = vadd.f32 %v1213, 1.0
        %v1301 = vadd.f32 %v1215, 1.0
        %v1302 = vadd.f32 %v1217, 1.0
        %v1303 = vadd.f32 %v1219, 1.0
        %v1304 = vadd.f32 %v1221, 1.0
        %v1305 = vadd.f32 %v1223, 1.0
        %v1306 = vadd.f32 %v1225, 1.0
        %v1307 = vadd.f32 %v1227, 1.0
        %v1308 = vadd.f32 %v1229, 1.0
        %v1309 = vadd.f32 %v1231, 1.0
        %v1310 = vadd.f32 %v1233, 1.0
        %v1311 = vadd.f32 %v1235, 1.0
        %v1312 = vadd.f32 %v1237, 1.0
        %v1313 = vadd.f32 %v1239, 1.0
        %v1314 = vadd.f32 %v1241, 1.0
        %v1315 = vadd.f32 %v1243, 1.0
        %v1316 = vadd.f32 %v1245, 1.0
        %v1317 = vadd.f32 %v1247, 1.0
        %v1318 = vadd.f32 %v1249, 1.0
        %v1319 = vadd.f32 %v1251, 1.0
        %v1320 = vadd.f32 %v1253, 1.0
        %v1321 = vadd.f32 %v1255, 1.0
        %v1322 = vadd.f32 %v1257, 1.0
        %v1323 = vadd.f32 %v1259, 1.0
        %v1324 = vrcp.pop %v1260
        %v1325 = vrcp.pop %v1261
        %v1326 = vrcp.pop %v1262
        %v1327 = vrcp.pop %v1263
        %v1328 = vrcp.pop %v1264
        %v1329 = vrcp.pop %v1265
        %v1330 = vrcp.pop %v1266
        %v1331 = vrcp.pop %v1267
        %v1332 = vrcp.pop %v1268
        %v1333 = vrcp.pop %v1269
        %v1334 = vrcp.pop %v1270
        %v1335 = vrcp.pop %v1271
        %v1336 = vrcp.pop %v1272
        %v1337 = vrcp.pop %v1273
        %v1338 = vrcp.pop %v1274
        %v1339 = vrcp.pop %v1275
        %v1340 = vrcp.pop %v1276
        %v1341 = vrcp.pop %v1277
        %v1342 = vrcp.pop %v1278
        %v1343 = vrcp.pop %v1279
        %v1344 = vrcp.pop %v1280
        %v1345 = vrcp.pop %v1281
        %v1346 = vrcp.pop %v1282
        %v1347 = vrcp.pop %v1283
        %v1348 = vrcp.pop %v1284
        %v1349 = vrcp.pop %v1285
        %v1350 = vrcp.pop %v1286
        %v1351 = vrcp.pop %v1287
        %v1352 = vrcp.pop %v1288
        %v1353 = vrcp.pop %v1289
        %v1354 = vrcp.pop %v1290
        %v1355 = vrcp.pop %v1291
        %v1356 = vrcp.pop %v1292
        %v1357 = vrcp.pop %v1293
        %v1358 = vrcp.pop %v1294
        %v1359 = vrcp.pop %v1295
        %v1360 = vrcp.pop %v1296
        %v1361 = vrcp.pop %v1297
        %v1362 = vrcp.pop %v1298
        %v1363 = vrcp.pop %v1299
        %v1364 = vrcp.pop %v1300
        %v1365 = vrcp.pop %v1301
        %v1366 = vrcp.pop %v1302
        %v1367 = vrcp.pop %v1303
        %v1368 = vrcp.pop %v1304
        %v1369 = vrcp.pop %v1305
        %v1370 = vrcp.pop %v1306
        %v1371 = vrcp.pop %v1307
        %v1372 = vrcp.pop %v1308
        %v1373 = vrcp.pop %v1309
        %v1374 = vrcp.pop %v1310
        %v1375 = vrcp.pop %v1311
        %v1376 = vrcp.pop %v1312
        %v1377 = vrcp.pop %v1313
        %v1378 = vrcp.pop %v1314
        %v1379 = vrcp.pop %v1315
        %v1380 = vrcp.pop %v1316
        %v1381 = vrcp.pop %v1317
        %v1382 = vrcp.pop %v1318
        %v1383 = vrcp.pop %v1319
        %v1384 = vrcp.pop %v1320
        %v1385 = vrcp.pop %v1321
        %v1386 = vrcp.pop %v1322
        %v1387 = vrcp.pop %v1323
        %1388 = vst [vmem:[%s177] sm:$0xff] %v1324
        %1389 = vst [vmem:[%s177 + $0x8] sm:$0xff] %v1325
        %1390 = vst [vmem:[%s177 + $0x10] sm:$0xff] %v1326
        %1391 = vst [vmem:[%s177 + $0x18] sm:$0xff] %v1327
        %1392 = vst [vmem:[%s177 + $0x20] sm:$0xff] %v1328
        %1393 = vst [vmem:[%s177 + $0x28] sm:$0xff] %v1329
        %1394 = vst [vmem:[%s177 + $0x30] sm:$0xff] %v1330
        %1395 = vst [vmem:[%s177 + $0x38] sm:$0xff] %v1331
        %1396 = vst [vmem:[%s177 + $0x40] sm:$0xff] %v1332
        %1397 = vst [vmem:[%s177 + $0x48] sm:$0xff] %v1333
        %1398 = vst [vmem:[%s177 + $0x50] sm:$0xff] %v1334
        %1399 = vst [vmem:[%s177 + $0x58] sm:$0xff] %v1335
        %1400 = vst [vmem:[%s177 + $0x60] sm:$0xff] %v1336
        %1401 = vst [vmem:[%s177 + $0x68] sm:$0xff] %v1337
        %1402 = vst [vmem:[%s177 + $0x70] sm:$0xff] %v1338
        %1403 = vst [vmem:[%s177 + $0x78] sm:$0xff] %v1339
        %1404 = vst [vmem:[%s177 + $0x80] sm:$0xff] %v1340
        %1405 = vst [vmem:[%s177 + $0x88] sm:$0xff] %v1341
        %1406 = vst [vmem:[%s177 + $0x90] sm:$0xff] %v1342
        %1407 = vst [vmem:[%s177 + $0x98] sm:$0xff] %v1343
        %1408 = vst [vmem:[%s177 + $0xa0] sm:$0xff] %v1344
        %1409 = vst [vmem:[%s177 + $0xa8] sm:$0xff] %v1345
        %1410 = vst [vmem:[%s177 + $0xb0] sm:$0xff] %v1346
        %1411 = vst [vmem:[%s177 + $0xb8] sm:$0xff] %v1347
        %1412 = vst [vmem:[%s177 + $0xc0] sm:$0xff] %v1348
        %1413 = vst [vmem:[%s177 + $0xc8] sm:$0xff] %v1349
        %1414 = vst [vmem:[%s177 + $0xd0] sm:$0xff] %v1350
        %1415 = vst [vmem:[%s177 + $0xd8] sm:$0xff] %v1351
        %1416 = vst [vmem:[%s177 + $0xe0] sm:$0xff] %v1352
        %1417 = vst [vmem:[%s177 + $0xe8] sm:$0xff] %v1353
        %1418 = vst [vmem:[%s177 + $0xf0] sm:$0xff] %v1354
        %1419 = vst [vmem:[%s177 + $0xf8] sm:$0xff] %v1355
        %1420 = vst [vmem:[%s177 + $0x100] sm:$0xff] %v1356
        %1421 = vst [vmem:[%s177 + $0x108] sm:$0xff] %v1357
        %1422 = vst [vmem:[%s177 + $0x110] sm:$0xff] %v1358
        %1423 = vst [vmem:[%s177 + $0x118] sm:$0xff] %v1359
        %1424 = vst [vmem:[%s177 + $0x120] sm:$0xff] %v1360
        %1425 = vst [vmem:[%s177 + $0x128] sm:$0xff] %v1361
        %1426 = vst [vmem:[%s177 + $0x130] sm:$0xff] %v1362
        %1427 = vst [vmem:[%s177 + $0x138] sm:$0xff] %v1363
        %1428 = vst [vmem:[%s177 + $0x140] sm:$0xff] %v1364
        %1429 = vst [vmem:[%s177 + $0x148] sm:$0xff] %v1365
        %1430 = vst [vmem:[%s177 + $0x150] sm:$0xff] %v1366
        %1431 = vst [vmem:[%s177 + $0x158] sm:$0xff] %v1367
        %1432 = vst [vmem:[%s177 + $0x160] sm:$0xff] %v1368
        %1433 = vst [vmem:[%s177 + $0x168] sm:$0xff] %v1369
        %1434 = vst [vmem:[%s177 + $0x170] sm:$0xff] %v1370
        %1435 = vst [vmem:[%s177 + $0x178] sm:$0xff] %v1371
        %1436 = vst [vmem:[%s177 + $0x180] sm:$0xff] %v1372
        %1437 = vst [vmem:[%s177 + $0x188] sm:$0xff] %v1373
        %1438 = vst [vmem:[%s177 + $0x190] sm:$0xff] %v1374
        %1439 = vst [vmem:[%s177 + $0x198] sm:$0xff] %v1375
        %1440 = vst [vmem:[%s177 + $0x1a0] sm:$0xff] %v1376
        %1441 = vst [vmem:[%s177 + $0x1a8] sm:$0xff] %v1377
        %1442 = vst [vmem:[%s177 + $0x1b0] sm:$0xff] %v1378
        %1443 = vst [vmem:[%s177 + $0x1b8] sm:$0xff] %v1379
        %1444 = vst [vmem:[%s177 + $0x1c0] sm:$0xff] %v1380
        %1445 = vst [vmem:[%s177 + $0x1c8] sm:$0xff] %v1381
        %1446 = vst [vmem:[%s177 + $0x1d0] sm:$0xff] %v1382
        %1447 = vst [vmem:[%s177 + $0x1d8] sm:$0xff] %v1383
        %1448 = vst [vmem:[%s177 + $0x1e0] sm:$0xff] %v1384
        %1449 = vst [vmem:[%s177 + $0x1e8] sm:$0xff] %v1385
        %1450 = vst [vmem:[%s177 + $0x1f0] sm:$0xff] %v1386
        %1451 = vst [vmem:[%s177 + $0x1f8] sm:$0xff] %v1387
        %s1452 = sand.u32 %s90, 1
        %s1453 = sand.u32 %s90, 1
        %s1454 = smul.addr %s1453, 512
        %s1455 = scalar_lea.vmem [#allocation2], %s1454
        // Predicated region
        $region33: #{forward.17} parent=31 // pred_check
          %p1456 = pneg %p100
        $region34: #{forward.17} parent=31 // pred_check_branch
          %1458 = sbr.rel (%p1456) target = $region36
        $region35: #{forward.17} parent=31 // pred_region
          %s1459 = smul.u32 64, %s14
          %s1460 = ssub.s32 469, %s1459
          %p1461 = scmp.lt.s32.totalorder %s1460, 64
          %s1462 = scalar_select %p1461, %s1460, 64
          %s1463 = smul.u32 128, %s1462
          %p1464 = scmp.ne.s32.totalorder 0, %s1463
          %s1465 = smul.addr %s1459, 8
          %s1466 = scalar_lea.vmem %s3, %s1465
          // Predicated region
          $region37: #{forward.17} parent=35 // pred_check
            %p1467 = pneg %p1464
          $region38: #{forward.17} parent=35 // pred_check_branch
            %1469 = sbr.rel (%p1467) target = $region40
          $region39: #{forward.17} parent=35 // pred_region
            // Predicated region
            $region41: #{forward.17} parent=39 // pred_check
              _
            $region42: #{forward.17} parent=39 // pred_check_branch
              %1471 = sbr.rel (0) target = $region44
            $region43: #{forward.17} parent=39 // pred_region
              // Predicated region
              $region63: #{forward.17} parent=43 // pred_check
                _
              $region64: #{forward.17} parent=43 // pred_check_branch
                %1646 = sbr.rel (0) target = $region66
              $region65: #{forward.17} parent=43 // pred_region
                %s1647 = sshrl.u32 %s1462, 6
                // While loop
                $region67: #{forward.17} parent=65 // loop_pre_header
                  _
                $region68: #{forward.17} parent=65 // loop_header
                  %s1649 = sphi 0, %s1651
                  %p1650 = scmp.ge.s32.totalorder %s1649, %s1647
                  %s1654 = sphi 0, %s1787
                  %s1655 = sphi %s1455, %s1790
                  %s1656 = sphi %s1466, %s1791
                $region69: #{forward.17} parent=65 // loop_header_branch
                  %1653 = sbr.rel (%p1650) target = $region73
                $region70: #{forward.17} parent=65 // loop_body
                  %v1657 = vld [vmem:[%s1655] sm:$0xff]
                  %1658 = vst [vmem:[%s1656] sm:$0xff] %v1657
                  %v1659 = vld [vmem:[%s1655 + $0x8] sm:$0xff]
                  %1660 = vst [vmem:[%s1656 + $0x8] sm:$0xff] %v1659
                  %v1661 = vld [vmem:[%s1655 + $0x10] sm:$0xff]
                  %1662 = vst [vmem:[%s1656 + $0x10] sm:$0xff] %v1661
                  %v1663 = vld [vmem:[%s1655 + $0x18] sm:$0xff]
                  %1664 = vst [vmem:[%s1656 + $0x18] sm:$0xff] %v1663
                  %v1665 = vld [vmem:[%s1655 + $0x20] sm:$0xff]
                  %1666 = vst [vmem:[%s1656 + $0x20] sm:$0xff] %v1665
                  %v1667 = vld [vmem:[%s1655 + $0x28] sm:$0xff]
                  %1668 = vst [vmem:[%s1656 + $0x28] sm:$0xff] %v1667
                  %v1669 = vld [vmem:[%s1655 + $0x30] sm:$0xff]
                  %1670 = vst [vmem:[%s1656 + $0x30] sm:$0xff] %v1669
                  %v1671 = vld [vmem:[%s1655 + $0x38] sm:$0xff]
                  %1672 = vst [vmem:[%s1656 + $0x38] sm:$0xff] %v1671
                  %v1673 = vld [vmem:[%s1655 + $0x40] sm:$0xff]
                  %1674 = vst [vmem:[%s1656 + $0x40] sm:$0xff] %v1673
                  %v1675 = vld [vmem:[%s1655 + $0x48] sm:$0xff]
                  %1676 = vst [vmem:[%s1656 + $0x48] sm:$0xff] %v1675
                  %v1677 = vld [vmem:[%s1655 + $0x50] sm:$0xff]
                  %1678 = vst [vmem:[%s1656 + $0x50] sm:$0xff] %v1677
                  %v1679 = vld [vmem:[%s1655 + $0x58] sm:$0xff]
                  %1680 = vst [vmem:[%s1656 + $0x58] sm:$0xff] %v1679
                  %v1681 = vld [vmem:[%s1655 + $0x60] sm:$0xff]
                  %1682 = vst [vmem:[%s1656 + $0x60] sm:$0xff] %v1681
                  %v1683 = vld [vmem:[%s1655 + $0x68] sm:$0xff]
                  %1684 = vst [vmem:[%s1656 + $0x68] sm:$0xff] %v1683
                  %v1685 = vld [vmem:[%s1655 + $0x70] sm:$0xff]
                  %1686 = vst [vmem:[%s1656 + $0x70] sm:$0xff] %v1685
                  %v1687 = vld [vmem:[%s1655 + $0x78] sm:$0xff]
                  %1688 = vst [vmem:[%s1656 + $0x78] sm:$0xff] %v1687
                  %v1689 = vld [vmem:[%s1655 + $0x80] sm:$0xff]
                  %1690 = vst [vmem:[%s1656 + $0x80] sm:$0xff] %v1689
                  %v1691 = vld [vmem:[%s1655 + $0x88] sm:$0xff]
                  %1692 = vst [vmem:[%s1656 + $0x88] sm:$0xff] %v1691
                  %v1693 = vld [vmem:[%s1655 + $0x90] sm:$0xff]
                  %1694 = vst [vmem:[%s1656 + $0x90] sm:$0xff] %v1693
                  %v1695 = vld [vmem:[%s1655 + $0x98] sm:$0xff]
                  %1696 = vst [vmem:[%s1656 + $0x98] sm:$0xff] %v1695
                  %v1697 = vld [vmem:[%s1655 + $0xa0] sm:$0xff]
                  %1698 = vst [vmem:[%s1656 + $0xa0] sm:$0xff] %v1697
                  %v1699 = vld [vmem:[%s1655 + $0xa8] sm:$0xff]
                  %1700 = vst [vmem:[%s1656 + $0xa8] sm:$0xff] %v1699
                  %v1701 = vld [vmem:[%s1655 + $0xb0] sm:$0xff]
                  %1702 = vst [vmem:[%s1656 + $0xb0] sm:$0xff] %v1701
                  %v1703 = vld [vmem:[%s1655 + $0xb8] sm:$0xff]
                  %1704 = vst [vmem:[%s1656 + $0xb8] sm:$0xff] %v1703
                  %v1705 = vld [vmem:[%s1655 + $0xc0] sm:$0xff]
                  %1706 = vst [vmem:[%s1656 + $0xc0] sm:$0xff] %v1705
                  %v1707 = vld [vmem:[%s1655 + $0xc8] sm:$0xff]
                  %1708 = vst [vmem:[%s1656 + $0xc8] sm:$0xff] %v1707
                  %v1709 = vld [vmem:[%s1655 + $0xd0] sm:$0xff]
                  %1710 = vst [vmem:[%s1656 + $0xd0] sm:$0xff] %v1709
                  %v1711 = vld [vmem:[%s1655 + $0xd8] sm:$0xff]
                  %1712 = vst [vmem:[%s1656 + $0xd8] sm:$0xff] %v1711
                  %v1713 = vld [vmem:[%s1655 + $0xe0] sm:$0xff]
                  %1714 = vst [vmem:[%s1656 + $0xe0] sm:$0xff] %v1713
                  %v1715 = vld [vmem:[%s1655 + $0xe8] sm:$0xff]
                  %1716 = vst [vmem:[%s1656 + $0xe8] sm:$0xff] %v1715
                  %v1717 = vld [vmem:[%s1655 + $0xf0] sm:$0xff]
                  %1718 = vst [vmem:[%s1656 + $0xf0] sm:$0xff] %v1717
                  %v1719 = vld [vmem:[%s1655 + $0xf8] sm:$0xff]
                  %1720 = vst [vmem:[%s1656 + $0xf8] sm:$0xff] %v1719
                  %v1721 = vld [vmem:[%s1655 + $0x100] sm:$0xff]
                  %1722 = vst [vmem:[%s1656 + $0x100] sm:$0xff] %v1721
                  %v1723 = vld [vmem:[%s1655 + $0x108] sm:$0xff]
                  %1724 = vst [vmem:[%s1656 + $0x108] sm:$0xff] %v1723
                  %v1725 = vld [vmem:[%s1655 + $0x110] sm:$0xff]
                  %1726 = vst [vmem:[%s1656 + $0x110] sm:$0xff] %v1725
                  %v1727 = vld [vmem:[%s1655 + $0x118] sm:$0xff]
                  %1728 = vst [vmem:[%s1656 + $0x118] sm:$0xff] %v1727
                  %v1729 = vld [vmem:[%s1655 + $0x120] sm:$0xff]
                  %1730 = vst [vmem:[%s1656 + $0x120] sm:$0xff] %v1729
                  %v1731 = vld [vmem:[%s1655 + $0x128] sm:$0xff]
                  %1732 = vst [vmem:[%s1656 + $0x128] sm:$0xff] %v1731
                  %v1733 = vld [vmem:[%s1655 + $0x130] sm:$0xff]
                  %1734 = vst [vmem:[%s1656 + $0x130] sm:$0xff] %v1733
                  %v1735 = vld [vmem:[%s1655 + $0x138] sm:$0xff]
                  %1736 = vst [vmem:[%s1656 + $0x138] sm:$0xff] %v1735
                  %v1737 = vld [vmem:[%s1655 + $0x140] sm:$0xff]
                  %1738 = vst [vmem:[%s1656 + $0x140] sm:$0xff] %v1737
                  %v1739 = vld [vmem:[%s1655 + $0x148] sm:$0xff]
                  %1740 = vst [vmem:[%s1656 + $0x148] sm:$0xff] %v1739
                  %v1741 = vld [vmem:[%s1655 + $0x150] sm:$0xff]
                  %1742 = vst [vmem:[%s1656 + $0x150] sm:$0xff] %v1741
                  %v1743 = vld [vmem:[%s1655 + $0x158] sm:$0xff]
                  %1744 = vst [vmem:[%s1656 + $0x158] sm:$0xff] %v1743
                  %v1745 = vld [vmem:[%s1655 + $0x160] sm:$0xff]
                  %1746 = vst [vmem:[%s1656 + $0x160] sm:$0xff] %v1745
                  %v1747 = vld [vmem:[%s1655 + $0x168] sm:$0xff]
                  %1748 = vst [vmem:[%s1656 + $0x168] sm:$0xff] %v1747
                  %v1749 = vld [vmem:[%s1655 + $0x170] sm:$0xff]
                  %1750 = vst [vmem:[%s1656 + $0x170] sm:$0xff] %v1749
                  %v1751 = vld [vmem:[%s1655 + $0x178] sm:$0xff]
                  %1752 = vst [vmem:[%s1656 + $0x178] sm:$0xff] %v1751
                  %v1753 = vld [vmem:[%s1655 + $0x180] sm:$0xff]
                  %1754 = vst [vmem:[%s1656 + $0x180] sm:$0xff] %v1753
                  %v1755 = vld [vmem:[%s1655 + $0x188] sm:$0xff]
                  %1756 = vst [vmem:[%s1656 + $0x188] sm:$0xff] %v1755
                  %v1757 = vld [vmem:[%s1655 + $0x190] sm:$0xff]
                  %1758 = vst [vmem:[%s1656 + $0x190] sm:$0xff] %v1757
                  %v1759 = vld [vmem:[%s1655 + $0x198] sm:$0xff]
                  %1760 = vst [vmem:[%s1656 + $0x198] sm:$0xff] %v1759
                  %v1761 = vld [vmem:[%s1655 + $0x1a0] sm:$0xff]
                  %1762 = vst [vmem:[%s1656 + $0x1a0] sm:$0xff] %v1761
                  %v1763 = vld [vmem:[%s1655 + $0x1a8] sm:$0xff]
                  %1764 = vst [vmem:[%s1656 + $0x1a8] sm:$0xff] %v1763
                  %v1765 = vld [vmem:[%s1655 + $0x1b0] sm:$0xff]
                  %1766 = vst [vmem:[%s1656 + $0x1b0] sm:$0xff] %v1765
                  %v1767 = vld [vmem:[%s1655 + $0x1b8] sm:$0xff]
                  %1768 = vst [vmem:[%s1656 + $0x1b8] sm:$0xff] %v1767
                  %v1769 = vld [vmem:[%s1655 + $0x1c0] sm:$0xff]
                  %1770 = vst [vmem:[%s1656 + $0x1c0] sm:$0xff] %v1769
                  %v1771 = vld [vmem:[%s1655 + $0x1c8] sm:$0xff]
                  %1772 = vst [vmem:[%s1656 + $0x1c8] sm:$0xff] %v1771
                  %v1773 = vld [vmem:[%s1655 + $0x1d0] sm:$0xff]
                  %1774 = vst [vmem:[%s1656 + $0x1d0] sm:$0xff] %v1773
                  %v1775 = vld [vmem:[%s1655 + $0x1d8] sm:$0xff]
                  %1776 = vst [vmem:[%s1656 + $0x1d8] sm:$0xff] %v1775
                  %v1777 = vld [vmem:[%s1655 + $0x1e0] sm:$0xff]
                  %1778 = vst [vmem:[%s1656 + $0x1e0] sm:$0xff] %v1777
                  %v1779 = vld [vmem:[%s1655 + $0x1e8] sm:$0xff]
                  %1780 = vst [vmem:[%s1656 + $0x1e8] sm:$0xff] %v1779
                  %v1781 = vld [vmem:[%s1655 + $0x1f0] sm:$0xff]
                  %1782 = vst [vmem:[%s1656 + $0x1f0] sm:$0xff] %v1781
                  %v1783 = vld [vmem:[%s1655 + $0x1f8] sm:$0xff]
                  %1784 = vst [vmem:[%s1656 + $0x1f8] sm:$0xff] %v1783
                  %s1785 = sadd.s32 1, %s1654
                  %p1786 = scmp.ge.s32.totalorder %s1785, %s1647
                  %s1787 = scalar_select %p1786, 0, %s1785
                  %s1788 = smul.u32 %s1787, 512
                  %s1789 = smul.u32 %s1787, 512
                  %s1790 = scalar_lea.vmem %s1455, %s1788 [#allocation2]
                  %s1791 = scalar_lea.vmem %s1466, %s1789
                $region71: #{forward.17} parent=65 // loop_footer
                  %s1651 = sadd.s32 %s1649, 1
                $region72: #{forward.17} parent=65 // loop_footer_branch
                  %1648 = sbr.rel target = $region68
                $region73: #{forward.17} parent=65 // loop_exit
                  _
                %s1792 = sshrl.u32 %s1462, 6
                %s1793 = sand.u32 %s1462, 63
                %s1794 = smul.u32 %s1792, 64
                %s1795 = smul.u32 8, %s1794
                %s1796 = scalar_lea.vmem %s1455, %s1795 [#allocation2]
                %s1797 = smul.u32 8, %s1794
                %s1798 = scalar_lea.vmem %s1466, %s1797
                // While loop
                $region74: #{forward.17} parent=65 // loop_pre_header
                  _
                $region75: #{forward.17} parent=65 // loop_header
                  %s1800 = sphi 0, %s1802
                  %p1801 = scmp.ge.s32.totalorder %s1800, %s1793
                  %s1805 = sphi 0, %s1812
                  %s1806 = sphi %s1796, %s1815
                  %s1807 = sphi %s1798, %s1816
                $region76: #{forward.17} parent=65 // loop_header_branch
                  %1804 = sbr.rel (%p1801) target = $region80
                $region77: #{forward.17} parent=65 // loop_body
                  %v1808 = vld [vmem:[%s1806] sm:$0xff]
                  %1809 = vst [vmem:[%s1807] sm:$0xff] %v1808
                  %s1810 = sadd.s32 1, %s1805
                  %p1811 = scmp.ge.s32.totalorder %s1810, %s1793
                  %s1812 = scalar_select %p1811, 0, %s1810
                  %s1813 = smul.u32 %s1812, 8
                  %s1814 = smul.u32 %s1812, 8
                  %s1815 = scalar_lea.vmem %s1796, %s1813 [#allocation2]
                  %s1816 = scalar_lea.vmem %s1798, %s1814
                $region78: #{forward.17} parent=65 // loop_footer
                  %s1802 = sadd.s32 %s1800, 1
                $region79: #{forward.17} parent=65 // loop_footer_branch
                  %1799 = sbr.rel target = $region75
                $region80: #{forward.17} parent=65 // loop_exit
                  _
              $region66: #{forward.17} parent=43 // pred_fallthru
                _
              // Predicated region
              $region81: #{forward.17} parent=43 // pred_check
                _
              $region82: #{forward.17} parent=43 // pred_check_branch
                %1818 = sbr.rel target = $region84
              $region83: #{forward.17} parent=43 // pred_region
                _
              $region84: #{forward.17} parent=43 // pred_fallthru
                _
            $region44: #{forward.17} parent=39 // pred_fallthru
              _
            // Predicated region
            $region45: #{forward.17} parent=39 // pred_check
              _
            $region46: #{forward.17} parent=39 // pred_check_branch
              %1473 = sbr.rel target = $region48
            $region47: #{forward.17} parent=39 // pred_region
              %s1475 = sshrl.u32 %s1462, 6
              // While loop
              $region49: #{forward.17} parent=47 // loop_pre_header
                _
              $region50: #{forward.17} parent=47 // loop_header
                %s1477 = sphi 0, %s1479
                %p1478 = scmp.ge.s32.totalorder %s1477, %s1475
                %s1482 = sphi 0, %s1615
                %s1483 = sphi %s1455, %s1618
                %s1484 = sphi %s1466, %s1619
              $region51: #{forward.17} parent=47 // loop_header_branch
                %1481 = sbr.rel (%p1478) target = $region55
              $region52: #{forward.17} parent=47 // loop_body
                %v1485 = vld [vmem:[%s1483] sm:$0xff]
                %1486 = vst [vmem:[%s1484] sm:$0xff] %v1485
                %v1487 = vld [vmem:[%s1483 + $0x8] sm:$0xff]
                %1488 = vst [vmem:[%s1484 + $0x8] sm:$0xff] %v1487
                %v1489 = vld [vmem:[%s1483 + $0x10] sm:$0xff]
                %1490 = vst [vmem:[%s1484 + $0x10] sm:$0xff] %v1489
                %v1491 = vld [vmem:[%s1483 + $0x18] sm:$0xff]
                %1492 = vst [vmem:[%s1484 + $0x18] sm:$0xff] %v1491
                %v1493 = vld [vmem:[%s1483 + $0x20] sm:$0xff]
                %1494 = vst [vmem:[%s1484 + $0x20] sm:$0xff] %v1493
                %v1495 = vld [vmem:[%s1483 + $0x28] sm:$0xff]
                %1496 = vst [vmem:[%s1484 + $0x28] sm:$0xff] %v1495
                %v1497 = vld [vmem:[%s1483 + $0x30] sm:$0xff]
                %1498 = vst [vmem:[%s1484 + $0x30] sm:$0xff] %v1497
                %v1499 = vld [vmem:[%s1483 + $0x38] sm:$0xff]
                %1500 = vst [vmem:[%s1484 + $0x38] sm:$0xff] %v1499
                %v1501 = vld [vmem:[%s1483 + $0x40] sm:$0xff]
                %1502 = vst [vmem:[%s1484 + $0x40] sm:$0xff] %v1501
                %v1503 = vld [vmem:[%s1483 + $0x48] sm:$0xff]
                %1504 = vst [vmem:[%s1484 + $0x48] sm:$0xff] %v1503
                %v1505 = vld [vmem:[%s1483 + $0x50] sm:$0xff]
                %1506 = vst [vmem:[%s1484 + $0x50] sm:$0xff] %v1505
                %v1507 = vld [vmem:[%s1483 + $0x58] sm:$0xff]
                %1508 = vst [vmem:[%s1484 + $0x58] sm:$0xff] %v1507
                %v1509 = vld [vmem:[%s1483 + $0x60] sm:$0xff]
                %1510 = vst [vmem:[%s1484 + $0x60] sm:$0xff] %v1509
                %v1511 = vld [vmem:[%s1483 + $0x68] sm:$0xff]
                %1512 = vst [vmem:[%s1484 + $0x68] sm:$0xff] %v1511
                %v1513 = vld [vmem:[%s1483 + $0x70] sm:$0xff]
                %1514 = vst [vmem:[%s1484 + $0x70] sm:$0xff] %v1513
                %v1515 = vld [vmem:[%s1483 + $0x78] sm:$0xff]
                %1516 = vst [vmem:[%s1484 + $0x78] sm:$0xff] %v1515
                %v1517 = vld [vmem:[%s1483 + $0x80] sm:$0xff]
                %1518 = vst [vmem:[%s1484 + $0x80] sm:$0xff] %v1517
                %v1519 = vld [vmem:[%s1483 + $0x88] sm:$0xff]
                %1520 = vst [vmem:[%s1484 + $0x88] sm:$0xff] %v1519
                %v1521 = vld [vmem:[%s1483 + $0x90] sm:$0xff]
                %1522 = vst [vmem:[%s1484 + $0x90] sm:$0xff] %v1521
                %v1523 = vld [vmem:[%s1483 + $0x98] sm:$0xff]
                %1524 = vst [vmem:[%s1484 + $0x98] sm:$0xff] %v1523
                %v1525 = vld [vmem:[%s1483 + $0xa0] sm:$0xff]
                %1526 = vst [vmem:[%s1484 + $0xa0] sm:$0xff] %v1525
                %v1527 = vld [vmem:[%s1483 + $0xa8] sm:$0xff]
                %1528 = vst [vmem:[%s1484 + $0xa8] sm:$0xff] %v1527
                %v1529 = vld [vmem:[%s1483 + $0xb0] sm:$0xff]
                %1530 = vst [vmem:[%s1484 + $0xb0] sm:$0xff] %v1529
                %v1531 = vld [vmem:[%s1483 + $0xb8] sm:$0xff]
                %1532 = vst [vmem:[%s1484 + $0xb8] sm:$0xff] %v1531
                %v1533 = vld [vmem:[%s1483 + $0xc0] sm:$0xff]
                %1534 = vst [vmem:[%s1484 + $0xc0] sm:$0xff] %v1533
                %v1535 = vld [vmem:[%s1483 + $0xc8] sm:$0xff]
                %1536 = vst [vmem:[%s1484 + $0xc8] sm:$0xff] %v1535
                %v1537 = vld [vmem:[%s1483 + $0xd0] sm:$0xff]
                %1538 = vst [vmem:[%s1484 + $0xd0] sm:$0xff] %v1537
                %v1539 = vld [vmem:[%s1483 + $0xd8] sm:$0xff]
                %1540 = vst [vmem:[%s1484 + $0xd8] sm:$0xff] %v1539
                %v1541 = vld [vmem:[%s1483 + $0xe0] sm:$0xff]
                %1542 = vst [vmem:[%s1484 + $0xe0] sm:$0xff] %v1541
                %v1543 = vld [vmem:[%s1483 + $0xe8] sm:$0xff]
                %1544 = vst [vmem:[%s1484 + $0xe8] sm:$0xff] %v1543
                %v1545 = vld [vmem:[%s1483 + $0xf0] sm:$0xff]
                %1546 = vst [vmem:[%s1484 + $0xf0] sm:$0xff] %v1545
                %v1547 = vld [vmem:[%s1483 + $0xf8] sm:$0xff]
                %1548 = vst [vmem:[%s1484 + $0xf8] sm:$0xff] %v1547
                %v1549 = vld [vmem:[%s1483 + $0x100] sm:$0xff]
                %1550 = vst [vmem:[%s1484 + $0x100] sm:$0xff] %v1549
                %v1551 = vld [vmem:[%s1483 + $0x108] sm:$0xff]
                %1552 = vst [vmem:[%s1484 + $0x108] sm:$0xff] %v1551
                %v1553 = vld [vmem:[%s1483 + $0x110] sm:$0xff]
                %1554 = vst [vmem:[%s1484 + $0x110] sm:$0xff] %v1553
                %v1555 = vld [vmem:[%s1483 + $0x118] sm:$0xff]
                %1556 = vst [vmem:[%s1484 + $0x118] sm:$0xff] %v1555
                %v1557 = vld [vmem:[%s1483 + $0x120] sm:$0xff]
                %1558 = vst [vmem:[%s1484 + $0x120] sm:$0xff] %v1557
                %v1559 = vld [vmem:[%s1483 + $0x128] sm:$0xff]
                %1560 = vst [vmem:[%s1484 + $0x128] sm:$0xff] %v1559
                %v1561 = vld [vmem:[%s1483 + $0x130] sm:$0xff]
                %1562 = vst [vmem:[%s1484 + $0x130] sm:$0xff] %v1561
                %v1563 = vld [vmem:[%s1483 + $0x138] sm:$0xff]
                %1564 = vst [vmem:[%s1484 + $0x138] sm:$0xff] %v1563
                %v1565 = vld [vmem:[%s1483 + $0x140] sm:$0xff]
                %1566 = vst [vmem:[%s1484 + $0x140] sm:$0xff] %v1565
                %v1567 = vld [vmem:[%s1483 + $0x148] sm:$0xff]
                %1568 = vst [vmem:[%s1484 + $0x148] sm:$0xff] %v1567
                %v1569 = vld [vmem:[%s1483 + $0x150] sm:$0xff]
                %1570 = vst [vmem:[%s1484 + $0x150] sm:$0xff] %v1569
                %v1571 = vld [vmem:[%s1483 + $0x158] sm:$0xff]
                %1572 = vst [vmem:[%s1484 + $0x158] sm:$0xff] %v1571
                %v1573 = vld [vmem:[%s1483 + $0x160] sm:$0xff]
                %1574 = vst [vmem:[%s1484 + $0x160] sm:$0xff] %v1573
                %v1575 = vld [vmem:[%s1483 + $0x168] sm:$0xff]
                %1576 = vst [vmem:[%s1484 + $0x168] sm:$0xff] %v1575
                %v1577 = vld [vmem:[%s1483 + $0x170] sm:$0xff]
                %1578 = vst [vmem:[%s1484 + $0x170] sm:$0xff] %v1577
                %v1579 = vld [vmem:[%s1483 + $0x178] sm:$0xff]
                %1580 = vst [vmem:[%s1484 + $0x178] sm:$0xff] %v1579
                %v1581 = vld [vmem:[%s1483 + $0x180] sm:$0xff]
                %1582 = vst [vmem:[%s1484 + $0x180] sm:$0xff] %v1581
                %v1583 = vld [vmem:[%s1483 + $0x188] sm:$0xff]
                %1584 = vst [vmem:[%s1484 + $0x188] sm:$0xff] %v1583
                %v1585 = vld [vmem:[%s1483 + $0x190] sm:$0xff]
                %1586 = vst [vmem:[%s1484 + $0x190] sm:$0xff] %v1585
                %v1587 = vld [vmem:[%s1483 + $0x198] sm:$0xff]
                %1588 = vst [vmem:[%s1484 + $0x198] sm:$0xff] %v1587
                %v1589 = vld [vmem:[%s1483 + $0x1a0] sm:$0xff]
                %1590 = vst [vmem:[%s1484 + $0x1a0] sm:$0xff] %v1589
                %v1591 = vld [vmem:[%s1483 + $0x1a8] sm:$0xff]
                %1592 = vst [vmem:[%s1484 + $0x1a8] sm:$0xff] %v1591
                %v1593 = vld [vmem:[%s1483 + $0x1b0] sm:$0xff]
                %1594 = vst [vmem:[%s1484 + $0x1b0] sm:$0xff] %v1593
                %v1595 = vld [vmem:[%s1483 + $0x1b8] sm:$0xff]
                %1596 = vst [vmem:[%s1484 + $0x1b8] sm:$0xff] %v1595
                %v1597 = vld [vmem:[%s1483 + $0x1c0] sm:$0xff]
                %1598 = vst [vmem:[%s1484 + $0x1c0] sm:$0xff] %v1597
                %v1599 = vld [vmem:[%s1483 + $0x1c8] sm:$0xff]
                %1600 = vst [vmem:[%s1484 + $0x1c8] sm:$0xff] %v1599
                %v1601 = vld [vmem:[%s1483 + $0x1d0] sm:$0xff]
                %1602 = vst [vmem:[%s1484 + $0x1d0] sm:$0xff] %v1601
                %v1603 = vld [vmem:[%s1483 + $0x1d8] sm:$0xff]
                %1604 = vst [vmem:[%s1484 + $0x1d8] sm:$0xff] %v1603
                %v1605 = vld [vmem:[%s1483 + $0x1e0] sm:$0xff]
                %1606 = vst [vmem:[%s1484 + $0x1e0] sm:$0xff] %v1605
                %v1607 = vld [vmem:[%s1483 + $0x1e8] sm:$0xff]
                %1608 = vst [vmem:[%s1484 + $0x1e8] sm:$0xff] %v1607
                %v1609 = vld [vmem:[%s1483 + $0x1f0] sm:$0xff]
                %1610 = vst [vmem:[%s1484 + $0x1f0] sm:$0xff] %v1609
                %v1611 = vld [vmem:[%s1483 + $0x1f8] sm:$0xff]
                %1612 = vst [vmem:[%s1484 + $0x1f8] sm:$0xff] %v1611
                %s1613 = sadd.s32 1, %s1482
                %p1614 = scmp.ge.s32.totalorder %s1613, %s1475
                %s1615 = scalar_select %p1614, 0, %s1613
                %s1616 = smul.u32 %s1615, 512
                %s1617 = smul.u32 %s1615, 512
                %s1618 = scalar_lea.vmem %s1455, %s1616 [#allocation2]
                %s1619 = scalar_lea.vmem %s1466, %s1617
              $region53: #{forward.17} parent=47 // loop_footer
                %s1479 = sadd.s32 %s1477, 1
              $region54: #{forward.17} parent=47 // loop_footer_branch
                %1476 = sbr.rel target = $region50
              $region55: #{forward.17} parent=47 // loop_exit
                _
              %s1620 = sshrl.u32 %s1462, 6
              %s1621 = sand.u32 %s1462, 63
              %s1622 = smul.u32 %s1620, 64
              %s1623 = smul.u32 8, %s1622
              %s1624 = scalar_lea.vmem %s1455, %s1623 [#allocation2]
              %s1625 = smul.u32 8, %s1622
              %s1626 = scalar_lea.vmem %s1466, %s1625
              // While loop
              $region56: #{forward.17} parent=47 // loop_pre_header
                _
              $region57: #{forward.17} parent=47 // loop_header
                %s1628 = sphi 0, %s1630
                %p1629 = scmp.ge.s32.totalorder %s1628, %s1621
                %s1633 = sphi 0, %s1640
                %s1634 = sphi %s1624, %s1643
                %s1635 = sphi %s1626, %s1644
              $region58: #{forward.17} parent=47 // loop_header_branch
                %1632 = sbr.rel (%p1629) target = $region62
              $region59: #{forward.17} parent=47 // loop_body
                %v1636 = vld [vmem:[%s1634] sm:$0xff]
                %1637 = vst [vmem:[%s1635] sm:$0xff] %v1636
                %s1638 = sadd.s32 1, %s1633
                %p1639 = scmp.ge.s32.totalorder %s1638, %s1621
                %s1640 = scalar_select %p1639, 0, %s1638
                %s1641 = smul.u32 %s1640, 8
                %s1642 = smul.u32 %s1640, 8
                %s1643 = scalar_lea.vmem %s1624, %s1641 [#allocation2]
                %s1644 = scalar_lea.vmem %s1626, %s1642
              $region60: #{forward.17} parent=47 // loop_footer
                %s1630 = sadd.s32 %s1628, 1
              $region61: #{forward.17} parent=47 // loop_footer_branch
                %1627 = sbr.rel target = $region57
              $region62: #{forward.17} parent=47 // loop_exit
                _
            $region48: #{forward.17} parent=39 // pred_fallthru
              _
          $region40: #{forward.17} parent=35 // pred_fallthru
            _
          %1819 = vnop
        $region36: #{forward.17} parent=31 // pred_fallthru
          _
      $region32: #{forward.17} parent=5 // pred_fallthru
        _
      %p1820 = scmp.le.s32.totalorder 2, %s9
      // Predicated region
      $region85: #{forward.17} parent=5 // pred_check
        %p1821 = pneg %p1820
      $region86: #{forward.17} parent=5 // pred_check_branch
        %1823 = sbr.rel (%p1821) target = $region88
      $region87: #{forward.17} parent=5 // pred_region
        %s1824 = ssub.s32 %s9, 2
        // Predicated region
        $region89: #{forward.17} parent=87 // pred_check
          %p1825 = pneg %p106
        $region90: #{forward.17} parent=87 // pred_check_branch
          %1827 = sbr.rel (%p1825) target = $region92
        $region91: #{forward.17} parent=87 // pred_region
          %s1828 = sand.u32 %s91, 1
          %s1829 = sand.u32 %s91, 1
          %s1830 = smul.addr %s1829, 512
          %s1831 = scalar_lea.vmem [#allocation2], %s1830
        $region92: #{forward.17} parent=87 // pred_fallthru
          _
      $region88: #{forward.17} parent=5 // pred_fallthru
        _
    $region6: #{forward.17} parent=1 // loop_footer
      %s13 = sadd.s32 1, %s9
    $region7: #{forward.17} parent=1 // loop_footer_branch
      %8 = sbr.rel target = $region3
    $region8: #{forward.17} parent=1 // loop_exit
      _

</llo_original>
